<compile_context>
chip_gen: v5e
topology: v5e:2x2
jax: 0.10.0
libtpu: 0.0.40
codegen_flags: <defaults>
</compile_context>

<pallas_src>
import math
from functools import partial

import numpy as np
import jax
import jax.numpy as jnp
from jax.experimental import pallas as pl
from jax.experimental.pallas import tpu as pltpu

# ------------------------- hyper-parameters (small) -------------------------
B = 2                 # minibatch
T = 4                 # dynamic timepoints (== len(sampling_endpoints))
N = 8                 # brain regions / nodes
W = 16                # window_size
C = 32                # hidden_dim
NUM_HEADS = 4
NUM_LAYERS = 2
NUM_CLASSES = 3
SPARSITY = 30.0       # keep top 30% edges
T_ENC = 8             # encoder sequence length
SAMPLING_ENDPOINTS = (2, 4, 6, 8)
HEAD_DIM = C // NUM_HEADS
LN_EPS = 1e-5


def _layernorm(x, g, b):
    mu = jnp.mean(x, axis=-1, keepdims=True)
    var = jnp.mean((x - mu) ** 2, axis=-1, keepdims=True)
    return (x - mu) * jax.lax.rsqrt(var + LN_EPS) * g + b


# ----------------------- fused whole-forward Pallas kernel -------------------
def _fused_decoder_kernel(
        dyn_t_ref, adj_raw_ref, thr_ref, qs_ref, xenc_ref,        # activations
        head_mask_ref, attn_bias_ref, ro_bias_ref, ro_ones_ref,   # constant masks
        segsum_ref, headavg_ref, pool_ref,
        eps_ref,                                                  # GIN eps (SMEM)
        w0t_ref, b0_ref,
        gw1_ref, gb1_ref, gg1_ref, gbe1_ref,
        gw2_ref, gb2_ref, gg2_ref, gbe2_ref,
        wq_ref, bq_ref, wk_ref, bk_ref, wv_ref, bv_ref,
        ow_ref, ob_ref,
        ln1g_ref, ln1b_ref,
        mw1_ref, mb1_ref, mw2_ref, mb2_ref,
        ln2g_ref, ln2b_ref,
        clsw_ref, clsb_ref,
        logit_ref, tatt_ref,
        *, num_heads):
    f32, bf16 = jnp.float32, jnp.bfloat16
    bt, c = qs_ref.shape
    b, ncls = logit_ref.shape
    num_layers = gw1_ref.shape[0]
    hd = c // num_heads
    scale = 1.0 / math.sqrt(hd)

    # ---------------- one-time (layer-invariant) full-slab prep ----------------
    # thresholded block-diagonal adjacency: ONE compare (off-block entries of
    # adj_raw are -1e30 so they compare False automatically).
    a_bd = (adj_raw_ref[...] > thr_ref[...]).astype(bf16)          # (BTN, BTN)

    # initial_linear over all (b, t, n) rows at once
    h = jnp.dot(dyn_t_ref[...].astype(bf16), w0t_ref[...],
                preferred_element_type=f32) + b0_ref[...]          # (BTN, C) f32

    qs_b = qs_ref[...].astype(bf16)                                # (BT, C)
    xenc_b = xenc_ref[...].astype(bf16)                            # (BTK, C)
    head_mask = head_mask_ref[...]                                 # (H*BTK, C) f32
    attn_bias = attn_bias_ref[...]                                 # (BT, H*BTK) f32
    ro_bias = ro_bias_ref[...]                                     # (BT, BTN)  f32
    ro_ones = ro_ones_ref[...]                                     # (BT, BTN)  f32
    segsum = segsum_ref[...]                                       # (H*BTK, H*BTK) bf16
    headavg = headavg_ref[...]                                     # (H*BTK, BTK)   bf16
    pool = pool_ref[...]                                           # (B, BT)        bf16

    logit = jnp.zeros((b, ncls), f32)
    tatt_parts = []

    for l in range(num_layers):
        # ------------- LayerGIN: one block-diagonal matmul + MLP -------------
        h_b = h.astype(bf16)
        agg = jnp.dot(a_bd, h_b, preferred_element_type=f32)       # (BTN, C)
        x = agg + eps_ref[l] * h
        x = jnp.dot(x.astype(bf16), gw1_ref[l],
                    preferred_element_type=f32) + gb1_ref[l]
        x = jnp.maximum(_layernorm(x, gg1_ref[l], gbe1_ref[l]), 0.0)
        x = jnp.dot(x.astype(bf16), gw2_ref[l],
                    preferred_element_type=f32) + gb2_ref[l]
        h = jnp.maximum(_layernorm(x, gg2_ref[l], gbe2_ref[l]), 0.0)  # (BTN, C)
        h_b = h.astype(bf16)

        # ------- SA readout, all (b, t) blocks at once (masked softmax) -------
        s = jax.lax.dot_general(qs_b, h_b, (((1,), (1,)), ((), ())),
                                preferred_element_type=f32)        # (BT, BTN)
        s = s + ro_bias
        s = s - jnp.max(s, axis=-1, keepdims=True)
        e = jnp.exp(s)                                             # 0 off-block
        p = e * pl.reciprocal(jnp.sum(e, axis=-1, keepdims=True), approx=True)
        w_sa = (p + ro_ones).astype(bf16)                          # softmax + 1 in-block
        x_dec = jnp.dot(w_sa, h_b, preferred_element_type=f32)     # (BT, C)

        # ------ multi-head attention, batched over batches AND heads ---------
        q_lin = jnp.dot(x_dec.astype(bf16), wq_ref[l],
                        preferred_element_type=f32) + bq_ref[l]    # (BT, C)
        k_lin = jnp.dot(xenc_b, wk_ref[l],
                        preferred_element_type=f32) + bk_ref[l]    # (BTK, C)
        v_lin = jnp.dot(xenc_b, wv_ref[l],
                        preferred_element_type=f32) + bv_ref[l]
        # head-block-diagonal K / V slabs: (H*BTK, C), channel c only live in
        # head c // hd
        k_bd = (jnp.tile(k_lin, (num_heads, 1)) * head_mask).astype(bf16)
        v_bd = (jnp.tile(v_lin, (num_heads, 1)) * head_mask).astype(bf16)

        sc = jax.lax.dot_general(q_lin.astype(bf16), k_bd,
                                 (((1,), (1,)), ((), ())),
                                 preferred_element_type=f32)       # (BT, H*BTK)
        sc = sc * scale + attn_bias                                # cross-batch -> -1e30
        sc = sc - jnp.max(sc, axis=-1, keepdims=True)
        esc = jnp.exp(sc)
        denom = jnp.dot(esc.astype(bf16), segsum,                  # per-head seg-sum
                        preferred_element_type=f32)
        p_att = esc * pl.reciprocal(jnp.maximum(denom, 1e-30), approx=True)
        attn = jnp.dot(p_att.astype(bf16), v_bd,
                       preferred_element_type=f32)                 # (BT, C)
        # head-averaged attention map, kept as a value (single store at end)
        tatt_parts.append(
            jnp.dot(p_att.astype(bf16), headavg,
                    preferred_element_type=f32) * (1.0 / num_heads))   # (BT, BTK)

        out = jnp.dot(attn.astype(bf16), ow_ref[l],
                      preferred_element_type=f32) + ob_ref[l]      # (BT, C)

        # --------- dropout(=id) -> LN1 -> MLP -> residual -> LN2 -------------
        y = _layernorm(out, ln1g_ref[l], ln1b_ref[l])
        z = jnp.maximum(jnp.dot(y.astype(bf16), mw1_ref[l],
                                preferred_element_type=f32) + mb1_ref[l], 0.0)
        z = jnp.dot(z.astype(bf16), mw2_ref[l],
                    preferred_element_type=f32) + mb2_ref[l]
        h_att = _layernorm(y + z, ln2g_ref[l], ln2b_ref[l])        # (BT, C)

        # ------- cls token (sum over time) + per-layer classifier ------------
        h_dyn = jnp.dot(pool, h_att.astype(bf16),
                        preferred_element_type=f32)                # (B, C)
        logit = logit + (jnp.dot(h_dyn.astype(bf16), clsw_ref[l],
                                 preferred_element_type=f32) + clsb_ref[l])

    logit_ref[...] = logit                                         # single store
    tatt_ref[...] = jnp.concatenate(tatt_parts, axis=-1)           # single store


# ------------------------------ host wrapper ---------------------------------
def _full_spec(shape):
    nd = len(shape)
    return pl.BlockSpec(shape, lambda *args, _nd=nd: (0,) * _nd)


_SMEM_SPEC = pl.BlockSpec(memory_space=pltpu.MemorySpace.SMEM)

_WEIGHT_KEYS = ("w0t", "b0",
                "gin_w1t", "gin_b1", "gin_g1", "gin_be1",
                "gin_w2t", "gin_b2", "gin_g2", "gin_be2",
                "wq_t", "bq", "wk_t", "bk", "wv_t", "bv",
                "out_wt", "out_b",
                "ln1_g", "ln1_b",
                "mlp_w1t", "mlp_b1", "mlp_w2t", "mlp_b2",
                "ln2_g", "ln2_b",
                "cls_wt", "cls_b")


def _build_masks(b, t, n, tk, c, num_heads):
    """Compile-time constant block masks (numpy, folded at trace time)."""
    bt, btn, btk = b * t, b * t * n, b * tk
    hd = c // num_heads
    hk = num_heads * btk
    f32, bf16 = jnp.float32, jnp.bfloat16

    rows = np.arange(hk)[:, None]
    head_mask = ((np.arange(c)[None, :] // hd) == (rows // btk)).astype(np.float32)

    q = np.arange(bt)[:, None]
    lane = np.arange(hk)[None, :]
    attn_bias = np.where((q // t) == ((lane % btk) // tk), 0.0, -1e30).astype(np.float32)

    rcol = np.arange(btn)[None, :]
    in_blk = (rcol // n) == q
    ro_bias = np.where(in_blk, 0.0, -1e30).astype(np.float32)
    ro_ones = in_blk.astype(np.float32)

    aa = np.arange(hk)
    segsum = ((aa[:, None] // btk) == (aa[None, :] // btk)).astype(np.float32)
    headavg = ((aa[:, None] % btk) == np.arange(btk)[None, :]).astype(np.float32)
    pool = ((np.arange(bt)[None, :] // t) == np.arange(b)[:, None]).astype(np.float32)

    return (jnp.asarray(head_mask, f32), jnp.asarray(attn_bias, f32),
            jnp.asarray(ro_bias, f32), jnp.asarray(ro_ones, f32),
            jnp.asarray(segsum, bf16), jnp.asarray(headavg, bf16),
            jnp.asarray(pool, bf16))


def brain_decoder_forward(params, dyn_t, dyn_a, e_s, x_enc, sampling_endpoints):
    b, t, n, w = dyn_t.shape
    tk = x_enc.shape[0]
    c = e_s.shape[-1]
    num_layers = params["gin_w1t"].shape[0]
    ncls = params["cls_wt"].shape[-1]
    bt, btn, btk = b * t, b * t * n, b * tk

    # --- tiny, loop-invariant host-side prep; everything else runs in-kernel ---
    dyn_t_flat = dyn_t.reshape(btn, w)

    # per-(b,t) percentile threshold, replicated per node row (64-element sort)
    thr = jnp.percentile(dyn_a.reshape(bt, -1), 100.0 - SPARSITY, axis=-1)
    thr_rows = jnp.repeat(thr, n).reshape(btn, 1).astype(jnp.float32)

    # raw block-diagonal adjacency with off-block entries at -1e30 so the
    # in-kernel `> thr` compare yields the thresholded block-diag matrix in one op
    a_flat = dyn_a.reshape(bt, n, n)
    same_blk = (jnp.arange(bt)[:, None, None, None]
                == jnp.arange(bt)[None, None, :, None])
    adj_raw = jnp.where(same_blk, a_flat[:, :, None, :],
                        -1e30).reshape(btn, btn).astype(jnp.float32)

    # q_s[b, t] = e_s[b] + X_enc[sampling_endpoints[t] - 1, b]
    ep = [int(p) - 1 for p in sampling_endpoints]
    xg = jnp.stack([x_enc[i] for i in ep], axis=0)                 # (T, B, C)
    qs = (e_s[:, None, :] + jnp.transpose(xg, (1, 0, 2))).reshape(bt, c)
    xenc_flat = jnp.transpose(x_enc, (1, 0, 2)).reshape(btk, c)    # (B*TK, C)

    masks = _build_masks(b, t, n, tk, c, NUM_HEADS)

    acts = [dyn_t_flat, adj_raw, thr_rows, qs, xenc_flat]
    smem = [params["gin_eps"]]
    weights = [params[k] for k in _WEIGHT_KEYS]

    in_specs = ([_full_spec(a.shape) for a in acts]
                + [_full_spec(m.shape) for m in masks]
                + [_SMEM_SPEC]
                + [_full_spec(p.shape) for p in weights])

    # NOTE: on v7x one could use grid=(B,), dimension_semantics=("parallel",) to
    # shard the batch across the two TensorCores; kept at grid=(1,) for v5e/v6e.
    logit, tatt = pl.pallas_call(
        partial(_fused_decoder_kernel, num_heads=NUM_HEADS),
        out_shape=(jax.ShapeDtypeStruct((b, ncls), jnp.float32),
                   jax.ShapeDtypeStruct((bt, num_layers * btk), jnp.float32)),
        grid=(1,),
        in_specs=in_specs,
        out_specs=(_full_spec((b, ncls)),
                   _full_spec((bt, num_layers * btk))),
        compiler_params=pltpu.CompilerParams(
            dimension_semantics=("arbitrary",)),
    )(*acts, *masks, *smem, *weights)

    # extract the per-batch diagonal blocks of the head-averaged attention maps
    tatt5 = tatt.reshape(b, t, num_layers, b, tk)
    idx = jnp.arange(b)
    time_attention = jnp.transpose(tatt5[idx, :, :, idx, :], (0, 2, 1, 3))
    return logit, time_attention                                   # (B,NC), (B,L,T,TK)


# --------------------------- parameters (deterministic) ----------------------
def init_params(key):
    keys = iter(jax.random.split(key, 64))
    nrm = lambda shape, s=0.1: s * jax.random.normal(next(keys), shape, jnp.float32)
    bfw = lambda shape, s=0.1: nrm(shape, s).astype(jnp.bfloat16)   # matmul weights
    L = NUM_LAYERS
    return {
        # initial_linear (window_size -> hidden), stored pre-transposed (W, C)
        "w0t": bfw((W, C)), "b0": nrm((1, C)),
        # LayerGIN (stacked over layers)
        "gin_eps": jnp.zeros((L,), jnp.float32),          # torch init [[0.0]]
        "gin_w1t": bfw((L, C, C)), "gin_b1": nrm((L, 1, C)),
        "gin_g1": 1.0 + nrm((L, 1, C), 0.01), "gin_be1": nrm((L, 1, C), 0.01),
        "gin_w2t": bfw((L, C, C)), "gin_b2": nrm((L, 1, C)),
        "gin_g2": 1.0 + nrm((L, 1, C), 0.01), "gin_be2": nrm((L, 1, C), 0.01),
        # nn.MultiheadAttention projections (q / k / v separate, out proj)
        "wq_t": bfw((L, C, C)), "bq": nrm((L, 1, C)),
        "wk_t": bfw((L, C, C)), "bk": nrm((L, 1, C)),
        "wv_t": bfw((L, C, C)), "bv": nrm((L, 1, C)),
        "out_wt": bfw((L, C, C)), "out_b": nrm((L, 1, C)),
        # ModuleTransformer post-attention
        "ln1_g": 1.0 + nrm((L, 1, C), 0.01), "ln1_b": nrm((L, 1, C), 0.01),
        "mlp_w1t": bfw((L, C, 2 * C)), "mlp_b1": nrm((L, 1, 2 * C)),
        "mlp_w2t": bfw((L, 2 * C, C)), "mlp_b2": nrm((L, 1, C)),
        "ln2_g": 1.0 + nrm((L, 1, C), 0.01), "ln2_b": nrm((L, 1, C), 0.01),
        # per-layer classifier
        "cls_wt": bfw((L, C, NUM_CLASSES)), "cls_b": nrm((L, 1, NUM_CLASSES)),
    }


if __name__ == "__main__":
    key = jax.random.PRNGKey(0)
    k_par, k_t, k_a, k_e, k_x = jax.random.split(key, 5)
    params = init_params(k_par)

    dyn_t = jax.random.normal(k_t, (B, T, N, W), jnp.float32)
    dyn_a = jax.random.uniform(k_a, (B, T, N, N), jnp.float32)
    e_s = jax.random.normal(k_e, (B, C), jnp.float32)
    x_enc = jax.random.normal(k_x, (T_ENC, B, C), jnp.float32)

    fwd = jax.jit(partial(brain_decoder_forward,
                          sampling_endpoints=SAMPLING_ENDPOINTS))
    logit, time_attention = fwd(params, dyn_t, dyn_a, e_s, x_enc)
    jax.block_until_ready((logit, time_attention))

    assert logit.shape == (B, NUM_CLASSES)
    assert time_attention.shape == (B, NUM_LAYERS, T, T_ENC)
    assert bool(jnp.all(jnp.isfinite(logit)))
    assert bool(jnp.all(jnp.isfinite(time_attention)))
    print("KERNEL_OK")
</pallas_src>

<mosaic_0001>
module attributes {stable_mosaic.version = 11 : i64} {
  func.func @_fused_decoder_kernel(%arg0: i32, %arg1: memref<64x16xf32, #tpu.memory_space<vmem>>, %arg2: memref<64x64xf32, #tpu.memory_space<vmem>>, %arg3: memref<64x1xf32, #tpu.memory_space<vmem>>, %arg4: memref<8x32xf32, #tpu.memory_space<vmem>>, %arg5: memref<16x32xf32, #tpu.memory_space<vmem>>, %arg6: memref<64x32xf32, #tpu.memory_space<vmem>>, %arg7: memref<8x64xf32, #tpu.memory_space<vmem>>, %arg8: memref<8x64xf32, #tpu.memory_space<vmem>>, %arg9: memref<8x64xf32, #tpu.memory_space<vmem>>, %arg10: memref<64x64xbf16, #tpu.memory_space<vmem>>, %arg11: memref<64x16xbf16, #tpu.memory_space<vmem>>, %arg12: memref<2x8xbf16, #tpu.memory_space<vmem>>, %arg13: memref<2xf32, #tpu.memory_space<smem>>, %arg14: memref<16x32xbf16, #tpu.memory_space<vmem>>, %arg15: memref<1x32xf32, #tpu.memory_space<vmem>>, %arg16: memref<2x32x32xbf16, #tpu.memory_space<vmem>>, %arg17: memref<2x1x32xf32, #tpu.memory_space<vmem>>, %arg18: memref<2x1x32xf32, #tpu.memory_space<vmem>>, %arg19: memref<2x1x32xf32, #tpu.memory_space<vmem>>, %arg20: memref<2x32x32xbf16, #tpu.memory_space<vmem>>, %arg21: memref<2x1x32xf32, #tpu.memory_space<vmem>>, %arg22: memref<2x1x32xf32, #tpu.memory_space<vmem>>, %arg23: memref<2x1x32xf32, #tpu.memory_space<vmem>>, %arg24: memref<2x32x32xbf16, #tpu.memory_space<vmem>>, %arg25: memref<2x1x32xf32, #tpu.memory_space<vmem>>, %arg26: memref<2x32x32xbf16, #tpu.memory_space<vmem>>, %arg27: memref<2x1x32xf32, #tpu.memory_space<vmem>>, %arg28: memref<2x32x32xbf16, #tpu.memory_space<vmem>>, %arg29: memref<2x1x32xf32, #tpu.memory_space<vmem>>, %arg30: memref<2x32x32xbf16, #tpu.memory_space<vmem>>, %arg31: memref<2x1x32xf32, #tpu.memory_space<vmem>>, %arg32: memref<2x1x32xf32, #tpu.memory_space<vmem>>, %arg33: memref<2x1x32xf32, #tpu.memory_space<vmem>>, %arg34: memref<2x32x64xbf16, #tpu.memory_space<vmem>>, %arg35: memref<2x1x64xf32, #tpu.memory_space<vmem>>, %arg36: memref<2x64x32xbf16, #tpu.memory_space<vmem>>, %arg37: memref<2x1x32xf32, #tpu.memory_space<vmem>>, %arg38: memref<2x1x32xf32, #tpu.memory_space<vmem>>, %arg39: memref<2x1x32xf32, #tpu.memory_space<vmem>>, %arg40: memref<2x32x3xbf16, #tpu.memory_space<vmem>>, %arg41: memref<2x1x3xf32, #tpu.memory_space<vmem>>, %arg42: memref<2x3xf32, #tpu.memory_space<vmem>>, %arg43: memref<8x32xf32, #tpu.memory_space<vmem>>) attributes {dimension_semantics = [#tpu.dimension_semantics<arbitrary>], iteration_bounds = array<i64: 1>, scalar_prefetch = 0 : i64, scratch_operands = 0 : i64, tpu.core_type = #tpu.core_type<tc>, window_params = [{pipeline_mode = #tpu.pipeline_mode<synchronous>, transform_indices = @transform_0, window_bounds = array<i64: 64, 16>}, {pipeline_mode = #tpu.pipeline_mode<synchronous>, transform_indices = @transform_1, window_bounds = array<i64: 64, 64>}, {pipeline_mode = #tpu.pipeline_mode<synchronous>, transform_indices = @transform_2, window_bounds = array<i64: 64, 1>}, {pipeline_mode = #tpu.pipeline_mode<synchronous>, transform_indices = @transform_3, window_bounds = array<i64: 8, 32>}, {pipeline_mode = #tpu.pipeline_mode<synchronous>, transform_indices = @transform_4, window_bounds = array<i64: 16, 32>}, {pipeline_mode = #tpu.pipeline_mode<synchronous>, transform_indices = @transform_5, window_bounds = array<i64: 64, 32>}, {pipeline_mode = #tpu.pipeline_mode<synchronous>, transform_indices = @transform_6, window_bounds = array<i64: 8, 64>}, {pipeline_mode = #tpu.pipeline_mode<synchronous>, transform_indices = @transform_7, window_bounds = array<i64: 8, 64>}, {pipeline_mode = #tpu.pipeline_mode<synchronous>, transform_indices = @transform_8, window_bounds = array<i64: 8, 64>}, {pipeline_mode = #tpu.pipeline_mode<synchronous>, transform_indices = @transform_9, window_bounds = array<i64: 64, 64>}, {pipeline_mode = #tpu.pipeline_mode<synchronous>, transform_indices = @transform_10, window_bounds = array<i64: 64, 16>}, {pipeline_mode = #tpu.pipeline_mode<synchronous>, transform_indices = @transform_11, window_bounds = array<i64: 2, 8>}, {transform_indices = @transform_12, window_bounds = array<i64: 2>}, {pipeline_mode = #tpu.pipeline_mode<synchronous>, transform_indices = @transform_13, window_bounds = array<i64: 16, 32>}, {pipeline_mode = #tpu.pipeline_mode<synchronous>, transform_indices = @transform_14, window_bounds = array<i64: 1, 32>}, {pipeline_mode = #tpu.pipeline_mode<synchronous>, transform_indices = @transform_15, window_bounds = array<i64: 2, 32, 32>}, {pipeline_mode = #tpu.pipeline_mode<synchronous>, transform_indices = @transform_16, window_bounds = array<i64: 2, 1, 32>}, {pipeline_mode = #tpu.pipeline_mode<synchronous>, transform_indices = @transform_17, window_bounds = array<i64: 2, 1, 32>}, {pipeline_mode = #tpu.pipeline_mode<synchronous>, transform_indices = @transform_18, window_bounds = array<i64: 2, 1, 32>}, {pipeline_mode = #tpu.pipeline_mode<synchronous>, transform_indices = @transform_19, window_bounds = array<i64: 2, 32, 32>}, {pipeline_mode = #tpu.pipeline_mode<synchronous>, transform_indices = @transform_20, window_bounds = array<i64: 2, 1, 32>}, {pipeline_mode = #tpu.pipeline_mode<synchronous>, transform_indices = @transform_21, window_bounds = array<i64: 2, 1, 32>}, {pipeline_mode = #tpu.pipeline_mode<synchronous>, transform_indices = @transform_22, window_bounds = array<i64: 2, 1, 32>}, {pipeline_mode = #tpu.pipeline_mode<synchronous>, transform_indices = @transform_23, window_bounds = array<i64: 2, 32, 32>}, {pipeline_mode = #tpu.pipeline_mode<synchronous>, transform_indices = @transform_24, window_bounds = array<i64: 2, 1, 32>}, {pipeline_mode = #tpu.pipeline_mode<synchronous>, transform_indices = @transform_25, window_bounds = array<i64: 2, 32, 32>}, {pipeline_mode = #tpu.pipeline_mode<synchronous>, transform_indices = @transform_26, window_bounds = array<i64: 2, 1, 32>}, {pipeline_mode = #tpu.pipeline_mode<synchronous>, transform_indices = @transform_27, window_bounds = array<i64: 2, 32, 32>}, {pipeline_mode = #tpu.pipeline_mode<synchronous>, transform_indices = @transform_28, window_bounds = array<i64: 2, 1, 32>}, {pipeline_mode = #tpu.pipeline_mode<synchronous>, transform_indices = @transform_29, window_bounds = array<i64: 2, 32, 32>}, {pipeline_mode = #tpu.pipeline_mode<synchronous>, transform_indices = @transform_30, window_bounds = array<i64: 2, 1, 32>}, {pipeline_mode = #tpu.pipeline_mode<synchronous>, transform_indices = @transform_31, window_bounds = array<i64: 2, 1, 32>}, {pipeline_mode = #tpu.pipeline_mode<synchronous>, transform_indices = @transform_32, window_bounds = array<i64: 2, 1, 32>}, {pipeline_mode = #tpu.pipeline_mode<synchronous>, transform_indices = @transform_33, window_bounds = array<i64: 2, 32, 64>}, {pipeline_mode = #tpu.pipeline_mode<synchronous>, transform_indices = @transform_34, window_bounds = array<i64: 2, 1, 64>}, {pipeline_mode = #tpu.pipeline_mode<synchronous>, transform_indices = @transform_35, window_bounds = array<i64: 2, 64, 32>}, {pipeline_mode = #tpu.pipeline_mode<synchronous>, transform_indices = @transform_36, window_bounds = array<i64: 2, 1, 32>}, {pipeline_mode = #tpu.pipeline_mode<synchronous>, transform_indices = @transform_37, window_bounds = array<i64: 2, 1, 32>}, {pipeline_mode = #tpu.pipeline_mode<synchronous>, transform_indices = @transform_38, window_bounds = array<i64: 2, 1, 32>}, {pipeline_mode = #tpu.pipeline_mode<synchronous>, transform_indices = @transform_39, window_bounds = array<i64: 2, 32, 3>}, {pipeline_mode = #tpu.pipeline_mode<synchronous>, transform_indices = @transform_40, window_bounds = array<i64: 2, 1, 3>}, {pipeline_mode = #tpu.pipeline_mode<synchronous>, transform_indices = @transform_41, window_bounds = array<i64: 2, 3>}, {pipeline_mode = #tpu.pipeline_mode<synchronous>, transform_indices = @transform_42, window_bounds = array<i64: 8, 32>}]} {
    %c0 = arith.constant 0 : index
    %c0_0 = arith.constant 0 : index
    %0 = vector.load %arg2[%c0, %c0_0] : memref<64x64xf32, #tpu.memory_space<vmem>>, vector<64x64xf32>
    %c0_1 = arith.constant 0 : index
    %c0_2 = arith.constant 0 : index
    %1 = vector.load %arg3[%c0_1, %c0_2] : memref<64x1xf32, #tpu.memory_space<vmem>>, vector<64x1xf32>
    %2 = vector.broadcast %1 : vector<64x1xf32> to vector<64x64xf32>
    %3 = arith.cmpf ogt, %0, %2 : vector<64x64xf32>
    %4 = arith.extui %3 : vector<64x64xi1> to vector<64x64xi32>
    %5 = arith.sitofp %4 : vector<64x64xi32> to vector<64x64xf32>
    %6 = arith.truncf %5 : vector<64x64xf32> to vector<64x64xbf16>
    %c0_3 = arith.constant 0 : index
    %c0_4 = arith.constant 0 : index
    %7 = vector.load %arg1[%c0_3, %c0_4] : memref<64x16xf32, #tpu.memory_space<vmem>>, vector<64x16xf32>
    %8 = arith.truncf %7 : vector<64x16xf32> to vector<64x16xbf16>
    %c0_5 = arith.constant 0 : index
    %c0_6 = arith.constant 0 : index
    %9 = vector.load %arg14[%c0_5, %c0_6] : memref<16x32xbf16, #tpu.memory_space<vmem>>, vector<16x32xbf16>
    %cst = arith.constant dense<0.000000e+00> : vector<64x32xf32>
    %10 = tpu.matmul %8, %9, %cst {dimension_numbers = #tpu.dot_dimension_numbers<[1], [0], [0], [1], [0, 0, 1, 1], [], []>} : vector<64x16xbf16>, vector<16x32xbf16>, vector<64x32xf32> -> vector<64x32xf32>
    %c0_7 = arith.constant 0 : index
    %c0_8 = arith.constant 0 : index
    %11 = vector.load %arg15[%c0_7, %c0_8] : memref<1x32xf32, #tpu.memory_space<vmem>>, vector<1x32xf32>
    %12 = vector.broadcast %11 : vector<1x32xf32> to vector<64x32xf32>
    %13 = arith.addf %10, %12 : vector<64x32xf32>
    %c0_9 = arith.constant 0 : index
    %c0_10 = arith.constant 0 : index
    %14 = vector.load %arg4[%c0_9, %c0_10] : memref<8x32xf32, #tpu.memory_space<vmem>>, vector<8x32xf32>
    %15 = arith.truncf %14 : vector<8x32xf32> to vector<8x32xbf16>
    %c0_11 = arith.constant 0 : index
    %c0_12 = arith.constant 0 : index
    %16 = vector.load %arg5[%c0_11, %c0_12] : memref<16x32xf32, #tpu.memory_space<vmem>>, vector<16x32xf32>
    %17 = arith.truncf %16 : vector<16x32xf32> to vector<16x32xbf16>
    %c0_13 = arith.constant 0 : index
    %c0_14 = arith.constant 0 : index
    %18 = vector.load %arg6[%c0_13, %c0_14] : memref<64x32xf32, #tpu.memory_space<vmem>>, vector<64x32xf32>
    %c0_15 = arith.constant 0 : index
    %c0_16 = arith.constant 0 : index
    %19 = vector.load %arg7[%c0_15, %c0_16] : memref<8x64xf32, #tpu.memory_space<vmem>>, vector<8x64xf32>
    %c0_17 = arith.constant 0 : index
    %c0_18 = arith.constant 0 : index
    %20 = vector.load %arg8[%c0_17, %c0_18] : memref<8x64xf32, #tpu.memory_space<vmem>>, vector<8x64xf32>
    %c0_19 = arith.constant 0 : index
    %c0_20 = arith.constant 0 : index
    %21 = vector.load %arg9[%c0_19, %c0_20] : memref<8x64xf32, #tpu.memory_space<vmem>>, vector<8x64xf32>
    %c0_21 = arith.constant 0 : index
    %c0_22 = arith.constant 0 : index
    %22 = vector.load %arg10[%c0_21, %c0_22] : memref<64x64xbf16, #tpu.memory_space<vmem>>, vector<64x64xbf16>
    %c0_23 = arith.constant 0 : index
    %c0_24 = arith.constant 0 : index
    %23 = vector.load %arg11[%c0_23, %c0_24] : memref<64x16xbf16, #tpu.memory_space<vmem>>, vector<64x16xbf16>
    %c0_25 = arith.constant 0 : index
    %c0_26 = arith.constant 0 : index
    %24 = vector.load %arg12[%c0_25, %c0_26] : memref<2x8xbf16, #tpu.memory_space<vmem>>, vector<2x8xbf16>
    %cst_27 = arith.constant 0.000000e+00 : f32
    %25 = vector.broadcast %cst_27 : f32 to vector<2x3xf32>
    %26 = arith.truncf %13 : vector<64x32xf32> to vector<64x32xbf16>
    %cst_28 = arith.constant dense<0.000000e+00> : vector<64x32xf32>
    %27 = tpu.matmul %6, %26, %cst_28 {dimension_numbers = #tpu.dot_dimension_numbers<[1], [0], [0], [1], [0, 0, 1, 1], [], []>} : vector<64x64xbf16>, vector<64x32xbf16>, vector<64x32xf32> -> vector<64x32xf32>
    %c0_29 = arith.constant 0 : index
    %28 = memref.load %arg13[%c0_29] : memref<2xf32, #tpu.memory_space<smem>>
    %29 = vector.broadcast %28 : f32 to vector<64x32xf32>
    %30 = arith.mulf %29, %13 : vector<64x32xf32>
    %31 = arith.addf %27, %30 : vector<64x32xf32>
    %32 = arith.truncf %31 : vector<64x32xf32> to vector<64x32xbf16>
    %c0_30 = arith.constant 0 : index
    %c0_31 = arith.constant 0 : index
    %c0_32 = arith.constant 0 : index
    %33 = vector.load %arg16[%c0_30, %c0_31, %c0_32] : memref<2x32x32xbf16, #tpu.memory_space<vmem>>, vector<1x32x32xbf16>
    %34 = vector.shape_cast %33 : vector<1x32x32xbf16> to vector<32x32xbf16>
    %cst_33 = arith.constant dense<0.000000e+00> : vector<64x32xf32>
    %35 = tpu.matmul %32, %34, %cst_33 {dimension_numbers = #tpu.dot_dimension_numbers<[1], [0], [0], [1], [0, 0, 1, 1], [], []>} : vector<64x32xbf16>, vector<32x32xbf16>, vector<64x32xf32> -> vector<64x32xf32>
    %c0_34 = arith.constant 0 : index
    %c0_35 = arith.constant 0 : index
    %c0_36 = arith.constant 0 : index
    %36 = vector.load %arg17[%c0_34, %c0_35, %c0_36] : memref<2x1x32xf32, #tpu.memory_space<vmem>>, vector<1x1x32xf32>
    %37 = vector.shape_cast %36 : vector<1x1x32xf32> to vector<1x32xf32>
    %38 = vector.broadcast %37 : vector<1x32xf32> to vector<64x32xf32>
    %39 = arith.addf %35, %38 : vector<64x32xf32>
    %c0_37 = arith.constant 0 : index
    %c0_38 = arith.constant 0 : index
    %c0_39 = arith.constant 0 : index
    %40 = vector.load %arg18[%c0_37, %c0_38, %c0_39] : memref<2x1x32xf32, #tpu.memory_space<vmem>>, vector<1x1x32xf32>
    %41 = vector.shape_cast %40 : vector<1x1x32xf32> to vector<1x32xf32>
    %c0_40 = arith.constant 0 : index
    %c0_41 = arith.constant 0 : index
    %c0_42 = arith.constant 0 : index
    %42 = vector.load %arg19[%c0_40, %c0_41, %c0_42] : memref<2x1x32xf32, #tpu.memory_space<vmem>>, vector<1x1x32xf32>
    %43 = vector.shape_cast %42 : vector<1x1x32xf32> to vector<1x32xf32>
    %cst_43 = arith.constant dense<0.000000e+00> : vector<64xf32>
    %44 = vector.multi_reduction <add>, %39, %cst_43 [1] : vector<64x32xf32> to vector<64xf32>
    %45 = vector.shape_cast %44 : vector<64xf32> to vector<64x1xf32>
    %cst_44 = arith.constant 3.200000e+01 : f32
    %46 = vector.broadcast %cst_44 : f32 to vector<64x1xf32>
    %47 = arith.divf %45, %46 : vector<64x1xf32>
    %48 = vector.broadcast %47 : vector<64x1xf32> to vector<64x32xf32>
    %49 = arith.subf %39, %48 : vector<64x32xf32>
    %50 = arith.mulf %49, %49 : vector<64x32xf32>
    %cst_45 = arith.constant dense<0.000000e+00> : vector<64xf32>
    %51 = vector.multi_reduction <add>, %50, %cst_45 [1] : vector<64x32xf32> to vector<64xf32>
    %52 = vector.shape_cast %51 : vector<64xf32> to vector<64x1xf32>
    %cst_46 = arith.constant 3.200000e+01 : f32
    %53 = vector.broadcast %cst_46 : f32 to vector<64x1xf32>
    %54 = arith.divf %52, %53 : vector<64x1xf32>
    %55 = vector.broadcast %47 : vector<64x1xf32> to vector<64x32xf32>
    %56 = arith.subf %39, %55 : vector<64x32xf32>
    %cst_47 = arith.constant 9.99999974E-6 : f32
    %57 = vector.broadcast %cst_47 : f32 to vector<64x1xf32>
    %58 = arith.addf %54, %57 : vector<64x1xf32>
    %59 = math.rsqrt %58 : vector<64x1xf32>
    %60 = vector.broadcast %59 : vector<64x1xf32> to vector<64x32xf32>
    %61 = arith.mulf %56, %60 : vector<64x32xf32>
    %62 = vector.broadcast %41 : vector<1x32xf32> to vector<64x32xf32>
    %63 = arith.mulf %61, %62 : vector<64x32xf32>
    %64 = vector.broadcast %43 : vector<1x32xf32> to vector<64x32xf32>
    %65 = arith.addf %63, %64 : vector<64x32xf32>
    %cst_48 = arith.constant 0.000000e+00 : f32
    %66 = vector.broadcast %cst_48 : f32 to vector<64x32xf32>
    %67 = arith.maximumf %65, %66 : vector<64x32xf32>
    %68 = arith.truncf %67 : vector<64x32xf32> to vector<64x32xbf16>
    %c0_49 = arith.constant 0 : index
    %c0_50 = arith.constant 0 : index
    %c0_51 = arith.constant 0 : index
    %69 = vector.load %arg20[%c0_49, %c0_50, %c0_51] : memref<2x32x32xbf16, #tpu.memory_space<vmem>>, vector<1x32x32xbf16>
    %70 = vector.shape_cast %69 : vector<1x32x32xbf16> to vector<32x32xbf16>
    %cst_52 = arith.constant dense<0.000000e+00> : vector<64x32xf32>
    %71 = tpu.matmul %68, %70, %cst_52 {dimension_numbers = #tpu.dot_dimension_numbers<[1], [0], [0], [1], [0, 0, 1, 1], [], []>} : vector<64x32xbf16>, vector<32x32xbf16>, vector<64x32xf32> -> vector<64x32xf32>
    %c0_53 = arith.constant 0 : index
    %c0_54 = arith.constant 0 : index
    %c0_55 = arith.constant 0 : index
    %72 = vector.load %arg21[%c0_53, %c0_54, %c0_55] : memref<2x1x32xf32, #tpu.memory_space<vmem>>, vector<1x1x32xf32>
    %73 = vector.shape_cast %72 : vector<1x1x32xf32> to vector<1x32xf32>
    %74 = vector.broadcast %73 : vector<1x32xf32> to vector<64x32xf32>
    %75 = arith.addf %71, %74 : vector<64x32xf32>
    %c0_56 = arith.constant 0 : index
    %c0_57 = arith.constant 0 : index
    %c0_58 = arith.constant 0 : index
    %76 = vector.load %arg22[%c0_56, %c0_57, %c0_58] : memref<2x1x32xf32, #tpu.memory_space<vmem>>, vector<1x1x32xf32>
    %77 = vector.shape_cast %76 : vector<1x1x32xf32> to vector<1x32xf32>
    %c0_59 = arith.constant 0 : index
    %c0_60 = arith.constant 0 : index
    %c0_61 = arith.constant 0 : index
    %78 = vector.load %arg23[%c0_59, %c0_60, %c0_61] : memref<2x1x32xf32, #tpu.memory_space<vmem>>, vector<1x1x32xf32>
    %79 = vector.shape_cast %78 : vector<1x1x32xf32> to vector<1x32xf32>
    %cst_62 = arith.constant dense<0.000000e+00> : vector<64xf32>
    %80 = vector.multi_reduction <add>, %75, %cst_62 [1] : vector<64x32xf32> to vector<64xf32>
    %81 = vector.shape_cast %80 : vector<64xf32> to vector<64x1xf32>
    %cst_63 = arith.constant 3.200000e+01 : f32
    %82 = vector.broadcast %cst_63 : f32 to vector<64x1xf32>
    %83 = arith.divf %81, %82 : vector<64x1xf32>
    %84 = vector.broadcast %83 : vector<64x1xf32> to vector<64x32xf32>
    %85 = arith.subf %75, %84 : vector<64x32xf32>
    %86 = arith.mulf %85, %85 : vector<64x32xf32>
    %cst_64 = arith.constant dense<0.000000e+00> : vector<64xf32>
    %87 = vector.multi_reduction <add>, %86, %cst_64 [1] : vector<64x32xf32> to vector<64xf32>
    %88 = vector.shape_cast %87 : vector<64xf32> to vector<64x1xf32>
    %cst_65 = arith.constant 3.200000e+01 : f32
    %89 = vector.broadcast %cst_65 : f32 to vector<64x1xf32>
    %90 = arith.divf %88, %89 : vector<64x1xf32>
    %91 = vector.broadcast %83 : vector<64x1xf32> to vector<64x32xf32>
    %92 = arith.subf %75, %91 : vector<64x32xf32>
    %cst_66 = arith.constant 9.99999974E-6 : f32
    %93 = vector.broadcast %cst_66 : f32 to vector<64x1xf32>
    %94 = arith.addf %90, %93 : vector<64x1xf32>
    %95 = math.rsqrt %94 : vector<64x1xf32>
    %96 = vector.broadcast %95 : vector<64x1xf32> to vector<64x32xf32>
    %97 = arith.mulf %92, %96 : vector<64x32xf32>
    %98 = vector.broadcast %77 : vector<1x32xf32> to vector<64x32xf32>
    %99 = arith.mulf %97, %98 : vector<64x32xf32>
    %100 = vector.broadcast %79 : vector<1x32xf32> to vector<64x32xf32>
    %101 = arith.addf %99, %100 : vector<64x32xf32>
    %cst_67 = arith.constant 0.000000e+00 : f32
    %102 = vector.broadcast %cst_67 : f32 to vector<64x32xf32>
    %103 = arith.maximumf %101, %102 : vector<64x32xf32>
    %104 = arith.truncf %103 : vector<64x32xf32> to vector<64x32xbf16>
    %cst_68 = arith.constant dense<0.000000e+00> : vector<8x64xf32>
    %105 = tpu.matmul %15, %104, %cst_68 {dimension_numbers = #tpu.dot_dimension_numbers<[1], [1], [0], [0], [0, 0, 1, 0], [], []>} : vector<8x32xbf16>, vector<64x32xbf16>, vector<8x64xf32> -> vector<8x64xf32>
    %106 = arith.addf %105, %20 : vector<8x64xf32>
    %cst_69 = arith.constant dense<0xFF800000> : vector<8xf32>
    %107 = vector.multi_reduction <maximumf>, %106, %cst_69 [1] : vector<8x64xf32> to vector<8xf32>
    %108 = vector.shape_cast %107 : vector<8xf32> to vector<8x1xf32>
    %109 = vector.broadcast %108 : vector<8x1xf32> to vector<8x64xf32>
    %110 = arith.subf %106, %109 : vector<8x64xf32>
    %111 = math.exp %110 : vector<8x64xf32>
    %cst_70 = arith.constant dense<0.000000e+00> : vector<8xf32>
    %112 = vector.multi_reduction <add>, %111, %cst_70 [1] : vector<8x64xf32> to vector<8xf32>
    %113 = vector.shape_cast %112 : vector<8xf32> to vector<8x1xf32>
    %114 = tpu.reciprocal %113 {approx = true} : vector<8x1xf32> -> vector<8x1xf32>
    %115 = vector.broadcast %114 : vector<8x1xf32> to vector<8x64xf32>
    %116 = arith.mulf %111, %115 : vector<8x64xf32>
    %117 = arith.addf %116, %21 : vector<8x64xf32>
    %118 = arith.truncf %117 : vector<8x64xf32> to vector<8x64xbf16>
    %cst_71 = arith.constant dense<0.000000e+00> : vector<8x32xf32>
    %119 = tpu.matmul %118, %104, %cst_71 {dimension_numbers = #tpu.dot_dimension_numbers<[1], [0], [0], [1], [0, 0, 1, 1], [], []>} : vector<8x64xbf16>, vector<64x32xbf16>, vector<8x32xf32> -> vector<8x32xf32>
    %120 = arith.truncf %119 : vector<8x32xf32> to vector<8x32xbf16>
    %c0_72 = arith.constant 0 : index
    %c0_73 = arith.constant 0 : index
    %c0_74 = arith.constant 0 : index
    %121 = vector.load %arg24[%c0_72, %c0_73, %c0_74] : memref<2x32x32xbf16, #tpu.memory_space<vmem>>, vector<1x32x32xbf16>
    %122 = vector.shape_cast %121 : vector<1x32x32xbf16> to vector<32x32xbf16>
    %cst_75 = arith.constant dense<0.000000e+00> : vector<8x32xf32>
    %123 = tpu.matmul %120, %122, %cst_75 {dimension_numbers = #tpu.dot_dimension_numbers<[1], [0], [0], [1], [0, 0, 1, 1], [], []>} : vector<8x32xbf16>, vector<32x32xbf16>, vector<8x32xf32> -> vector<8x32xf32>
    %c0_76 = arith.constant 0 : index
    %c0_77 = arith.constant 0 : index
    %c0_78 = arith.constant 0 : index
    %124 = vector.load %arg25[%c0_76, %c0_77, %c0_78] : memref<2x1x32xf32, #tpu.memory_space<vmem>>, vector<1x1x32xf32>
    %125 = vector.shape_cast %124 : vector<1x1x32xf32> to vector<1x32xf32>
    %126 = vector.broadcast %125 : vector<1x32xf32> to vector<8x32xf32>
    %127 = arith.addf %123, %126 : vector<8x32xf32>
    %c0_79 = arith.constant 0 : index
    %c0_80 = arith.constant 0 : index
    %c0_81 = arith.constant 0 : index
    %128 = vector.load %arg26[%c0_79, %c0_80, %c0_81] : memref<2x32x32xbf16, #tpu.memory_space<vmem>>, vector<1x32x32xbf16>
    %129 = vector.shape_cast %128 : vector<1x32x32xbf16> to vector<32x32xbf16>
    %cst_82 = arith.constant dense<0.000000e+00> : vector<16x32xf32>
    %130 = tpu.matmul %17, %129, %cst_82 {dimension_numbers = #tpu.dot_dimension_numbers<[1], [0], [0], [1], [0, 0, 1, 1], [], []>} : vector<16x32xbf16>, vector<32x32xbf16>, vector<16x32xf32> -> vector<16x32xf32>
    %c0_83 = arith.constant 0 : index
    %c0_84 = arith.constant 0 : index
    %c0_85 = arith.constant 0 : index
    %131 = vector.load %arg27[%c0_83, %c0_84, %c0_85] : memref<2x1x32xf32, #tpu.memory_space<vmem>>, vector<1x1x32xf32>
    %132 = vector.shape_cast %131 : vector<1x1x32xf32> to vector<1x32xf32>
    %133 = vector.broadcast %132 : vector<1x32xf32> to vector<16x32xf32>
    %134 = arith.addf %130, %133 : vector<16x32xf32>
    %c0_86 = arith.constant 0 : index
    %c0_87 = arith.constant 0 : index
    %c0_88 = arith.constant 0 : index
    %135 = vector.load %arg28[%c0_86, %c0_87, %c0_88] : memref<2x32x32xbf16, #tpu.memory_space<vmem>>, vector<1x32x32xbf16>
    %136 = vector.shape_cast %135 : vector<1x32x32xbf16> to vector<32x32xbf16>
    %cst_89 = arith.constant dense<0.000000e+00> : vector<16x32xf32>
    %137 = tpu.matmul %17, %136, %cst_89 {dimension_numbers = #tpu.dot_dimension_numbers<[1], [0], [0], [1], [0, 0, 1, 1], [], []>} : vector<16x32xbf16>, vector<32x32xbf16>, vector<16x32xf32> -> vector<16x32xf32>
    %c0_90 = arith.constant 0 : index
    %c0_91 = arith.constant 0 : index
    %c0_92 = arith.constant 0 : index
    %138 = vector.load %arg29[%c0_90, %c0_91, %c0_92] : memref<2x1x32xf32, #tpu.memory_space<vmem>>, vector<1x1x32xf32>
    %139 = vector.shape_cast %138 : vector<1x1x32xf32> to vector<1x32xf32>
    %140 = vector.broadcast %139 : vector<1x32xf32> to vector<16x32xf32>
    %141 = arith.addf %137, %140 : vector<16x32xf32>
    %142 = tpu.concatenate %134, %134, %134, %134 in 0 : vector<16x32xf32>, vector<16x32xf32>, vector<16x32xf32>, vector<16x32xf32> -> vector<64x32xf32>
    %143 = arith.mulf %142, %18 : vector<64x32xf32>
    %144 = arith.truncf %143 : vector<64x32xf32> to vector<64x32xbf16>
    %145 = tpu.concatenate %141, %141, %141, %141 in 0 : vector<16x32xf32>, vector<16x32xf32>, vector<16x32xf32>, vector<16x32xf32> -> vector<64x32xf32>
    %146 = arith.mulf %145, %18 : vector<64x32xf32>
    %147 = arith.truncf %146 : vector<64x32xf32> to vector<64x32xbf16>
    %148 = arith.truncf %127 : vector<8x32xf32> to vector<8x32xbf16>
    %cst_93 = arith.constant dense<0.000000e+00> : vector<8x64xf32>
    %149 = tpu.matmul %148, %144, %cst_93 {dimension_numbers = #tpu.dot_dimension_numbers<[1], [1], [0], [0], [0, 0, 1, 0], [], []>} : vector<8x32xbf16>, vector<64x32xbf16>, vector<8x64xf32> -> vector<8x64xf32>
    %cst_94 = arith.constant 0.353553385 : f32
    %150 = vector.broadcast %cst_94 : f32 to vector<8x64xf32>
    %151 = arith.mulf %149, %150 : vector<8x64xf32>
    %152 = arith.addf %151, %19 : vector<8x64xf32>
    %cst_95 = arith.constant dense<0xFF800000> : vector<8xf32>
    %153 = vector.multi_reduction <maximumf>, %152, %cst_95 [1] : vector<8x64xf32> to vector<8xf32>
    %154 = vector.shape_cast %153 : vector<8xf32> to vector<8x1xf32>
    %155 = vector.broadcast %154 : vector<8x1xf32> to vector<8x64xf32>
    %156 = arith.subf %152, %155 : vector<8x64xf32>
    %157 = math.exp %156 : vector<8x64xf32>
    %158 = arith.truncf %157 : vector<8x64xf32> to vector<8x64xbf16>
    %cst_96 = arith.constant dense<0.000000e+00> : vector<8x64xf32>
    %159 = tpu.matmul %158, %22, %cst_96 {dimension_numbers = #tpu.dot_dimension_numbers<[1], [0], [0], [1], [0, 0, 1, 1], [], []>} : vector<8x64xbf16>, vector<64x64xbf16>, vector<8x64xf32> -> vector<8x64xf32>
    %cst_97 = arith.constant 1.000000e-30 : f32
    %160 = vector.broadcast %cst_97 : f32 to vector<8x64xf32>
    %161 = arith.maximumf %159, %160 : vector<8x64xf32>
    %162 = tpu.reciprocal %161 {approx = true} : vector<8x64xf32> -> vector<8x64xf32>
    %163 = arith.mulf %157, %162 : vector<8x64xf32>
    %164 = arith.truncf %163 : vector<8x64xf32> to vector<8x64xbf16>
    %cst_98 = arith.constant dense<0.000000e+00> : vector<8x32xf32>
    %165 = tpu.matmul %164, %147, %cst_98 {dimension_numbers = #tpu.dot_dimension_numbers<[1], [0], [0], [1], [0, 0, 1, 1], [], []>} : vector<8x64xbf16>, vector<64x32xbf16>, vector<8x32xf32> -> vector<8x32xf32>
    %166 = arith.truncf %163 : vector<8x64xf32> to vector<8x64xbf16>
    %cst_99 = arith.constant dense<0.000000e+00> : vector<8x16xf32>
    %167 = tpu.matmul %166, %23, %cst_99 {dimension_numbers = #tpu.dot_dimension_numbers<[1], [0], [0], [1], [0, 0, 1, 1], [], []>} : vector<8x64xbf16>, vector<64x16xbf16>, vector<8x16xf32> -> vector<8x16xf32>
    %cst_100 = arith.constant 2.500000e-01 : f32
    %168 = vector.broadcast %cst_100 : f32 to vector<8x16xf32>
    %169 = arith.mulf %167, %168 : vector<8x16xf32>
    %170 = arith.truncf %165 : vector<8x32xf32> to vector<8x32xbf16>
    %c0_101 = arith.constant 0 : index
    %c0_102 = arith.constant 0 : index
    %c0_103 = arith.constant 0 : index
    %171 = vector.load %arg30[%c0_101, %c0_102, %c0_103] : memref<2x32x32xbf16, #tpu.memory_space<vmem>>, vector<1x32x32xbf16>
    %172 = vector.shape_cast %171 : vector<1x32x32xbf16> to vector<32x32xbf16>
    %cst_104 = arith.constant dense<0.000000e+00> : vector<8x32xf32>
    %173 = tpu.matmul %170, %172, %cst_104 {dimension_numbers = #tpu.dot_dimension_numbers<[1], [0], [0], [1], [0, 0, 1, 1], [], []>} : vector<8x32xbf16>, vector<32x32xbf16>, vector<8x32xf32> -> vector<8x32xf32>
    %c0_105 = arith.constant 0 : index
    %c0_106 = arith.constant 0 : index
    %c0_107 = arith.constant 0 : index
    %174 = vector.load %arg31[%c0_105, %c0_106, %c0_107] : memref<2x1x32xf32, #tpu.memory_space<vmem>>, vector<1x1x32xf32>
    %175 = vector.shape_cast %174 : vector<1x1x32xf32> to vector<1x32xf32>
    %176 = vector.broadcast %175 : vector<1x32xf32> to vector<8x32xf32>
    %177 = arith.addf %173, %176 : vector<8x32xf32>
    %c0_108 = arith.constant 0 : index
    %c0_109 = arith.constant 0 : index
    %c0_110 = arith.constant 0 : index
    %178 = vector.load %arg32[%c0_108, %c0_109, %c0_110] : memref<2x1x32xf32, #tpu.memory_space<vmem>>, vector<1x1x32xf32>
    %179 = vector.shape_cast %178 : vector<1x1x32xf32> to vector<1x32xf32>
    %c0_111 = arith.constant 0 : index
    %c0_112 = arith.constant 0 : index
    %c0_113 = arith.constant 0 : index
    %180 = vector.load %arg33[%c0_111, %c0_112, %c0_113] : memref<2x1x32xf32, #tpu.memory_space<vmem>>, vector<1x1x32xf32>
    %181 = vector.shape_cast %180 : vector<1x1x32xf32> to vector<1x32xf32>
    %cst_114 = arith.constant dense<0.000000e+00> : vector<8xf32>
    %182 = vector.multi_reduction <add>, %177, %cst_114 [1] : vector<8x32xf32> to vector<8xf32>
    %183 = vector.shape_cast %182 : vector<8xf32> to vector<8x1xf32>
    %cst_115 = arith.constant 3.200000e+01 : f32
    %184 = vector.broadcast %cst_115 : f32 to vector<8x1xf32>
    %185 = arith.divf %183, %184 : vector<8x1xf32>
    %186 = vector.broadcast %185 : vector<8x1xf32> to vector<8x32xf32>
    %187 = arith.subf %177, %186 : vector<8x32xf32>
    %188 = arith.mulf %187, %187 : vector<8x32xf32>
    %cst_116 = arith.constant dense<0.000000e+00> : vector<8xf32>
    %189 = vector.multi_reduction <add>, %188, %cst_116 [1] : vector<8x32xf32> to vector<8xf32>
    %190 = vector.shape_cast %189 : vector<8xf32> to vector<8x1xf32>
    %cst_117 = arith.constant 3.200000e+01 : f32
    %191 = vector.broadcast %cst_117 : f32 to vector<8x1xf32>
    %192 = arith.divf %190, %191 : vector<8x1xf32>
    %193 = vector.broadcast %185 : vector<8x1xf32> to vector<8x32xf32>
    %194 = arith.subf %177, %193 : vector<8x32xf32>
    %cst_118 = arith.constant 9.99999974E-6 : f32
    %195 = vector.broadcast %cst_118 : f32 to vector<8x1xf32>
    %196 = arith.addf %192, %195 : vector<8x1xf32>
    %197 = math.rsqrt %196 : vector<8x1xf32>
    %198 = vector.broadcast %197 : vector<8x1xf32> to vector<8x32xf32>
    %199 = arith.mulf %194, %198 : vector<8x32xf32>
    %200 = vector.broadcast %179 : vector<1x32xf32> to vector<8x32xf32>
    %201 = arith.mulf %199, %200 : vector<8x32xf32>
    %202 = vector.broadcast %181 : vector<1x32xf32> to vector<8x32xf32>
    %203 = arith.addf %201, %202 : vector<8x32xf32>
    %204 = arith.truncf %203 : vector<8x32xf32> to vector<8x32xbf16>
    %c0_119 = arith.constant 0 : index
    %c0_120 = arith.constant 0 : index
    %c0_121 = arith.constant 0 : index
    %205 = vector.load %arg34[%c0_119, %c0_120, %c0_121] : memref<2x32x64xbf16, #tpu.memory_space<vmem>>, vector<1x32x64xbf16>
    %206 = vector.shape_cast %205 : vector<1x32x64xbf16> to vector<32x64xbf16>
    %cst_122 = arith.constant dense<0.000000e+00> : vector<8x64xf32>
    %207 = tpu.matmul %204, %206, %cst_122 {dimension_numbers = #tpu.dot_dimension_numbers<[1], [0], [0], [1], [0, 0, 1, 1], [], []>} : vector<8x32xbf16>, vector<32x64xbf16>, vector<8x64xf32> -> vector<8x64xf32>
    %c0_123 = arith.constant 0 : index
    %c0_124 = arith.constant 0 : index
    %c0_125 = arith.constant 0 : index
    %208 = vector.load %arg35[%c0_123, %c0_124, %c0_125] : memref<2x1x64xf32, #tpu.memory_space<vmem>>, vector<1x1x64xf32>
    %209 = vector.shape_cast %208 : vector<1x1x64xf32> to vector<1x64xf32>
    %210 = vector.broadcast %209 : vector<1x64xf32> to vector<8x64xf32>
    %211 = arith.addf %207, %210 : vector<8x64xf32>
    %cst_126 = arith.constant 0.000000e+00 : f32
    %212 = vector.broadcast %cst_126 : f32 to vector<8x64xf32>
    %213 = arith.maximumf %211, %212 : vector<8x64xf32>
    %214 = arith.truncf %213 : vector<8x64xf32> to vector<8x64xbf16>
    %c0_127 = arith.constant 0 : index
    %c0_128 = arith.constant 0 : index
    %c0_129 = arith.constant 0 : index
    %215 = vector.load %arg36[%c0_127, %c0_128, %c0_129] : memref<2x64x32xbf16, #tpu.memory_space<vmem>>, vector<1x64x32xbf16>
    %216 = vector.shape_cast %215 : vector<1x64x32xbf16> to vector<64x32xbf16>
    %cst_130 = arith.constant dense<0.000000e+00> : vector<8x32xf32>
    %217 = tpu.matmul %214, %216, %cst_130 {dimension_numbers = #tpu.dot_dimension_numbers<[1], [0], [0], [1], [0, 0, 1, 1], [], []>} : vector<8x64xbf16>, vector<64x32xbf16>, vector<8x32xf32> -> vector<8x32xf32>
    %c0_131 = arith.constant 0 : index
    %c0_132 = arith.constant 0 : index
    %c0_133 = arith.constant 0 : index
    %218 = vector.load %arg37[%c0_131, %c0_132, %c0_133] : memref<2x1x32xf32, #tpu.memory_space<vmem>>, vector<1x1x32xf32>
    %219 = vector.shape_cast %218 : vector<1x1x32xf32> to vector<1x32xf32>
    %220 = vector.broadcast %219 : vector<1x32xf32> to vector<8x32xf32>
    %221 = arith.addf %217, %220 : vector<8x32xf32>
    %222 = arith.addf %203, %221 : vector<8x32xf32>
    %c0_134 = arith.constant 0 : index
    %c0_135 = arith.constant 0 : index
    %c0_136 = arith.constant 0 : index
    %223 = vector.load %arg38[%c0_134, %c0_135, %c0_136] : memref<2x1x32xf32, #tpu.memory_space<vmem>>, vector<1x1x32xf32>
    %224 = vector.shape_cast %223 : vector<1x1x32xf32> to vector<1x32xf32>
    %c0_137 = arith.constant 0 : index
    %c0_138 = arith.constant 0 : index
    %c0_139 = arith.constant 0 : index
    %225 = vector.load %arg39[%c0_137, %c0_138, %c0_139] : memref<2x1x32xf32, #tpu.memory_space<vmem>>, vector<1x1x32xf32>
    %226 = vector.shape_cast %225 : vector<1x1x32xf32> to vector<1x32xf32>
    %cst_140 = arith.constant dense<0.000000e+00> : vector<8xf32>
    %227 = vector.multi_reduction <add>, %222, %cst_140 [1] : vector<8x32xf32> to vector<8xf32>
    %228 = vector.shape_cast %227 : vector<8xf32> to vector<8x1xf32>
    %cst_141 = arith.constant 3.200000e+01 : f32
    %229 = vector.broadcast %cst_141 : f32 to vector<8x1xf32>
    %230 = arith.divf %228, %229 : vector<8x1xf32>
    %231 = vector.broadcast %230 : vector<8x1xf32> to vector<8x32xf32>
    %232 = arith.subf %222, %231 : vector<8x32xf32>
    %233 = arith.mulf %232, %232 : vector<8x32xf32>
    %cst_142 = arith.constant dense<0.000000e+00> : vector<8xf32>
    %234 = vector.multi_reduction <add>, %233, %cst_142 [1] : vector<8x32xf32> to vector<8xf32>
    %235 = vector.shape_cast %234 : vector<8xf32> to vector<8x1xf32>
    %cst_143 = arith.constant 3.200000e+01 : f32
    %236 = vector.broadcast %cst_143 : f32 to vector<8x1xf32>
    %237 = arith.divf %235, %236 : vector<8x1xf32>
    %238 = vector.broadcast %230 : vector<8x1xf32> to vector<8x32xf32>
    %239 = arith.subf %222, %238 : vector<8x32xf32>
    %cst_144 = arith.constant 9.99999974E-6 : f32
    %240 = vector.broadcast %cst_144 : f32 to vector<8x1xf32>
    %241 = arith.addf %237, %240 : vector<8x1xf32>
    %242 = math.rsqrt %241 : vector<8x1xf32>
    %243 = vector.broadcast %242 : vector<8x1xf32> to vector<8x32xf32>
    %244 = arith.mulf %239, %243 : vector<8x32xf32>
    %245 = vector.broadcast %224 : vector<1x32xf32> to vector<8x32xf32>
    %246 = arith.mulf %244, %245 : vector<8x32xf32>
    %247 = vector.broadcast %226 : vector<1x32xf32> to vector<8x32xf32>
    %248 = arith.addf %246, %247 : vector<8x32xf32>
    %249 = arith.truncf %248 : vector<8x32xf32> to vector<8x32xbf16>
    %cst_145 = arith.constant dense<0.000000e+00> : vector<2x32xf32>
    %250 = tpu.matmul %24, %249, %cst_145 {dimension_numbers = #tpu.dot_dimension_numbers<[1], [0], [0], [1], [0, 0, 1, 1], [], []>} : vector<2x8xbf16>, vector<8x32xbf16>, vector<2x32xf32> -> vector<2x32xf32>
    %251 = arith.truncf %250 : vector<2x32xf32> to vector<2x32xbf16>
    %c0_146 = arith.constant 0 : index
    %c0_147 = arith.constant 0 : index
    %c0_148 = arith.constant 0 : index
    %252 = vector.load %arg40[%c0_146, %c0_147, %c0_148] : memref<2x32x3xbf16, #tpu.memory_space<vmem>>, vector<1x32x3xbf16>
    %253 = vector.shape_cast %252 : vector<1x32x3xbf16> to vector<32x3xbf16>
    %cst_149 = arith.constant dense<0.000000e+00> : vector<2x3xf32>
    %254 = tpu.matmul %251, %253, %cst_149 {dimension_numbers = #tpu.dot_dimension_numbers<[1], [0], [0], [1], [0, 0, 1, 1], [], []>} : vector<2x32xbf16>, vector<32x3xbf16>, vector<2x3xf32> -> vector<2x3xf32>
    %c0_150 = arith.constant 0 : index
    %c0_151 = arith.constant 0 : index
    %c0_152 = arith.constant 0 : index
    %255 = vector.load %arg41[%c0_150, %c0_151, %c0_152] : memref<2x1x3xf32, #tpu.memory_space<vmem>>, vector<1x1x3xf32>
    %256 = vector.shape_cast %255 : vector<1x1x3xf32> to vector<1x3xf32>
    %257 = vector.broadcast %256 : vector<1x3xf32> to vector<2x3xf32>
    %258 = arith.addf %254, %257 : vector<2x3xf32>
    %259 = arith.addf %25, %258 : vector<2x3xf32>
    %260 = arith.truncf %103 : vector<64x32xf32> to vector<64x32xbf16>
    %cst_153 = arith.constant dense<0.000000e+00> : vector<64x32xf32>
    %261 = tpu.matmul %6, %260, %cst_153 {dimension_numbers = #tpu.dot_dimension_numbers<[1], [0], [0], [1], [0, 0, 1, 1], [], []>} : vector<64x64xbf16>, vector<64x32xbf16>, vector<64x32xf32> -> vector<64x32xf32>
    %c1 = arith.constant 1 : index
    %262 = memref.load %arg13[%c1] : memref<2xf32, #tpu.memory_space<smem>>
    %263 = vector.broadcast %262 : f32 to vector<64x32xf32>
    %264 = arith.mulf %263, %103 : vector<64x32xf32>
    %265 = arith.addf %261, %264 : vector<64x32xf32>
    %266 = arith.truncf %265 : vector<64x32xf32> to vector<64x32xbf16>
    %c1_154 = arith.constant 1 : index
    %c0_155 = arith.constant 0 : index
    %c0_156 = arith.constant 0 : index
    %267 = vector.load %arg16[%c1_154, %c0_155, %c0_156] : memref<2x32x32xbf16, #tpu.memory_space<vmem>>, vector<1x32x32xbf16>
    %268 = vector.shape_cast %267 : vector<1x32x32xbf16> to vector<32x32xbf16>
    %cst_157 = arith.constant dense<0.000000e+00> : vector<64x32xf32>
    %269 = tpu.matmul %266, %268, %cst_157 {dimension_numbers = #tpu.dot_dimension_numbers<[1], [0], [0], [1], [0, 0, 1, 1], [], []>} : vector<64x32xbf16>, vector<32x32xbf16>, vector<64x32xf32> -> vector<64x32xf32>
    %c1_158 = arith.constant 1 : index
    %c0_159 = arith.constant 0 : index
    %c0_160 = arith.constant 0 : index
    %270 = vector.load %arg17[%c1_158, %c0_159, %c0_160] : memref<2x1x32xf32, #tpu.memory_space<vmem>>, vector<1x1x32xf32>
    %271 = vector.shape_cast %270 : vector<1x1x32xf32> to vector<1x32xf32>
    %272 = vector.broadcast %271 : vector<1x32xf32> to vector<64x32xf32>
    %273 = arith.addf %269, %272 : vector<64x32xf32>
    %c1_161 = arith.constant 1 : index
    %c0_162 = arith.constant 0 : index
    %c0_163 = arith.constant 0 : index
    %274 = vector.load %arg18[%c1_161, %c0_162, %c0_163] : memref<2x1x32xf32, #tpu.memory_space<vmem>>, vector<1x1x32xf32>
    %275 = vector.shape_cast %274 : vector<1x1x32xf32> to vector<1x32xf32>
    %c1_164 = arith.constant 1 : index
    %c0_165 = arith.constant 0 : index
    %c0_166 = arith.constant 0 : index
    %276 = vector.load %arg19[%c1_164, %c0_165, %c0_166] : memref<2x1x32xf32, #tpu.memory_space<vmem>>, vector<1x1x32xf32>
    %277 = vector.shape_cast %276 : vector<1x1x32xf32> to vector<1x32xf32>
    %cst_167 = arith.constant dense<0.000000e+00> : vector<64xf32>
    %278 = vector.multi_reduction <add>, %273, %cst_167 [1] : vector<64x32xf32> to vector<64xf32>
    %279 = vector.shape_cast %278 : vector<64xf32> to vector<64x1xf32>
    %cst_168 = arith.constant 3.200000e+01 : f32
    %280 = vector.broadcast %cst_168 : f32 to vector<64x1xf32>
    %281 = arith.divf %279, %280 : vector<64x1xf32>
    %282 = vector.broadcast %281 : vector<64x1xf32> to vector<64x32xf32>
    %283 = arith.subf %273, %282 : vector<64x32xf32>
    %284 = arith.mulf %283, %283 : vector<64x32xf32>
    %cst_169 = arith.constant dense<0.000000e+00> : vector<64xf32>
    %285 = vector.multi_reduction <add>, %284, %cst_169 [1] : vector<64x32xf32> to vector<64xf32>
    %286 = vector.shape_cast %285 : vector<64xf32> to vector<64x1xf32>
    %cst_170 = arith.constant 3.200000e+01 : f32
    %287 = vector.broadcast %cst_170 : f32 to vector<64x1xf32>
    %288 = arith.divf %286, %287 : vector<64x1xf32>
    %289 = vector.broadcast %281 : vector<64x1xf32> to vector<64x32xf32>
    %290 = arith.subf %273, %289 : vector<64x32xf32>
    %cst_171 = arith.constant 9.99999974E-6 : f32
    %291 = vector.broadcast %cst_171 : f32 to vector<64x1xf32>
    %292 = arith.addf %288, %291 : vector<64x1xf32>
    %293 = math.rsqrt %292 : vector<64x1xf32>
    %294 = vector.broadcast %293 : vector<64x1xf32> to vector<64x32xf32>
    %295 = arith.mulf %290, %294 : vector<64x32xf32>
    %296 = vector.broadcast %275 : vector<1x32xf32> to vector<64x32xf32>
    %297 = arith.mulf %295, %296 : vector<64x32xf32>
    %298 = vector.broadcast %277 : vector<1x32xf32> to vector<64x32xf32>
    %299 = arith.addf %297, %298 : vector<64x32xf32>
    %cst_172 = arith.constant 0.000000e+00 : f32
    %300 = vector.broadcast %cst_172 : f32 to vector<64x32xf32>
    %301 = arith.maximumf %299, %300 : vector<64x32xf32>
    %302 = arith.truncf %301 : vector<64x32xf32> to vector<64x32xbf16>
    %c1_173 = arith.constant 1 : index
    %c0_174 = arith.constant 0 : index
    %c0_175 = arith.constant 0 : index
    %303 = vector.load %arg20[%c1_173, %c0_174, %c0_175] : memref<2x32x32xbf16, #tpu.memory_space<vmem>>, vector<1x32x32xbf16>
    %304 = vector.shape_cast %303 : vector<1x32x32xbf16> to vector<32x32xbf16>
    %cst_176 = arith.constant dense<0.000000e+00> : vector<64x32xf32>
    %305 = tpu.matmul %302, %304, %cst_176 {dimension_numbers = #tpu.dot_dimension_numbers<[1], [0], [0], [1], [0, 0, 1, 1], [], []>} : vector<64x32xbf16>, vector<32x32xbf16>, vector<64x32xf32> -> vector<64x32xf32>
    %c1_177 = arith.constant 1 : index
    %c0_178 = arith.constant 0 : index
    %c0_179 = arith.constant 0 : index
    %306 = vector.load %arg21[%c1_177, %c0_178, %c0_179] : memref<2x1x32xf32, #tpu.memory_space<vmem>>, vector<1x1x32xf32>
    %307 = vector.shape_cast %306 : vector<1x1x32xf32> to vector<1x32xf32>
    %308 = vector.broadcast %307 : vector<1x32xf32> to vector<64x32xf32>
    %309 = arith.addf %305, %308 : vector<64x32xf32>
    %c1_180 = arith.constant 1 : index
    %c0_181 = arith.constant 0 : index
    %c0_182 = arith.constant 0 : index
    %310 = vector.load %arg22[%c1_180, %c0_181, %c0_182] : memref<2x1x32xf32, #tpu.memory_space<vmem>>, vector<1x1x32xf32>
    %311 = vector.shape_cast %310 : vector<1x1x32xf32> to vector<1x32xf32>
    %c1_183 = arith.constant 1 : index
    %c0_184 = arith.constant 0 : index
    %c0_185 = arith.constant 0 : index
    %312 = vector.load %arg23[%c1_183, %c0_184, %c0_185] : memref<2x1x32xf32, #tpu.memory_space<vmem>>, vector<1x1x32xf32>
    %313 = vector.shape_cast %312 : vector<1x1x32xf32> to vector<1x32xf32>
    %cst_186 = arith.constant dense<0.000000e+00> : vector<64xf32>
    %314 = vector.multi_reduction <add>, %309, %cst_186 [1] : vector<64x32xf32> to vector<64xf32>
    %315 = vector.shape_cast %314 : vector<64xf32> to vector<64x1xf32>
    %cst_187 = arith.constant 3.200000e+01 : f32
    %316 = vector.broadcast %cst_187 : f32 to vector<64x1xf32>
    %317 = arith.divf %315, %316 : vector<64x1xf32>
    %318 = vector.broadcast %317 : vector<64x1xf32> to vector<64x32xf32>
    %319 = arith.subf %309, %318 : vector<64x32xf32>
    %320 = arith.mulf %319, %319 : vector<64x32xf32>
    %cst_188 = arith.constant dense<0.000000e+00> : vector<64xf32>
    %321 = vector.multi_reduction <add>, %320, %cst_188 [1] : vector<64x32xf32> to vector<64xf32>
    %322 = vector.shape_cast %321 : vector<64xf32> to vector<64x1xf32>
    %cst_189 = arith.constant 3.200000e+01 : f32
    %323 = vector.broadcast %cst_189 : f32 to vector<64x1xf32>
    %324 = arith.divf %322, %323 : vector<64x1xf32>
    %325 = vector.broadcast %317 : vector<64x1xf32> to vector<64x32xf32>
    %326 = arith.subf %309, %325 : vector<64x32xf32>
    %cst_190 = arith.constant 9.99999974E-6 : f32
    %327 = vector.broadcast %cst_190 : f32 to vector<64x1xf32>
    %328 = arith.addf %324, %327 : vector<64x1xf32>
    %329 = math.rsqrt %328 : vector<64x1xf32>
    %330 = vector.broadcast %329 : vector<64x1xf32> to vector<64x32xf32>
    %331 = arith.mulf %326, %330 : vector<64x32xf32>
    %332 = vector.broadcast %311 : vector<1x32xf32> to vector<64x32xf32>
    %333 = arith.mulf %331, %332 : vector<64x32xf32>
    %334 = vector.broadcast %313 : vector<1x32xf32> to vector<64x32xf32>
    %335 = arith.addf %333, %334 : vector<64x32xf32>
    %cst_191 = arith.constant 0.000000e+00 : f32
    %336 = vector.broadcast %cst_191 : f32 to vector<64x32xf32>
    %337 = arith.maximumf %335, %336 : vector<64x32xf32>
    %338 = arith.truncf %337 : vector<64x32xf32> to vector<64x32xbf16>
    %cst_192 = arith.constant dense<0.000000e+00> : vector<8x64xf32>
    %339 = tpu.matmul %15, %338, %cst_192 {dimension_numbers = #tpu.dot_dimension_numbers<[1], [1], [0], [0], [0, 0, 1, 0], [], []>} : vector<8x32xbf16>, vector<64x32xbf16>, vector<8x64xf32> -> vector<8x64xf32>
    %340 = arith.addf %339, %20 : vector<8x64xf32>
    %cst_193 = arith.constant dense<0xFF800000> : vector<8xf32>
    %341 = vector.multi_reduction <maximumf>, %340, %cst_193 [1] : vector<8x64xf32> to vector<8xf32>
    %342 = vector.shape_cast %341 : vector<8xf32> to vector<8x1xf32>
    %343 = vector.broadcast %342 : vector<8x1xf32> to vector<8x64xf32>
    %344 = arith.subf %340, %343 : vector<8x64xf32>
    %345 = math.exp %344 : vector<8x64xf32>
    %cst_194 = arith.constant dense<0.000000e+00> : vector<8xf32>
    %346 = vector.multi_reduction <add>, %345, %cst_194 [1] : vector<8x64xf32> to vector<8xf32>
    %347 = vector.shape_cast %346 : vector<8xf32> to vector<8x1xf32>
    %348 = tpu.reciprocal %347 {approx = true} : vector<8x1xf32> -> vector<8x1xf32>
    %349 = vector.broadcast %348 : vector<8x1xf32> to vector<8x64xf32>
    %350 = arith.mulf %345, %349 : vector<8x64xf32>
    %351 = arith.addf %350, %21 : vector<8x64xf32>
    %352 = arith.truncf %351 : vector<8x64xf32> to vector<8x64xbf16>
    %cst_195 = arith.constant dense<0.000000e+00> : vector<8x32xf32>
    %353 = tpu.matmul %352, %338, %cst_195 {dimension_numbers = #tpu.dot_dimension_numbers<[1], [0], [0], [1], [0, 0, 1, 1], [], []>} : vector<8x64xbf16>, vector<64x32xbf16>, vector<8x32xf32> -> vector<8x32xf32>
    %354 = arith.truncf %353 : vector<8x32xf32> to vector<8x32xbf16>
    %c1_196 = arith.constant 1 : index
    %c0_197 = arith.constant 0 : index
    %c0_198 = arith.constant 0 : index
    %355 = vector.load %arg24[%c1_196, %c0_197, %c0_198] : memref<2x32x32xbf16, #tpu.memory_space<vmem>>, vector<1x32x32xbf16>
    %356 = vector.shape_cast %355 : vector<1x32x32xbf16> to vector<32x32xbf16>
    %cst_199 = arith.constant dense<0.000000e+00> : vector<8x32xf32>
    %357 = tpu.matmul %354, %356, %cst_199 {dimension_numbers = #tpu.dot_dimension_numbers<[1], [0], [0], [1], [0, 0, 1, 1], [], []>} : vector<8x32xbf16>, vector<32x32xbf16>, vector<8x32xf32> -> vector<8x32xf32>
    %c1_200 = arith.constant 1 : index
    %c0_201 = arith.constant 0 : index
    %c0_202 = arith.constant 0 : index
    %358 = vector.load %arg25[%c1_200, %c0_201, %c0_202] : memref<2x1x32xf32, #tpu.memory_space<vmem>>, vector<1x1x32xf32>
    %359 = vector.shape_cast %358 : vector<1x1x32xf32> to vector<1x32xf32>
    %360 = vector.broadcast %359 : vector<1x32xf32> to vector<8x32xf32>
    %361 = arith.addf %357, %360 : vector<8x32xf32>
    %c1_203 = arith.constant 1 : index
    %c0_204 = arith.constant 0 : index
    %c0_205 = arith.constant 0 : index
    %362 = vector.load %arg26[%c1_203, %c0_204, %c0_205] : memref<2x32x32xbf16, #tpu.memory_space<vmem>>, vector<1x32x32xbf16>
    %363 = vector.shape_cast %362 : vector<1x32x32xbf16> to vector<32x32xbf16>
    %cst_206 = arith.constant dense<0.000000e+00> : vector<16x32xf32>
    %364 = tpu.matmul %17, %363, %cst_206 {dimension_numbers = #tpu.dot_dimension_numbers<[1], [0], [0], [1], [0, 0, 1, 1], [], []>} : vector<16x32xbf16>, vector<32x32xbf16>, vector<16x32xf32> -> vector<16x32xf32>
    %c1_207 = arith.constant 1 : index
    %c0_208 = arith.constant 0 : index
    %c0_209 = arith.constant 0 : index
    %365 = vector.load %arg27[%c1_207, %c0_208, %c0_209] : memref<2x1x32xf32, #tpu.memory_space<vmem>>, vector<1x1x32xf32>
    %366 = vector.shape_cast %365 : vector<1x1x32xf32> to vector<1x32xf32>
    %367 = vector.broadcast %366 : vector<1x32xf32> to vector<16x32xf32>
    %368 = arith.addf %364, %367 : vector<16x32xf32>
    %c1_210 = arith.constant 1 : index
    %c0_211 = arith.constant 0 : index
    %c0_212 = arith.constant 0 : index
    %369 = vector.load %arg28[%c1_210, %c0_211, %c0_212] : memref<2x32x32xbf16, #tpu.memory_space<vmem>>, vector<1x32x32xbf16>
    %370 = vector.shape_cast %369 : vector<1x32x32xbf16> to vector<32x32xbf16>
    %cst_213 = arith.constant dense<0.000000e+00> : vector<16x32xf32>
    %371 = tpu.matmul %17, %370, %cst_213 {dimension_numbers = #tpu.dot_dimension_numbers<[1], [0], [0], [1], [0, 0, 1, 1], [], []>} : vector<16x32xbf16>, vector<32x32xbf16>, vector<16x32xf32> -> vector<16x32xf32>
    %c1_214 = arith.constant 1 : index
    %c0_215 = arith.constant 0 : index
    %c0_216 = arith.constant 0 : index
    %372 = vector.load %arg29[%c1_214, %c0_215, %c0_216] : memref<2x1x32xf32, #tpu.memory_space<vmem>>, vector<1x1x32xf32>
    %373 = vector.shape_cast %372 : vector<1x1x32xf32> to vector<1x32xf32>
    %374 = vector.broadcast %373 : vector<1x32xf32> to vector<16x32xf32>
    %375 = arith.addf %371, %374 : vector<16x32xf32>
    %376 = tpu.concatenate %368, %368, %368, %368 in 0 : vector<16x32xf32>, vector<16x32xf32>, vector<16x32xf32>, vector<16x32xf32> -> vector<64x32xf32>
    %377 = arith.mulf %376, %18 : vector<64x32xf32>
    %378 = arith.truncf %377 : vector<64x32xf32> to vector<64x32xbf16>
    %379 = tpu.concatenate %375, %375, %375, %375 in 0 : vector<16x32xf32>, vector<16x32xf32>, vector<16x32xf32>, vector<16x32xf32> -> vector<64x32xf32>
    %380 = arith.mulf %379, %18 : vector<64x32xf32>
    %381 = arith.truncf %380 : vector<64x32xf32> to vector<64x32xbf16>
    %382 = arith.truncf %361 : vector<8x32xf32> to vector<8x32xbf16>
    %cst_217 = arith.constant dense<0.000000e+00> : vector<8x64xf32>
    %383 = tpu.matmul %382, %378, %cst_217 {dimension_numbers = #tpu.dot_dimension_numbers<[1], [1], [0], [0], [0, 0, 1, 0], [], []>} : vector<8x32xbf16>, vector<64x32xbf16>, vector<8x64xf32> -> vector<8x64xf32>
    %cst_218 = arith.constant 0.353553385 : f32
    %384 = vector.broadcast %cst_218 : f32 to vector<8x64xf32>
    %385 = arith.mulf %383, %384 : vector<8x64xf32>
    %386 = arith.addf %385, %19 : vector<8x64xf32>
    %cst_219 = arith.constant dense<0xFF800000> : vector<8xf32>
    %387 = vector.multi_reduction <maximumf>, %386, %cst_219 [1] : vector<8x64xf32> to vector<8xf32>
    %388 = vector.shape_cast %387 : vector<8xf32> to vector<8x1xf32>
    %389 = vector.broadcast %388 : vector<8x1xf32> to vector<8x64xf32>
    %390 = arith.subf %386, %389 : vector<8x64xf32>
    %391 = math.exp %390 : vector<8x64xf32>
    %392 = arith.truncf %391 : vector<8x64xf32> to vector<8x64xbf16>
    %cst_220 = arith.constant dense<0.000000e+00> : vector<8x64xf32>
    %393 = tpu.matmul %392, %22, %cst_220 {dimension_numbers = #tpu.dot_dimension_numbers<[1], [0], [0], [1], [0, 0, 1, 1], [], []>} : vector<8x64xbf16>, vector<64x64xbf16>, vector<8x64xf32> -> vector<8x64xf32>
    %cst_221 = arith.constant 1.000000e-30 : f32
    %394 = vector.broadcast %cst_221 : f32 to vector<8x64xf32>
    %395 = arith.maximumf %393, %394 : vector<8x64xf32>
    %396 = tpu.reciprocal %395 {approx = true} : vector<8x64xf32> -> vector<8x64xf32>
    %397 = arith.mulf %391, %396 : vector<8x64xf32>
    %398 = arith.truncf %397 : vector<8x64xf32> to vector<8x64xbf16>
    %cst_222 = arith.constant dense<0.000000e+00> : vector<8x32xf32>
    %399 = tpu.matmul %398, %381, %cst_222 {dimension_numbers = #tpu.dot_dimension_numbers<[1], [0], [0], [1], [0, 0, 1, 1], [], []>} : vector<8x64xbf16>, vector<64x32xbf16>, vector<8x32xf32> -> vector<8x32xf32>
    %400 = arith.truncf %397 : vector<8x64xf32> to vector<8x64xbf16>
    %cst_223 = arith.constant dense<0.000000e+00> : vector<8x16xf32>
    %401 = tpu.matmul %400, %23, %cst_223 {dimension_numbers = #tpu.dot_dimension_numbers<[1], [0], [0], [1], [0, 0, 1, 1], [], []>} : vector<8x64xbf16>, vector<64x16xbf16>, vector<8x16xf32> -> vector<8x16xf32>
    %cst_224 = arith.constant 2.500000e-01 : f32
    %402 = vector.broadcast %cst_224 : f32 to vector<8x16xf32>
    %403 = arith.mulf %401, %402 : vector<8x16xf32>
    %404 = arith.truncf %399 : vector<8x32xf32> to vector<8x32xbf16>
    %c1_225 = arith.constant 1 : index
    %c0_226 = arith.constant 0 : index
    %c0_227 = arith.constant 0 : index
    %405 = vector.load %arg30[%c1_225, %c0_226, %c0_227] : memref<2x32x32xbf16, #tpu.memory_space<vmem>>, vector<1x32x32xbf16>
    %406 = vector.shape_cast %405 : vector<1x32x32xbf16> to vector<32x32xbf16>
    %cst_228 = arith.constant dense<0.000000e+00> : vector<8x32xf32>
    %407 = tpu.matmul %404, %406, %cst_228 {dimension_numbers = #tpu.dot_dimension_numbers<[1], [0], [0], [1], [0, 0, 1, 1], [], []>} : vector<8x32xbf16>, vector<32x32xbf16>, vector<8x32xf32> -> vector<8x32xf32>
    %c1_229 = arith.constant 1 : index
    %c0_230 = arith.constant 0 : index
    %c0_231 = arith.constant 0 : index
    %408 = vector.load %arg31[%c1_229, %c0_230, %c0_231] : memref<2x1x32xf32, #tpu.memory_space<vmem>>, vector<1x1x32xf32>
    %409 = vector.shape_cast %408 : vector<1x1x32xf32> to vector<1x32xf32>
    %410 = vector.broadcast %409 : vector<1x32xf32> to vector<8x32xf32>
    %411 = arith.addf %407, %410 : vector<8x32xf32>
    %c1_232 = arith.constant 1 : index
    %c0_233 = arith.constant 0 : index
    %c0_234 = arith.constant 0 : index
    %412 = vector.load %arg32[%c1_232, %c0_233, %c0_234] : memref<2x1x32xf32, #tpu.memory_space<vmem>>, vector<1x1x32xf32>
    %413 = vector.shape_cast %412 : vector<1x1x32xf32> to vector<1x32xf32>
    %c1_235 = arith.constant 1 : index
    %c0_236 = arith.constant 0 : index
    %c0_237 = arith.constant 0 : index
    %414 = vector.load %arg33[%c1_235, %c0_236, %c0_237] : memref<2x1x32xf32, #tpu.memory_space<vmem>>, vector<1x1x32xf32>
    %415 = vector.shape_cast %414 : vector<1x1x32xf32> to vector<1x32xf32>
    %cst_238 = arith.constant dense<0.000000e+00> : vector<8xf32>
    %416 = vector.multi_reduction <add>, %411, %cst_238 [1] : vector<8x32xf32> to vector<8xf32>
    %417 = vector.shape_cast %416 : vector<8xf32> to vector<8x1xf32>
    %cst_239 = arith.constant 3.200000e+01 : f32
    %418 = vector.broadcast %cst_239 : f32 to vector<8x1xf32>
    %419 = arith.divf %417, %418 : vector<8x1xf32>
    %420 = vector.broadcast %419 : vector<8x1xf32> to vector<8x32xf32>
    %421 = arith.subf %411, %420 : vector<8x32xf32>
    %422 = arith.mulf %421, %421 : vector<8x32xf32>
    %cst_240 = arith.constant dense<0.000000e+00> : vector<8xf32>
    %423 = vector.multi_reduction <add>, %422, %cst_240 [1] : vector<8x32xf32> to vector<8xf32>
    %424 = vector.shape_cast %423 : vector<8xf32> to vector<8x1xf32>
    %cst_241 = arith.constant 3.200000e+01 : f32
    %425 = vector.broadcast %cst_241 : f32 to vector<8x1xf32>
    %426 = arith.divf %424, %425 : vector<8x1xf32>
    %427 = vector.broadcast %419 : vector<8x1xf32> to vector<8x32xf32>
    %428 = arith.subf %411, %427 : vector<8x32xf32>
    %cst_242 = arith.constant 9.99999974E-6 : f32
    %429 = vector.broadcast %cst_242 : f32 to vector<8x1xf32>
    %430 = arith.addf %426, %429 : vector<8x1xf32>
    %431 = math.rsqrt %430 : vector<8x1xf32>
    %432 = vector.broadcast %431 : vector<8x1xf32> to vector<8x32xf32>
    %433 = arith.mulf %428, %432 : vector<8x32xf32>
    %434 = vector.broadcast %413 : vector<1x32xf32> to vector<8x32xf32>
    %435 = arith.mulf %433, %434 : vector<8x32xf32>
    %436 = vector.broadcast %415 : vector<1x32xf32> to vector<8x32xf32>
    %437 = arith.addf %435, %436 : vector<8x32xf32>
    %438 = arith.truncf %437 : vector<8x32xf32> to vector<8x32xbf16>
    %c1_243 = arith.constant 1 : index
    %c0_244 = arith.constant 0 : index
    %c0_245 = arith.constant 0 : index
    %439 = vector.load %arg34[%c1_243, %c0_244, %c0_245] : memref<2x32x64xbf16, #tpu.memory_space<vmem>>, vector<1x32x64xbf16>
    %440 = vector.shape_cast %439 : vector<1x32x64xbf16> to vector<32x64xbf16>
    %cst_246 = arith.constant dense<0.000000e+00> : vector<8x64xf32>
    %441 = tpu.matmul %438, %440, %cst_246 {dimension_numbers = #tpu.dot_dimension_numbers<[1], [0], [0], [1], [0, 0, 1, 1], [], []>} : vector<8x32xbf16>, vector<32x64xbf16>, vector<8x64xf32> -> vector<8x64xf32>
    %c1_247 = arith.constant 1 : index
    %c0_248 = arith.constant 0 : index
    %c0_249 = arith.constant 0 : index
    %442 = vector.load %arg35[%c1_247, %c0_248, %c0_249] : memref<2x1x64xf32, #tpu.memory_space<vmem>>, vector<1x1x64xf32>
    %443 = vector.shape_cast %442 : vector<1x1x64xf32> to vector<1x64xf32>
    %444 = vector.broadcast %443 : vector<1x64xf32> to vector<8x64xf32>
    %445 = arith.addf %441, %444 : vector<8x64xf32>
    %cst_250 = arith.constant 0.000000e+00 : f32
    %446 = vector.broadcast %cst_250 : f32 to vector<8x64xf32>
    %447 = arith.maximumf %445, %446 : vector<8x64xf32>
    %448 = arith.truncf %447 : vector<8x64xf32> to vector<8x64xbf16>
    %c1_251 = arith.constant 1 : index
    %c0_252 = arith.constant 0 : index
    %c0_253 = arith.constant 0 : index
    %449 = vector.load %arg36[%c1_251, %c0_252, %c0_253] : memref<2x64x32xbf16, #tpu.memory_space<vmem>>, vector<1x64x32xbf16>
    %450 = vector.shape_cast %449 : vector<1x64x32xbf16> to vector<64x32xbf16>
    %cst_254 = arith.constant dense<0.000000e+00> : vector<8x32xf32>
    %451 = tpu.matmul %448, %450, %cst_254 {dimension_numbers = #tpu.dot_dimension_numbers<[1], [0], [0], [1], [0, 0, 1, 1], [], []>} : vector<8x64xbf16>, vector<64x32xbf16>, vector<8x32xf32> -> vector<8x32xf32>
    %c1_255 = arith.constant 1 : index
    %c0_256 = arith.constant 0 : index
    %c0_257 = arith.constant 0 : index
    %452 = vector.load %arg37[%c1_255, %c0_256, %c0_257] : memref<2x1x32xf32, #tpu.memory_space<vmem>>, vector<1x1x32xf32>
    %453 = vector.shape_cast %452 : vector<1x1x32xf32> to vector<1x32xf32>
    %454 = vector.broadcast %453 : vector<1x32xf32> to vector<8x32xf32>
    %455 = arith.addf %451, %454 : vector<8x32xf32>
    %456 = arith.addf %437, %455 : vector<8x32xf32>
    %c1_258 = arith.constant 1 : index
    %c0_259 = arith.constant 0 : index
    %c0_260 = arith.constant 0 : index
    %457 = vector.load %arg38[%c1_258, %c0_259, %c0_260] : memref<2x1x32xf32, #tpu.memory_space<vmem>>, vector<1x1x32xf32>
    %458 = vector.shape_cast %457 : vector<1x1x32xf32> to vector<1x32xf32>
    %c1_261 = arith.constant 1 : index
    %c0_262 = arith.constant 0 : index
    %c0_263 = arith.constant 0 : index
    %459 = vector.load %arg39[%c1_261, %c0_262, %c0_263] : memref<2x1x32xf32, #tpu.memory_space<vmem>>, vector<1x1x32xf32>
    %460 = vector.shape_cast %459 : vector<1x1x32xf32> to vector<1x32xf32>
    %cst_264 = arith.constant dense<0.000000e+00> : vector<8xf32>
    %461 = vector.multi_reduction <add>, %456, %cst_264 [1] : vector<8x32xf32> to vector<8xf32>
    %462 = vector.shape_cast %461 : vector<8xf32> to vector<8x1xf32>
    %cst_265 = arith.constant 3.200000e+01 : f32
    %463 = vector.broadcast %cst_265 : f32 to vector<8x1xf32>
    %464 = arith.divf %462, %463 : vector<8x1xf32>
    %465 = vector.broadcast %464 : vector<8x1xf32> to vector<8x32xf32>
    %466 = arith.subf %456, %465 : vector<8x32xf32>
    %467 = arith.mulf %466, %466 : vector<8x32xf32>
    %cst_266 = arith.constant dense<0.000000e+00> : vector<8xf32>
    %468 = vector.multi_reduction <add>, %467, %cst_266 [1] : vector<8x32xf32> to vector<8xf32>
    %469 = vector.shape_cast %468 : vector<8xf32> to vector<8x1xf32>
    %cst_267 = arith.constant 3.200000e+01 : f32
    %470 = vector.broadcast %cst_267 : f32 to vector<8x1xf32>
    %471 = arith.divf %469, %470 : vector<8x1xf32>
    %472 = vector.broadcast %464 : vector<8x1xf32> to vector<8x32xf32>
    %473 = arith.subf %456, %472 : vector<8x32xf32>
    %cst_268 = arith.constant 9.99999974E-6 : f32
    %474 = vector.broadcast %cst_268 : f32 to vector<8x1xf32>
    %475 = arith.addf %471, %474 : vector<8x1xf32>
    %476 = math.rsqrt %475 : vector<8x1xf32>
    %477 = vector.broadcast %476 : vector<8x1xf32> to vector<8x32xf32>
    %478 = arith.mulf %473, %477 : vector<8x32xf32>
    %479 = vector.broadcast %458 : vector<1x32xf32> to vector<8x32xf32>
    %480 = arith.mulf %478, %479 : vector<8x32xf32>
    %481 = vector.broadcast %460 : vector<1x32xf32> to vector<8x32xf32>
    %482 = arith.addf %480, %481 : vector<8x32xf32>
    %483 = arith.truncf %482 : vector<8x32xf32> to vector<8x32xbf16>
    %cst_269 = arith.constant dense<0.000000e+00> : vector<2x32xf32>
    %484 = tpu.matmul %24, %483, %cst_269 {dimension_numbers = #tpu.dot_dimension_numbers<[1], [0], [0], [1], [0, 0, 1, 1], [], []>} : vector<2x8xbf16>, vector<8x32xbf16>, vector<2x32xf32> -> vector<2x32xf32>
    %485 = arith.truncf %484 : vector<2x32xf32> to vector<2x32xbf16>
    %c1_270 = arith.constant 1 : index
    %c0_271 = arith.constant 0 : index
    %c0_272 = arith.constant 0 : index
    %486 = vector.load %arg40[%c1_270, %c0_271, %c0_272] : memref<2x32x3xbf16, #tpu.memory_space<vmem>>, vector<1x32x3xbf16>
    %487 = vector.shape_cast %486 : vector<1x32x3xbf16> to vector<32x3xbf16>
    %cst_273 = arith.constant dense<0.000000e+00> : vector<2x3xf32>
    %488 = tpu.matmul %485, %487, %cst_273 {dimension_numbers = #tpu.dot_dimension_numbers<[1], [0], [0], [1], [0, 0, 1, 1], [], []>} : vector<2x32xbf16>, vector<32x3xbf16>, vector<2x3xf32> -> vector<2x3xf32>
    %c1_274 = arith.constant 1 : index
    %c0_275 = arith.constant 0 : index
    %c0_276 = arith.constant 0 : index
    %489 = vector.load %arg41[%c1_274, %c0_275, %c0_276] : memref<2x1x3xf32, #tpu.memory_space<vmem>>, vector<1x1x3xf32>
    %490 = vector.shape_cast %489 : vector<1x1x3xf32> to vector<1x3xf32>
    %491 = vector.broadcast %490 : vector<1x3xf32> to vector<2x3xf32>
    %492 = arith.addf %488, %491 : vector<2x3xf32>
    %493 = arith.addf %259, %492 : vector<2x3xf32>
    %c0_277 = arith.constant 0 : index
    %c0_278 = arith.constant 0 : index
    %494 = vector.load %arg42[%c0_277, %c0_278] : memref<2x3xf32, #tpu.memory_space<vmem>>, vector<2x3xf32>
    tpu.vector_store %arg42[%c0_277, %c0_278], %493 {strides = array<i32>} : memref<2x3xf32, #tpu.memory_space<vmem>>, vector<2x3xf32>,
    %495 = tpu.concatenate %169, %403 in 1 : vector<8x16xf32>, vector<8x16xf32> -> vector<8x32xf32>
    %c0_279 = arith.constant 0 : index
    %c0_280 = arith.constant 0 : index
    %496 = vector.load %arg43[%c0_279, %c0_280] : memref<8x32xf32, #tpu.memory_space<vmem>>, vector<8x32xf32>
    tpu.vector_store %arg43[%c0_279, %c0_280], %495 {strides = array<i32>} : memref<8x32xf32, #tpu.memory_space<vmem>>, vector<8x32xf32>,
    return
  }
  func.func @transform_0(%arg0: i32) -> (i32, i32) {
    %c0_i32 = arith.constant 0 : i32
    %c0_i32_0 = arith.constant 0 : i32
    %c0_i32_1 = arith.constant 0 : i32
    return %c0_i32, %c0_i32_0 : i32, i32
  }
  func.func @transform_1(%arg0: i32) -> (i32, i32) {
    %c0_i32 = arith.constant 0 : i32
    %c0_i32_0 = arith.constant 0 : i32
    %c0_i32_1 = arith.constant 0 : i32
    return %c0_i32, %c0_i32_0 : i32, i32
  }
  func.func @transform_2(%arg0: i32) -> (i32, i32) {
    %c0_i32 = arith.constant 0 : i32
    %c0_i32_0 = arith.constant 0 : i32
    %c0_i32_1 = arith.constant 0 : i32
    return %c0_i32, %c0_i32_0 : i32, i32
  }
  func.func @transform_3(%arg0: i32) -> (i32, i32) {
    %c0_i32 = arith.constant 0 : i32
    %c0_i32_0 = arith.constant 0 : i32
    %c0_i32_1 = arith.constant 0 : i32
    return %c0_i32, %c0_i32_0 : i32, i32
  }
  func.func @transform_4(%arg0: i32) -> (i32, i32) {
    %c0_i32 = arith.constant 0 : i32
    %c0_i32_0 = arith.constant 0 : i32
    %c0_i32_1 = arith.constant 0 : i32
    return %c0_i32, %c0_i32_0 : i32, i32
  }
  func.func @transform_5(%arg0: i32) -> (i32, i32) {
    %c0_i32 = arith.constant 0 : i32
    %c0_i32_0 = arith.constant 0 : i32
    %c0_i32_1 = arith.constant 0 : i32
    return %c0_i32, %c0_i32_0 : i32, i32
  }
  func.func @transform_6(%arg0: i32) -> (i32, i32) {
    %c0_i32 = arith.constant 0 : i32
    %c0_i32_0 = arith.constant 0 : i32
    %c0_i32_1 = arith.constant 0 : i32
    return %c0_i32, %c0_i32_0 : i32, i32
  }
  func.func @transform_7(%arg0: i32) -> (i32, i32) {
    %c0_i32 = arith.constant 0 : i32
    %c0_i32_0 = arith.constant 0 : i32
    %c0_i32_1 = arith.constant 0 : i32
    return %c0_i32, %c0_i32_0 : i32, i32
  }
  func.func @transform_8(%arg0: i32) -> (i32, i32) {
    %c0_i32 = arith.constant 0 : i32
    %c0_i32_0 = arith.constant 0 : i32
    %c0_i32_1 = arith.constant 0 : i32
    return %c0_i32, %c0_i32_0 : i32, i32
  }
  func.func @transform_9(%arg0: i32) -> (i32, i32) {
    %c0_i32 = arith.constant 0 : i32
    %c0_i32_0 = arith.constant 0 : i32
    %c0_i32_1 = arith.constant 0 : i32
    return %c0_i32, %c0_i32_0 : i32, i32
  }
  func.func @transform_10(%arg0: i32) -> (i32, i32) {
    %c0_i32 = arith.constant 0 : i32
    %c0_i32_0 = arith.constant 0 : i32
    %c0_i32_1 = arith.constant 0 : i32
    return %c0_i32, %c0_i32_0 : i32, i32
  }
  func.func @transform_11(%arg0: i32) -> (i32, i32) {
    %c0_i32 = arith.constant 0 : i32
    %c0_i32_0 = arith.constant 0 : i32
    %c0_i32_1 = arith.constant 0 : i32
    return %c0_i32, %c0_i32_0 : i32, i32
  }
  func.func @transform_12(%arg0: i32) -> i32 {
    %c0_i32 = arith.constant 0 : i32
    %c0_i32_0 = arith.constant 0 : i32
    return %c0_i32 : i32
  }
  func.func @transform_13(%arg0: i32) -> (i32, i32) {
    %c0_i32 = arith.constant 0 : i32
    %c0_i32_0 = arith.constant 0 : i32
    %c0_i32_1 = arith.constant 0 : i32
    return %c0_i32, %c0_i32_0 : i32, i32
  }
  func.func @transform_14(%arg0: i32) -> (i32, i32) {
    %c0_i32 = arith.constant 0 : i32
    %c0_i32_0 = arith.constant 0 : i32
    %c0_i32_1 = arith.constant 0 : i32
    return %c0_i32, %c0_i32_0 : i32, i32
  }
  func.func @transform_15(%arg0: i32) -> (i32, i32, i32) {
    %c0_i32 = arith.constant 0 : i32
    %c0_i32_0 = arith.constant 0 : i32
    %c0_i32_1 = arith.constant 0 : i32
    %c0_i32_2 = arith.constant 0 : i32
    return %c0_i32, %c0_i32_0, %c0_i32_1 : i32, i32, i32
  }
  func.func @transform_16(%arg0: i32) -> (i32, i32, i32) {
    %c0_i32 = arith.constant 0 : i32
    %c0_i32_0 = arith.constant 0 : i32
    %c0_i32_1 = arith.constant 0 : i32
    %c0_i32_2 = arith.constant 0 : i32
    return %c0_i32, %c0_i32_0, %c0_i32_1 : i32, i32, i32
  }
  func.func @transform_17(%arg0: i32) -> (i32, i32, i32) {
    %c0_i32 = arith.constant 0 : i32
    %c0_i32_0 = arith.constant 0 : i32
    %c0_i32_1 = arith.constant 0 : i32
    %c0_i32_2 = arith.constant 0 : i32
    return %c0_i32, %c0_i32_0, %c0_i32_1 : i32, i32, i32
  }
  func.func @transform_18(%arg0: i32) -> (i32, i32, i32) {
    %c0_i32 = arith.constant 0 : i32
    %c0_i32_0 = arith.constant 0 : i32
    %c0_i32_1 = arith.constant 0 : i32
    %c0_i32_2 = arith.constant 0 : i32
    return %c0_i32, %c0_i32_0, %c0_i32_1 : i32, i32, i32
  }
  func.func @transform_19(%arg0: i32) -> (i32, i32, i32) {
    %c0_i32 = arith.constant 0 : i32
    %c0_i32_0 = arith.constant 0 : i32
    %c0_i32_1 = arith.constant 0 : i32
    %c0_i32_2 = arith.constant 0 : i32
    return %c0_i32, %c0_i32_0, %c0_i32_1 : i32, i32, i32
  }
  func.func @transform_20(%arg0: i32) -> (i32, i32, i32) {
    %c0_i32 = arith.constant 0 : i32
    %c0_i32_0 = arith.constant 0 : i32
    %c0_i32_1 = arith.constant 0 : i32
    %c0_i32_2 = arith.constant 0 : i32
    return %c0_i32, %c0_i32_0, %c0_i32_1 : i32, i32, i32
  }
  func.func @transform_21(%arg0: i32) -> (i32, i32, i32) {
    %c0_i32 = arith.constant 0 : i32
    %c0_i32_0 = arith.constant 0 : i32
    %c0_i32_1 = arith.constant 0 : i32
    %c0_i32_2 = arith.constant 0 : i32
    return %c0_i32, %c0_i32_0, %c0_i32_1 : i32, i32, i32
  }
  func.func @transform_22(%arg0: i32) -> (i32, i32, i32) {
    %c0_i32 = arith.constant 0 : i32
    %c0_i32_0 = arith.constant 0 : i32
    %c0_i32_1 = arith.constant 0 : i32
    %c0_i32_2 = arith.constant 0 : i32
    return %c0_i32, %c0_i32_0, %c0_i32_1 : i32, i32, i32
  }
  func.func @transform_23(%arg0: i32) -> (i32, i32, i32) {
    %c0_i32 = arith.constant 0 : i32
    %c0_i32_0 = arith.constant 0 : i32
    %c0_i32_1 = arith.constant 0 : i32
    %c0_i32_2 = arith.constant 0 : i32
    return %c0_i32, %c0_i32_0, %c0_i32_1 : i32, i32, i32
  }
  func.func @transform_24(%arg0: i32) -> (i32, i32, i32) {
    %c0_i32 = arith.constant 0 : i32
    %c0_i32_0 = arith.constant 0 : i32
    %c0_i32_1 = arith.constant 0 : i32
    %c0_i32_2 = arith.constant 0 : i32
    return %c0_i32, %c0_i32_0, %c0_i32_1 : i32, i32, i32
  }
  func.func @transform_25(%arg0: i32) -> (i32, i32, i32) {
    %c0_i32 = arith.constant 0 : i32
    %c0_i32_0 = arith.constant 0 : i32
    %c0_i32_1 = arith.constant 0 : i32
    %c0_i32_2 = arith.constant 0 : i32
    return %c0_i32, %c0_i32_0, %c0_i32_1 : i32, i32, i32
  }
  func.func @transform_26(%arg0: i32) -> (i32, i32, i32) {
    %c0_i32 = arith.constant 0 : i32
    %c0_i32_0 = arith.constant 0 : i32
    %c0_i32_1 = arith.constant 0 : i32
    %c0_i32_2 = arith.constant 0 : i32
    return %c0_i32, %c0_i32_0, %c0_i32_1 : i32, i32, i32
  }
  func.func @transform_27(%arg0: i32) -> (i32, i32, i32) {
    %c0_i32 = arith.constant 0 : i32
    %c0_i32_0 = arith.constant 0 : i32
    %c0_i32_1 = arith.constant 0 : i32
    %c0_i32_2 = arith.constant 0 : i32
    return %c0_i32, %c0_i32_0, %c0_i32_1 : i32, i32, i32
  }
  func.func @transform_28(%arg0: i32) -> (i32, i32, i32) {
    %c0_i32 = arith.constant 0 : i32
    %c0_i32_0 = arith.constant 0 : i32
    %c0_i32_1 = arith.constant 0 : i32
    %c0_i32_2 = arith.constant 0 : i32
    return %c0_i32, %c0_i32_0, %c0_i32_1 : i32, i32, i32
  }
  func.func @transform_29(%arg0: i32) -> (i32, i32, i32) {
    %c0_i32 = arith.constant 0 : i32
    %c0_i32_0 = arith.constant 0 : i32
    %c0_i32_1 = arith.constant 0 : i32
    %c0_i32_2 = arith.constant 0 : i32
    return %c0_i32, %c0_i32_0, %c0_i32_1 : i32, i32, i32
  }
  func.func @transform_30(%arg0: i32) -> (i32, i32, i32) {
    %c0_i32 = arith.constant 0 : i32
    %c0_i32_0 = arith.constant 0 : i32
    %c0_i32_1 = arith.constant 0 : i32
    %c0_i32_2 = arith.constant 0 : i32
    return %c0_i32, %c0_i32_0, %c0_i32_1 : i32, i32, i32
  }
  func.func @transform_31(%arg0: i32) -> (i32, i32, i32) {
    %c0_i32 = arith.constant 0 : i32
    %c0_i32_0 = arith.constant 0 : i32
    %c0_i32_1 = arith.constant 0 : i32
    %c0_i32_2 = arith.constant 0 : i32
    return %c0_i32, %c0_i32_0, %c0_i32_1 : i32, i32, i32
  }
  func.func @transform_32(%arg0: i32) -> (i32, i32, i32) {
    %c0_i32 = arith.constant 0 : i32
    %c0_i32_0 = arith.constant 0 : i32
    %c0_i32_1 = arith.constant 0 : i32
    %c0_i32_2 = arith.constant 0 : i32
    return %c0_i32, %c0_i32_0, %c0_i32_1 : i32, i32, i32
  }
  func.func @transform_33(%arg0: i32) -> (i32, i32, i32) {
    %c0_i32 = arith.constant 0 : i32
    %c0_i32_0 = arith.constant 0 : i32
    %c0_i32_1 = arith.constant 0 : i32
    %c0_i32_2 = arith.constant 0 : i32
    return %c0_i32, %c0_i32_0, %c0_i32_1 : i32, i32, i32
  }
  func.func @transform_34(%arg0: i32) -> (i32, i32, i32) {
    %c0_i32 = arith.constant 0 : i32
    %c0_i32_0 = arith.constant 0 : i32
    %c0_i32_1 = arith.constant 0 : i32
    %c0_i32_2 = arith.constant 0 : i32
    return %c0_i32, %c0_i32_0, %c0_i32_1 : i32, i32, i32
  }
  func.func @transform_35(%arg0: i32) -> (i32, i32, i32) {
    %c0_i32 = arith.constant 0 : i32
    %c0_i32_0 = arith.constant 0 : i32
    %c0_i32_1 = arith.constant 0 : i32
    %c0_i32_2 = arith.constant 0 : i32
    return %c0_i32, %c0_i32_0, %c0_i32_1 : i32, i32, i32
  }
  func.func @transform_36(%arg0: i32) -> (i32, i32, i32) {
    %c0_i32 = arith.constant 0 : i32
    %c0_i32_0 = arith.constant 0 : i32
    %c0_i32_1 = arith.constant 0 : i32
    %c0_i32_2 = arith.constant 0 : i32
    return %c0_i32, %c0_i32_0, %c0_i32_1 : i32, i32, i32
  }
  func.func @transform_37(%arg0: i32) -> (i32, i32, i32) {
    %c0_i32 = arith.constant 0 : i32
    %c0_i32_0 = arith.constant 0 : i32
    %c0_i32_1 = arith.constant 0 : i32
    %c0_i32_2 = arith.constant 0 : i32
    return %c0_i32, %c0_i32_0, %c0_i32_1 : i32, i32, i32
  }
  func.func @transform_38(%arg0: i32) -> (i32, i32, i32) {
    %c0_i32 = arith.constant 0 : i32
    %c0_i32_0 = arith.constant 0 : i32
    %c0_i32_1 = arith.constant 0 : i32
    %c0_i32_2 = arith.constant 0 : i32
    return %c0_i32, %c0_i32_0, %c0_i32_1 : i32, i32, i32
  }
  func.func @transform_39(%arg0: i32) -> (i32, i32, i32) {
    %c0_i32 = arith.constant 0 : i32
    %c0_i32_0 = arith.constant 0 : i32
    %c0_i32_1 = arith.constant 0 : i32
    %c0_i32_2 = arith.constant 0 : i32
    return %c0_i32, %c0_i32_0, %c0_i32_1 : i32, i32, i32
  }
  func.func @transform_40(%arg0: i32) -> (i32, i32, i32) {
    %c0_i32 = arith.constant 0 : i32
    %c0_i32_0 = arith.constant 0 : i32
    %c0_i32_1 = arith.constant 0 : i32
    %c0_i32_2 = arith.constant 0 : i32
    return %c0_i32, %c0_i32_0, %c0_i32_1 : i32, i32, i32
  }
  func.func @transform_41(%arg0: i32) -> (i32, i32) {
    %c0_i32 = arith.constant 0 : i32
    %c0_i32_0 = arith.constant 0 : i32
    %c0_i32_1 = arith.constant 0 : i32
    return %c0_i32, %c0_i32_0 : i32, i32
  }
  func.func @transform_42(%arg0: i32) -> (i32, i32) {
    %c0_i32 = arith.constant 0 : i32
    %c0_i32_0 = arith.constant 0 : i32
    %c0_i32_1 = arith.constant 0 : i32
    return %c0_i32, %c0_i32_0 : i32, i32
  }
}

</mosaic_0001>

<llo_original>
// kernel: brain_decoder_forward.1
$region0: #{brain_decoder_forward.1}
  #allocation0 [shape = 'u32[]', space=smem, size = 0x4, offset = 0x4, fixed_abs, tag = 'smem constant byte address 0x4 - core index']
  #allocation1 [shape = 'u32[72,128]{1,0:T(1,128)}', space=vmem, size = 0x9000, scoped, tag = 'internal scratch']
  %s0 = inlined_call_operand.smem [shape: u32[43], index: -1, kind: input, shape index: {}]
  %s1 = sld [smem:[%s0]]
  %s2 = scalar_lea.smem %s0, 1
  %s3 = sld [smem:[%s2]]
  %s4 = scalar_lea.smem %s0, 2
  %s5 = sld [smem:[%s4]]
  %s6 = scalar_lea.smem %s0, 3
  %s7 = sld [smem:[%s6]]
  %s8 = scalar_lea.smem %s0, 4
  %s9 = sld [smem:[%s8]]
  %s10 = scalar_lea.smem %s0, 5
  %s11 = sld [smem:[%s10]]
  %s12 = scalar_lea.smem %s0, 6
  %s13 = sld [smem:[%s12]]
  %s14 = scalar_lea.smem %s0, 7
  %s15 = sld [smem:[%s14]]
  %s16 = scalar_lea.smem %s0, 8
  %s17 = sld [smem:[%s16]]
  %s18 = scalar_lea.smem %s0, 9
  %s19 = sld [smem:[%s18]]
  %s20 = scalar_lea.smem %s0, 10
  %s21 = sld [smem:[%s20]]
  %s22 = scalar_lea.smem %s0, 11
  %s23 = sld [smem:[%s22]]
  %s24 = scalar_lea.smem %s0, 12
  %s25 = sld [smem:[%s24]]
  %s26 = scalar_lea.smem %s0, 13
  %s27 = sld [smem:[%s26]]
  %s28 = scalar_lea.smem %s0, 14
  %s29 = sld [smem:[%s28]]
  %s30 = scalar_lea.smem %s0, 15
  %s31 = sld [smem:[%s30]]
  %s32 = scalar_lea.smem %s0, 16
  %s33 = sld [smem:[%s32]]
  %s34 = scalar_lea.smem %s0, 17
  %s35 = sld [smem:[%s34]]
  %s36 = scalar_lea.smem %s0, 18
  %s37 = sld [smem:[%s36]]
  %s38 = scalar_lea.smem %s0, 19
  %s39 = sld [smem:[%s38]]
  %s40 = scalar_lea.smem %s0, 20
  %s41 = sld [smem:[%s40]]
  %s42 = scalar_lea.smem %s0, 21
  %s43 = sld [smem:[%s42]]
  %s44 = scalar_lea.smem %s0, 22
  %s45 = sld [smem:[%s44]]
  %s46 = scalar_lea.smem %s0, 23
  %s47 = sld [smem:[%s46]]
  %s48 = scalar_lea.smem %s0, 24
  %s49 = sld [smem:[%s48]]
  %s50 = scalar_lea.smem %s0, 25
  %s51 = sld [smem:[%s50]]
  %s52 = scalar_lea.smem %s0, 26
  %s53 = sld [smem:[%s52]]
  %s54 = scalar_lea.smem %s0, 27
  %s55 = sld [smem:[%s54]]
  %s56 = scalar_lea.smem %s0, 28
  %s57 = sld [smem:[%s56]]
  %s58 = scalar_lea.smem %s0, 29
  %s59 = sld [smem:[%s58]]
  %s60 = scalar_lea.smem %s0, 30
  %s61 = sld [smem:[%s60]]
  %s62 = scalar_lea.smem %s0, 31
  %s63 = sld [smem:[%s62]]
  %s64 = scalar_lea.smem %s0, 32
  %s65 = sld [smem:[%s64]]
  %s66 = scalar_lea.smem %s0, 33
  %s67 = sld [smem:[%s66]]
  %s68 = scalar_lea.smem %s0, 34
  %s69 = sld [smem:[%s68]]
  %s70 = scalar_lea.smem %s0, 35
  %s71 = sld [smem:[%s70]]
  %s72 = scalar_lea.smem %s0, 36
  %s73 = sld [smem:[%s72]]
  %s74 = scalar_lea.smem %s0, 37
  %s75 = sld [smem:[%s74]]
  %s76 = scalar_lea.smem %s0, 38
  %s77 = sld [smem:[%s76]]
  %s78 = scalar_lea.smem %s0, 39
  %s79 = sld [smem:[%s78]]
  %s80 = scalar_lea.smem %s0, 40
  %s81 = sld [smem:[%s80]]
  %s82 = scalar_lea.smem %s0, 41
  %s83 = sld [smem:[%s82]]
  %s84 = scalar_lea.smem %s0, 42
  %s85 = sld [smem:[%s84]]
  %86 = xla_tuple %s83, %s85
  %s87 = sld [smem:[#allocation0]]
  $region186: #{brain_decoder_forward.1} parent=0
    _
  %s89 = ssub.s32 1, %s87
  %s90 = scalar_select 0, %s89, %s87
  $region1: #{brain_decoder_forward.1} parent=0
    #allocation2 [shape = 'u8[512]{0}', space=smem, size = 0x200, scoped, tag = 'input window, operand 12, single buffered']
    #allocation3 [shape = 's32[1]{0}', space=sflag, size = 0x4, scoped, tag = 'scoped memory for brain_decoder_forward.1']
    #allocation4 [shape = 's32[1]{0}', space=sflag, size = 0x4, scoped, tag = 'scoped memory for brain_decoder_forward.1']
    #allocation5 [shape = 'u8[1024]{0}', space=vmem, size = 0x400, scoped, tag = 'output window, operand 0, single buffered']
    %91 = vsyncpa [#allocation4], 0
    %92 = vsyncpa [#allocation3], 0
    // Predicated region
    $region2: #{brain_decoder_forward.1} parent=1 // pred_check
      _
    $region3: #{brain_decoder_forward.1} parent=1 // pred_check_branch
      %94 = sbr.rel (0) target = $region5
    $region4: #{brain_decoder_forward.1} parent=1 // pred_region
      _
    $region5: #{brain_decoder_forward.1} parent=1 // pred_fallthru
      _
    // Predicated region
    $region6: #{brain_decoder_forward.1} parent=1 // pred_check
      _
    $region7: #{brain_decoder_forward.1} parent=1 // pred_check_branch
      %96 = sbr.rel (0) target = $region9
    $region8: #{brain_decoder_forward.1} parent=1 // pred_region
      _
    $region9: #{brain_decoder_forward.1} parent=1 // pred_fallthru
      _
    // Predicated region
    $region10: #{brain_decoder_forward.1} parent=1 // pred_check
      _
    $region11: #{brain_decoder_forward.1} parent=1 // pred_check_branch
      %98 = sbr.rel (0) target = $region13
    $region12: #{brain_decoder_forward.1} parent=1 // pred_region
      _
    $region13: #{brain_decoder_forward.1} parent=1 // pred_fallthru
      _
    // Predicated region
    $region14: #{brain_decoder_forward.1} parent=1 // pred_check
      _
    $region15: #{brain_decoder_forward.1} parent=1 // pred_check_branch
      %100 = sbr.rel (0) target = $region17
    $region16: #{brain_decoder_forward.1} parent=1 // pred_region
      _
    $region17: #{brain_decoder_forward.1} parent=1 // pred_fallthru
      _
    // Predicated region
    $region18: #{brain_decoder_forward.1} parent=1 // pred_check
      _
    $region19: #{brain_decoder_forward.1} parent=1 // pred_check_branch
      %102 = sbr.rel (0) target = $region21
    $region20: #{brain_decoder_forward.1} parent=1 // pred_region
      _
    $region21: #{brain_decoder_forward.1} parent=1 // pred_fallthru
      _
    // Predicated region
    $region22: #{brain_decoder_forward.1} parent=1 // pred_check
      _
    $region23: #{brain_decoder_forward.1} parent=1 // pred_check_branch
      %104 = sbr.rel (0) target = $region25
    $region24: #{brain_decoder_forward.1} parent=1 // pred_region
      _
    $region25: #{brain_decoder_forward.1} parent=1 // pred_fallthru
      _
    // Predicated region
    $region26: #{brain_decoder_forward.1} parent=1 // pred_check
      _
    $region27: #{brain_decoder_forward.1} parent=1 // pred_check_branch
      %106 = sbr.rel (0) target = $region29
    $region28: #{brain_decoder_forward.1} parent=1 // pred_region
      _
    $region29: #{brain_decoder_forward.1} parent=1 // pred_fallthru
      _
    // Predicated region
    $region30: #{brain_decoder_forward.1} parent=1 // pred_check
      _
    $region31: #{brain_decoder_forward.1} parent=1 // pred_check_branch
      %108 = sbr.rel (0) target = $region33
    $region32: #{brain_decoder_forward.1} parent=1 // pred_region
      _
    $region33: #{brain_decoder_forward.1} parent=1 // pred_fallthru
      _
    // Predicated region
    $region34: #{brain_decoder_forward.1} parent=1 // pred_check
      _
    $region35: #{brain_decoder_forward.1} parent=1 // pred_check_branch
      %110 = sbr.rel (0) target = $region37
    $region36: #{brain_decoder_forward.1} parent=1 // pred_region
      _
    $region37: #{brain_decoder_forward.1} parent=1 // pred_fallthru
      _
    // Predicated region
    $region38: #{brain_decoder_forward.1} parent=1 // pred_check
      _
    $region39: #{brain_decoder_forward.1} parent=1 // pred_check_branch
      %112 = sbr.rel (0) target = $region41
    $region40: #{brain_decoder_forward.1} parent=1 // pred_region
      _
    $region41: #{brain_decoder_forward.1} parent=1 // pred_fallthru
      _
    // Predicated region
    $region42: #{brain_decoder_forward.1} parent=1 // pred_check
      _
    $region43: #{brain_decoder_forward.1} parent=1 // pred_check_branch
      %114 = sbr.rel (0) target = $region45
    $region44: #{brain_decoder_forward.1} parent=1 // pred_region
      _
    $region45: #{brain_decoder_forward.1} parent=1 // pred_fallthru
      _
    // Predicated region
    $region46: #{brain_decoder_forward.1} parent=1 // pred_check
      _
    $region47: #{brain_decoder_forward.1} parent=1 // pred_check_branch
      %116 = sbr.rel (0) target = $region49
    $region48: #{brain_decoder_forward.1} parent=1 // pred_region
      _
    $region49: #{brain_decoder_forward.1} parent=1 // pred_fallthru
      _
    // Predicated region
    $region50: #{brain_decoder_forward.1} parent=1 // pred_check
      _
    $region51: #{brain_decoder_forward.1} parent=1 // pred_check_branch
      %118 = sbr.rel (0) target = $region53
    $region52: #{brain_decoder_forward.1} parent=1 // pred_region
      %120 = vsyncadd [#allocation4], 0
      %s122 = sshll.u32 %s25, 4
      %s123 = int_to_ptr.vmem [resolvable:$true] %s122
      %125 = dma.vmem_to_smem %s123, 16, [#allocation2], [#allocation4]
    $region53: #{brain_decoder_forward.1} parent=1 // pred_fallthru
      _
    // Predicated region
    $region54: #{brain_decoder_forward.1} parent=1 // pred_check
      _
    $region55: #{brain_decoder_forward.1} parent=1 // pred_check_branch
      %127 = sbr.rel (0) target = $region57
    $region56: #{brain_decoder_forward.1} parent=1 // pred_region
      _
    $region57: #{brain_decoder_forward.1} parent=1 // pred_fallthru
      _
    // Predicated region
    $region58: #{brain_decoder_forward.1} parent=1 // pred_check
      _
    $region59: #{brain_decoder_forward.1} parent=1 // pred_check_branch
      %129 = sbr.rel (0) target = $region61
    $region60: #{brain_decoder_forward.1} parent=1 // pred_region
      _
    $region61: #{brain_decoder_forward.1} parent=1 // pred_fallthru
      _
    // Predicated region
    $region62: #{brain_decoder_forward.1} parent=1 // pred_check
      _
    $region63: #{brain_decoder_forward.1} parent=1 // pred_check_branch
      %131 = sbr.rel (0) target = $region65
    $region64: #{brain_decoder_forward.1} parent=1 // pred_region
      _
    $region65: #{brain_decoder_forward.1} parent=1 // pred_fallthru
      _
    // Predicated region
    $region66: #{brain_decoder_forward.1} parent=1 // pred_check
      _
    $region67: #{brain_decoder_forward.1} parent=1 // pred_check_branch
      %133 = sbr.rel (0) target = $region69
    $region68: #{brain_decoder_forward.1} parent=1 // pred_region
      _
    $region69: #{brain_decoder_forward.1} parent=1 // pred_fallthru
      _
    // Predicated region
    $region70: #{brain_decoder_forward.1} parent=1 // pred_check
      _
    $region71: #{brain_decoder_forward.1} parent=1 // pred_check_branch
      %135 = sbr.rel (0) target = $region73
    $region72: #{brain_decoder_forward.1} parent=1 // pred_region
      _
    $region73: #{brain_decoder_forward.1} parent=1 // pred_fallthru
      _
    // Predicated region
    $region74: #{brain_decoder_forward.1} parent=1 // pred_check
      _
    $region75: #{brain_decoder_forward.1} parent=1 // pred_check_branch
      %137 = sbr.rel (0) target = $region77
    $region76: #{brain_decoder_forward.1} parent=1 // pred_region
      _
    $region77: #{brain_decoder_forward.1} parent=1 // pred_fallthru
      _
    // Predicated region
    $region78: #{brain_decoder_forward.1} parent=1 // pred_check
      _
    $region79: #{brain_decoder_forward.1} parent=1 // pred_check_branch
      %139 = sbr.rel (0) target = $region81
    $region80: #{brain_decoder_forward.1} parent=1 // pred_region
      _
    $region81: #{brain_decoder_forward.1} parent=1 // pred_fallthru
      _
    // Predicated region
    $region82: #{brain_decoder_forward.1} parent=1 // pred_check
      _
    $region83: #{brain_decoder_forward.1} parent=1 // pred_check_branch
      %141 = sbr.rel (0) target = $region85
    $region84: #{brain_decoder_forward.1} parent=1 // pred_region
      _
    $region85: #{brain_decoder_forward.1} parent=1 // pred_fallthru
      _
    // Predicated region
    $region86: #{brain_decoder_forward.1} parent=1 // pred_check
      _
    $region87: #{brain_decoder_forward.1} parent=1 // pred_check_branch
      %143 = sbr.rel (0) target = $region89
    $region88: #{brain_decoder_forward.1} parent=1 // pred_region
      _
    $region89: #{brain_decoder_forward.1} parent=1 // pred_fallthru
      _
    // Predicated region
    $region90: #{brain_decoder_forward.1} parent=1 // pred_check
      _
    $region91: #{brain_decoder_forward.1} parent=1 // pred_check_branch
      %145 = sbr.rel (0) target = $region93
    $region92: #{brain_decoder_forward.1} parent=1 // pred_region
      _
    $region93: #{brain_decoder_forward.1} parent=1 // pred_fallthru
      _
    // Predicated region
    $region94: #{brain_decoder_forward.1} parent=1 // pred_check
      _
    $region95: #{brain_decoder_forward.1} parent=1 // pred_check_branch
      %147 = sbr.rel (0) target = $region97
    $region96: #{brain_decoder_forward.1} parent=1 // pred_region
      _
    $region97: #{brain_decoder_forward.1} parent=1 // pred_fallthru
      _
    // Predicated region
    $region98: #{brain_decoder_forward.1} parent=1 // pred_check
      _
    $region99: #{brain_decoder_forward.1} parent=1 // pred_check_branch
      %149 = sbr.rel (0) target = $region101
    $region100: #{brain_decoder_forward.1} parent=1 // pred_region
      _
    $region101: #{brain_decoder_forward.1} parent=1 // pred_fallthru
      _
    // Predicated region
    $region102: #{brain_decoder_forward.1} parent=1 // pred_check
      _
    $region103: #{brain_decoder_forward.1} parent=1 // pred_check_branch
      %151 = sbr.rel (0) target = $region105
    $region104: #{brain_decoder_forward.1} parent=1 // pred_region
      _
    $region105: #{brain_decoder_forward.1} parent=1 // pred_fallthru
      _
    // Predicated region
    $region106: #{brain_decoder_forward.1} parent=1 // pred_check
      _
    $region107: #{brain_decoder_forward.1} parent=1 // pred_check_branch
      %153 = sbr.rel (0) target = $region109
    $region108: #{brain_decoder_forward.1} parent=1 // pred_region
      _
    $region109: #{brain_decoder_forward.1} parent=1 // pred_fallthru
      _
    // Predicated region
    $region110: #{brain_decoder_forward.1} parent=1 // pred_check
      _
    $region111: #{brain_decoder_forward.1} parent=1 // pred_check_branch
      %155 = sbr.rel (0) target = $region113
    $region112: #{brain_decoder_forward.1} parent=1 // pred_region
      _
    $region113: #{brain_decoder_forward.1} parent=1 // pred_fallthru
      _
    // Predicated region
    $region114: #{brain_decoder_forward.1} parent=1 // pred_check
      _
    $region115: #{brain_decoder_forward.1} parent=1 // pred_check_branch
      %157 = sbr.rel (0) target = $region117
    $region116: #{brain_decoder_forward.1} parent=1 // pred_region
      _
    $region117: #{brain_decoder_forward.1} parent=1 // pred_fallthru
      _
    // Predicated region
    $region118: #{brain_decoder_forward.1} parent=1 // pred_check
      _
    $region119: #{brain_decoder_forward.1} parent=1 // pred_check_branch
      %159 = sbr.rel (0) target = $region121
    $region120: #{brain_decoder_forward.1} parent=1 // pred_region
      _
    $region121: #{brain_decoder_forward.1} parent=1 // pred_fallthru
      _
    // Predicated region
    $region122: #{brain_decoder_forward.1} parent=1 // pred_check
      _
    $region123: #{brain_decoder_forward.1} parent=1 // pred_check_branch
      %161 = sbr.rel (0) target = $region125
    $region124: #{brain_decoder_forward.1} parent=1 // pred_region
      _
    $region125: #{brain_decoder_forward.1} parent=1 // pred_fallthru
      _
    // Predicated region
    $region126: #{brain_decoder_forward.1} parent=1 // pred_check
      _
    $region127: #{brain_decoder_forward.1} parent=1 // pred_check_branch
      %163 = sbr.rel (0) target = $region129
    $region128: #{brain_decoder_forward.1} parent=1 // pred_region
      _
    $region129: #{brain_decoder_forward.1} parent=1 // pred_fallthru
      _
    // Predicated region
    $region130: #{brain_decoder_forward.1} parent=1 // pred_check
      _
    $region131: #{brain_decoder_forward.1} parent=1 // pred_check_branch
      %165 = sbr.rel (0) target = $region133
    $region132: #{brain_decoder_forward.1} parent=1 // pred_region
      _
    $region133: #{brain_decoder_forward.1} parent=1 // pred_fallthru
      _
    // Predicated region
    $region134: #{brain_decoder_forward.1} parent=1 // pred_check
      _
    $region135: #{brain_decoder_forward.1} parent=1 // pred_check_branch
      %167 = sbr.rel (0) target = $region137
    $region136: #{brain_decoder_forward.1} parent=1 // pred_region
      _
    $region137: #{brain_decoder_forward.1} parent=1 // pred_fallthru
      _
    // Predicated region
    $region138: #{brain_decoder_forward.1} parent=1 // pred_check
      _
    $region139: #{brain_decoder_forward.1} parent=1 // pred_check_branch
      %169 = sbr.rel (0) target = $region141
    $region140: #{brain_decoder_forward.1} parent=1 // pred_region
      _
    $region141: #{brain_decoder_forward.1} parent=1 // pred_fallthru
      _
    // Predicated region
    $region142: #{brain_decoder_forward.1} parent=1 // pred_check
      _
    $region143: #{brain_decoder_forward.1} parent=1 // pred_check_branch
      %171 = sbr.rel (0) target = $region145
    $region144: #{brain_decoder_forward.1} parent=1 // pred_region
      _
    $region145: #{brain_decoder_forward.1} parent=1 // pred_fallthru
      _
    // Predicated region
    $region146: #{brain_decoder_forward.1} parent=1 // pred_check
      _
    $region147: #{brain_decoder_forward.1} parent=1 // pred_check_branch
      %173 = sbr.rel (0) target = $region149
    $region148: #{brain_decoder_forward.1} parent=1 // pred_region
      _
    $region149: #{brain_decoder_forward.1} parent=1 // pred_fallthru
      _
    // Predicated region
    $region150: #{brain_decoder_forward.1} parent=1 // pred_check
      _
    $region151: #{brain_decoder_forward.1} parent=1 // pred_check_branch
      %175 = sbr.rel (0) target = $region153
    $region152: #{brain_decoder_forward.1} parent=1 // pred_region
      _
    $region153: #{brain_decoder_forward.1} parent=1 // pred_fallthru
      _
    // Predicated region
    $region154: #{brain_decoder_forward.1} parent=1 // pred_check
      _
    $region155: #{brain_decoder_forward.1} parent=1 // pred_check_branch
      %177 = sbr.rel (0) target = $region157
    $region156: #{brain_decoder_forward.1} parent=1 // pred_region
      _
    $region157: #{brain_decoder_forward.1} parent=1 // pred_fallthru
      _
    // Predicated region
    $region158: #{brain_decoder_forward.1} parent=1 // pred_check
      _
    $region159: #{brain_decoder_forward.1} parent=1 // pred_check_branch
      %179 = sbr.rel (0) target = $region161
    $region160: #{brain_decoder_forward.1} parent=1 // pred_region
      _
    $region161: #{brain_decoder_forward.1} parent=1 // pred_fallthru
      _
    // Predicated region
    $region162: #{brain_decoder_forward.1} parent=1 // pred_check
      _
    $region163: #{brain_decoder_forward.1} parent=1 // pred_check_branch
      %181 = sbr.rel (0) target = $region165
    $region164: #{brain_decoder_forward.1} parent=1 // pred_region
      _
    $region165: #{brain_decoder_forward.1} parent=1 // pred_fallthru
      _
    // Predicated region
    $region166: #{brain_decoder_forward.1} parent=1 // pred_check
      _
    $region167: #{brain_decoder_forward.1} parent=1 // pred_check_branch
      %183 = sbr.rel (0) target = $region169
    $region168: #{brain_decoder_forward.1} parent=1 // pred_region
      %185 = dma.done [#allocation4], 16
    $region169: #{brain_decoder_forward.1} parent=1 // pred_fallthru
      _
    %186 = sfence
    %v188 = vld [vmem:[%s3] sm:$0xff]
    %v189 = vld [vmem:[%s3 + $0x8] sm:$0xff]
    %v190 = vld [vmem:[%s3 + $0x10] sm:$0xff]
    %v191 = vld [vmem:[%s3 + $0x18] sm:$0xff]
    %v192 = vld [vmem:[%s3 + $0x20] sm:$0xff]
    %v193 = vld [vmem:[%s3 + $0x28] sm:$0xff]
    %v194 = vld [vmem:[%s3 + $0x30] sm:$0xff]
    %v195 = vld [vmem:[%s3 + $0x38] sm:$0xff]
    %v196 = vld [vmem:[%s5] sm:$0xff]
    %v197 = vld [vmem:[%s5 + $0x8] sm:$0xff]
    %v198 = vld [vmem:[%s5 + $0x10] sm:$0xff]
    %v199 = vld [vmem:[%s5 + $0x18] sm:$0xff]
    %v200 = vld [vmem:[%s5 + $0x20] sm:$0xff]
    %v201 = vld [vmem:[%s5 + $0x28] sm:$0xff]
    %v202 = vld [vmem:[%s5 + $0x30] sm:$0xff]
    %v203 = vld [vmem:[%s5 + $0x38] sm:$0xff]
    %205 = vset.pattern.permute.xlu0 0
    %206 = vperm.xlu0 %205, %v196
    %v207 = vpop.permute.xlu0 %206
    %210 = vset.pattern.permute.xlu0 0
    %211 = vperm.xlu0 %210, %v197
    %v212 = vpop.permute.xlu0 %211
    %215 = vset.pattern.permute.xlu0 0
    %216 = vperm.xlu0 %215, %v198
    %v217 = vpop.permute.xlu0 %216
    %220 = vset.pattern.permute.xlu0 0
    %221 = vperm.xlu0 %220, %v199
    %v222 = vpop.permute.xlu0 %221
    %225 = vset.pattern.permute.xlu0 0
    %226 = vperm.xlu0 %225, %v200
    %v227 = vpop.permute.xlu0 %226
    %230 = vset.pattern.permute.xlu0 0
    %231 = vperm.xlu0 %230, %v201
    %v232 = vpop.permute.xlu0 %231
    %235 = vset.pattern.permute.xlu0 0
    %236 = vperm.xlu0 %235, %v202
    %v237 = vpop.permute.xlu0 %236
    %240 = vset.pattern.permute.xlu0 0
    %241 = vperm.xlu0 %240, %v203
    %v242 = vpop.permute.xlu0 %241
    %vm244 = vcmp.gt.f32.partialorder %v188, %v207
    %vm245 = vcmp.gt.f32.partialorder %v189, %v212
    %vm246 = vcmp.gt.f32.partialorder %v190, %v217
    %vm247 = vcmp.gt.f32.partialorder %v191, %v222
    %vm248 = vcmp.gt.f32.partialorder %v192, %v227
    %vm249 = vcmp.gt.f32.partialorder %v193, %v232
    %vm250 = vcmp.gt.f32.partialorder %v194, %v237
    %vm251 = vcmp.gt.f32.partialorder %v195, %v242
    %v252 = vsel %vm244, 1, 0
    %v253 = vsel %vm245, 1, 0
    %v254 = vsel %vm246, 1, 0
    %v255 = vsel %vm247, 1, 0
    %v256 = vsel %vm248, 1, 0
    %v257 = vsel %vm249, 1, 0
    %v258 = vsel %vm250, 1, 0
    %v259 = vsel %vm251, 1, 0
    %v260 = vcvt.s32.f32 %v252
    %v261 = vcvt.s32.f32 %v253
    %v262 = vcvt.s32.f32 %v254
    %v263 = vcvt.s32.f32 %v255
    %v264 = vcvt.s32.f32 %v256
    %v265 = vcvt.s32.f32 %v257
    %v266 = vcvt.s32.f32 %v258
    %v267 = vcvt.s32.f32 %v259
    %v268 = vpack.c.bf16 %v261, %v260
    %v269 = vpack.c.bf16 %v263, %v262
    %v270 = vpack.c.bf16 %v265, %v264
    %v271 = vpack.c.bf16 %v267, %v266
    %v272 = vld [vmem:[%s1] sm:$0xff]
    %v273 = vld [vmem:[%s1 + $0x8] sm:$0xff]
    %v274 = vld [vmem:[%s1 + $0x10] sm:$0xff]
    %v275 = vld [vmem:[%s1 + $0x18] sm:$0xff]
    %v276 = vld [vmem:[%s1 + $0x20] sm:$0xff]
    %v277 = vld [vmem:[%s1 + $0x28] sm:$0xff]
    %v278 = vld [vmem:[%s1 + $0x30] sm:$0xff]
    %v279 = vld [vmem:[%s1 + $0x38] sm:$0xff]
    %v280 = vpack.c.bf16 %v273, %v272
    %v281 = vpack.c.bf16 %v275, %v274
    %v282 = vpack.c.bf16 %v277, %v276
    %v283 = vpack.c.bf16 %v279, %v278
    %v284 = vld [vmem:[%s27] sm:$0xf]
    %v285 = vld [vmem:[%s27 + $0x4] sm:$0xf]
    %v286 = vld [vmem:[%s29] sm:$0x1]
    %v288 = vperm.slane %v286, 0
    %v292 = vunpack.c.l.b16 %v284
    %v293 = vunpack.c.l.b16 %v285
    %v294 = vpack.c.b16 %v293, %v292
    %vm296 = vcmask 130048
    %v298 = vsel %vm296, %v280, 0
    %v301 = vsel %vm296, %v281, 0
    %v304 = vsel %vm296, %v282, 0
    %v307 = vsel %vm296, %v283, 0
    %309 = vmatpush.bf16.msra.mxu0 0
    %310 = vmatpush.bf16.msra.mxu0 0
    %311 = vmatpush.bf16.msra.mxu0 0
    %312 = vmatpush.bf16.msra.mxu0 0
    %313 = vmatpush.bf16.msra.mxu0 0
    %314 = vmatpush.bf16.msra.mxu0 0
    %315 = vmatpush.bf16.msra.mxu0 0
    %316 = vmatpush.bf16.msra.mxu0 %v294
    %317 = vmatmul.bf16.gmra.mxu0 %v298
    %v318 = vpop.f32.mrf.mxu0
    %v319 = vadd.f32 %v288, %v318
    %v320 = vpop.f32.mrf.mxu0
    %v321 = vadd.f32 %v288, %v320
    %322 = vmatmul.bf16.gmra.mxu0 %v301
    %v323 = vpop.f32.mrf.mxu0
    %v324 = vadd.f32 %v288, %v323
    %v325 = vpop.f32.mrf.mxu0
    %v326 = vadd.f32 %v288, %v325
    %327 = vmatmul.bf16.gmra.mxu0 %v304
    %v328 = vpop.f32.mrf.mxu0
    %v329 = vadd.f32 %v288, %v328
    %v330 = vpop.f32.mrf.mxu0
    %v331 = vadd.f32 %v288, %v330
    %332 = vmatmul.bf16.gmra.mxu0 %v307
    %v333 = vpop.f32.mrf.mxu0
    %v334 = vadd.f32 %v288, %v333
    %v335 = vpop.f32.mrf.mxu0
    %v336 = vadd.f32 %v288, %v335
    %337 = vdwg.mxu0
    %v338 = vld [vmem:[%s7] sm:$0xff]
    %v339 = vpack.c.bf16 %v338, %v338
    %v340 = vld [vmem:[%s9] sm:$0xff]
    %v341 = vld [vmem:[%s9 + $0x8] sm:$0xff]
    %v342 = vpack.c.bf16 %v341, %v340
    %v343 = vld [vmem:[%s11] sm:$0xff]
    %v344 = vld [vmem:[%s11 + $0x8] sm:$0xff]
    %v345 = vld [vmem:[%s11 + $0x10] sm:$0xff]
    %v346 = vld [vmem:[%s11 + $0x18] sm:$0xff]
    %v347 = vld [vmem:[%s11 + $0x20] sm:$0xff]
    %v348 = vld [vmem:[%s11 + $0x28] sm:$0xff]
    %v349 = vld [vmem:[%s11 + $0x30] sm:$0xff]
    %v350 = vld [vmem:[%s11 + $0x38] sm:$0xff]
    %v351 = vld [vmem:[%s13] sm:$0xff]
    %v352 = vld [vmem:[%s15] sm:$0xff]
    %v353 = vld [vmem:[%s17] sm:$0xff]
    %v354 = vld [vmem:[%s19] sm:$0xf]
    %v355 = vld [vmem:[%s19 + $0x4] sm:$0xf]
    %v356 = vld [vmem:[%s19 + $0x8] sm:$0xf]
    %v357 = vld [vmem:[%s19 + $0xc] sm:$0xf]
    %v358 = vld [vmem:[%s19 + $0x10] sm:$0xf]
    %v359 = vld [vmem:[%s19 + $0x14] sm:$0xf]
    %v360 = vld [vmem:[%s19 + $0x18] sm:$0xf]
    %v361 = vld [vmem:[%s19 + $0x1c] sm:$0xf]
    %v362 = vld [vmem:[%s21] sm:$0xf]
    %v363 = vld [vmem:[%s21 + $0x4] sm:$0xf]
    %v364 = vld [vmem:[%s21 + $0x8] sm:$0xf]
    %v365 = vld [vmem:[%s21 + $0xc] sm:$0xf]
    %v366 = vld [vmem:[%s21 + $0x10] sm:$0xf]
    %v367 = vld [vmem:[%s21 + $0x14] sm:$0xf]
    %v368 = vld [vmem:[%s21 + $0x18] sm:$0xf]
    %v369 = vld [vmem:[%s21 + $0x1c] sm:$0xf]
    %v370 = vld [vmem:[%s23] sm:$0x1]
    %v371 = vpack.c.bf16 %v321, %v319
    %v372 = vpack.c.bf16 %v326, %v324
    %v373 = vpack.c.bf16 %v331, %v329
    %v374 = vpack.c.bf16 %v336, %v334
    %s375 = sld [smem:[#allocation2]]
    %v376 = vstv %s375
    %v377 = vmul.f32 %v376, %v319
    %v378 = vmul.f32 %v376, %v321
    %v379 = vmul.f32 %v376, %v324
    %v380 = vmul.f32 %v376, %v326
    %v381 = vmul.f32 %v376, %v329
    %v382 = vmul.f32 %v376, %v331
    %v383 = vmul.f32 %v376, %v334
    %v384 = vmul.f32 %v376, %v336
    %vm385 = vcmask 523264
    %v387 = vsel %vm385, %v268, 0
    %v390 = vsel %vm385, %v269, 0
    %v393 = vsel %vm385, %v270, 0
    %v396 = vsel %vm385, %v271, 0
    %398 = vmatpush.bf16.msra.mxu0 0
    %399 = vmatpush.bf16.msra.mxu0 0
    %400 = vmatpush.bf16.msra.mxu0 0
    %401 = vmatpush.bf16.msra.mxu0 0
    %402 = vmatpush.bf16.msra.mxu0 %v374
    %403 = vmatpush.bf16.msra.mxu0 %v373
    %404 = vmatpush.bf16.msra.mxu0 %v372
    %405 = vmatpush.bf16.msra.mxu0 %v371
    %406 = vmatmul.bf16.gmra.mxu0 %v387
    %v407 = vpop.f32.mrf.mxu0
    %v408 = vadd.f32 %v377, %v407
    %v409 = vpop.f32.mrf.mxu0
    %v410 = vadd.f32 %v378, %v409
    %411 = vmatmul.bf16.gmra.mxu0 %v390
    %v412 = vpop.f32.mrf.mxu0
    %v413 = vadd.f32 %v379, %v412
    %v414 = vpop.f32.mrf.mxu0
    %v415 = vadd.f32 %v380, %v414
    %416 = vmatmul.bf16.gmra.mxu0 %v393
    %v417 = vpop.f32.mrf.mxu0
    %v418 = vadd.f32 %v381, %v417
    %v419 = vpop.f32.mrf.mxu0
    %v420 = vadd.f32 %v382, %v419
    %421 = vmatmul.bf16.gmra.mxu0 %v396
    %v422 = vpop.f32.mrf.mxu0
    %v423 = vadd.f32 %v383, %v422
    %v424 = vpop.f32.mrf.mxu0
    %v425 = vadd.f32 %v384, %v424
    %426 = vdwg.mxu0
    %v427 = vpack.c.bf16 %v410, %v408
    %v428 = vpack.c.bf16 %v415, %v413
    %v429 = vpack.c.bf16 %v420, %v418
    %v430 = vpack.c.bf16 %v425, %v423
    %v431 = vld [vmem:[%s31] sm:$0xf]
    %v432 = vld [vmem:[%s31 + $0x4] sm:$0xf]
    %v433 = vld [vmem:[%s31 + $0x8] sm:$0xf]
    %v434 = vld [vmem:[%s31 + $0xc] sm:$0xf]
    %v435 = vld [vmem:[%s33] sm:$0x1]
    %v437 = vperm.slane %v435, 0
    %v443 = vunpack.c.l.b16 %v431
    %v444 = vunpack.c.l.b16 %v432
    %v445 = vunpack.c.l.b16 %v433
    %v446 = vunpack.c.l.b16 %v434
    %v447 = vpack.c.b16 %v444, %v443
    %v448 = vpack.c.b16 %v446, %v445
    %vm451 = vcmask 261120
    %v453 = vsel %vm451, %v427, 0
    %v456 = vsel %vm451, %v428, 0
    %v459 = vsel %vm451, %v429, 0
    %v462 = vsel %vm451, %v430, 0
    %464 = vmatpush.bf16.msra.mxu0 0
    %465 = vmatpush.bf16.msra.mxu0 0
    %466 = vmatpush.bf16.msra.mxu0 0
    %467 = vmatpush.bf16.msra.mxu0 0
    %468 = vmatpush.bf16.msra.mxu0 0
    %469 = vmatpush.bf16.msra.mxu0 0
    %470 = vmatpush.bf16.msra.mxu0 %v448
    %471 = vmatpush.bf16.msra.mxu0 %v447
    %472 = vmatmul.bf16.gmra.mxu0 %v453
    %v473 = vpop.f32.mrf.mxu0
    %v474 = vadd.f32 %v437, %v473
    %v475 = vpop.f32.mrf.mxu0
    %v476 = vadd.f32 %v437, %v475
    %477 = vmatmul.bf16.gmra.mxu0 %v456
    %v478 = vpop.f32.mrf.mxu0
    %v479 = vadd.f32 %v437, %v478
    %v480 = vpop.f32.mrf.mxu0
    %v481 = vadd.f32 %v437, %v480
    %482 = vmatmul.bf16.gmra.mxu0 %v459
    %v483 = vpop.f32.mrf.mxu0
    %v484 = vadd.f32 %v437, %v483
    %v485 = vpop.f32.mrf.mxu0
    %v486 = vadd.f32 %v437, %v485
    %487 = vmatmul.bf16.gmra.mxu0 %v462
    %v488 = vpop.f32.mrf.mxu0
    %v489 = vadd.f32 %v437, %v488
    %v490 = vpop.f32.mrf.mxu0
    %v491 = vadd.f32 %v437, %v490
    %492 = vdwg.mxu0
    %v493 = vld [vmem:[%s35] sm:$0x1]
    %v494 = vld [vmem:[%s37] sm:$0x1]
    %v495 = vsel %vm451, %v474, 0.0
    %496 = vadd.xlane.f32.xlu0 %v495
    %v497 = vpop.xlane.xlu0 %496
    %v498 = vsel %vm451, %v476, 0.0
    %499 = vadd.xlane.f32.xlu0 %v498
    %v500 = vpop.xlane.xlu0 %499
    %v501 = vsel %vm451, %v479, 0.0
    %502 = vadd.xlane.f32.xlu0 %v501
    %v503 = vpop.xlane.xlu0 %502
    %v504 = vsel %vm451, %v481, 0.0
    %505 = vadd.xlane.f32.xlu0 %v504
    %v506 = vpop.xlane.xlu0 %505
    %v507 = vsel %vm451, %v484, 0.0
    %508 = vadd.xlane.f32.xlu0 %v507
    %v509 = vpop.xlane.xlu0 %508
    %v510 = vsel %vm451, %v486, 0.0
    %511 = vadd.xlane.f32.xlu0 %v510
    %v512 = vpop.xlane.xlu0 %511
    %v513 = vsel %vm451, %v489, 0.0
    %514 = vadd.xlane.f32.xlu0 %v513
    %v515 = vpop.xlane.xlu0 %514
    %v516 = vsel %vm451, %v491, 0.0
    %517 = vadd.xlane.f32.xlu0 %v516
    %v518 = vpop.xlane.xlu0 %517
    %v519 = vrcp.pop 32.0
    %v520 = vmul.f32 32.0, %v519
    %v521 = vsub.f32 1.0, %v520
    %v522 = vmul.f32 %v519, %v521
    %v523 = vadd.f32 %v519, %v522
    %vm524 = vweird.f32 %v519
    %v525 = vsel %vm524, %v519, %v523
    %v526 = vmul.f32 %v497, %v525
    %v527 = vmul.f32 %v500, %v525
    %v528 = vmul.f32 %v503, %v525
    %v529 = vmul.f32 %v506, %v525
    %v530 = vmul.f32 %v509, %v525
    %v531 = vmul.f32 %v512, %v525
    %v532 = vmul.f32 %v515, %v525
    %v533 = vmul.f32 %v518, %v525
    %v534 = vsub.f32 %v474, %v526
    %v535 = vsub.f32 %v476, %v527
    %v536 = vsub.f32 %v479, %v528
    %v537 = vsub.f32 %v481, %v529
    %v538 = vsub.f32 %v484, %v530
    %v539 = vsub.f32 %v486, %v531
    %v540 = vsub.f32 %v489, %v532
    %v541 = vsub.f32 %v491, %v533
    %v542 = vmul.f32 %v534, %v534
    %v543 = vmul.f32 %v535, %v535
    %v544 = vmul.f32 %v536, %v536
    %v545 = vmul.f32 %v537, %v537
    %v546 = vmul.f32 %v538, %v538
    %v547 = vmul.f32 %v539, %v539
    %v548 = vmul.f32 %v540, %v540
    %v549 = vmul.f32 %v541, %v541
    %v550 = vsel %vm451, %v542, 0.0
    %551 = vadd.xlane.f32.xlu0 %v550
    %v552 = vpop.xlane.xlu0 %551
    %v553 = vsel %vm451, %v543, 0.0
    %554 = vadd.xlane.f32.xlu0 %v553
    %v555 = vpop.xlane.xlu0 %554
    %v556 = vsel %vm451, %v544, 0.0
    %557 = vadd.xlane.f32.xlu0 %v556
    %v558 = vpop.xlane.xlu0 %557
    %v559 = vsel %vm451, %v545, 0.0
    %560 = vadd.xlane.f32.xlu0 %v559
    %v561 = vpop.xlane.xlu0 %560
    %v562 = vsel %vm451, %v546, 0.0
    %563 = vadd.xlane.f32.xlu0 %v562
    %v564 = vpop.xlane.xlu0 %563
    %v565 = vsel %vm451, %v547, 0.0
    %566 = vadd.xlane.f32.xlu0 %v565
    %v567 = vpop.xlane.xlu0 %566
    %v568 = vsel %vm451, %v548, 0.0
    %569 = vadd.xlane.f32.xlu0 %v568
    %v570 = vpop.xlane.xlu0 %569
    %v571 = vsel %vm451, %v549, 0.0
    %572 = vadd.xlane.f32.xlu0 %v571
    %v573 = vpop.xlane.xlu0 %572
    %v574 = vmul.f32 %v552, %v525
    %v575 = vmul.f32 %v555, %v525
    %v576 = vmul.f32 %v558, %v525
    %v577 = vmul.f32 %v561, %v525
    %v578 = vmul.f32 %v564, %v525
    %v579 = vmul.f32 %v567, %v525
    %v580 = vmul.f32 %v570, %v525
    %v581 = vmul.f32 %v573, %v525
    %v582 = vadd.f32 %v574, 1e-05
    %v583 = vadd.f32 %v575, 1e-05
    %v584 = vadd.f32 %v576, 1e-05
    %v585 = vadd.f32 %v577, 1e-05
    %v586 = vadd.f32 %v578, 1e-05
    %v587 = vadd.f32 %v579, 1e-05
    %v588 = vadd.f32 %v580, 1e-05
    %v589 = vadd.f32 %v581, 1e-05
    %v590 = vrsqrt.pop %v582
    %v591 = vmul.f32 %v590, %v582
    %v592 = vmul.f32 %v591, %v590
    %v593 = vmul.f32 0.5, %v592
    %v594 = vsub.f32 1.5, %v593
    %v595 = vmul.f32 %v590, %v594
    %vm596 = vweird.f32 %v582
    %vm597 = vweird.f32 %v590
    %vm598 = vmor %vm596, %vm597
    %v599 = vsel %vm598, %v590, %v595
    %v600 = vrsqrt.pop %v583
    %v601 = vmul.f32 %v600, %v583
    %v602 = vmul.f32 %v601, %v600
    %v603 = vmul.f32 0.5, %v602
    %v604 = vsub.f32 1.5, %v603
    %v605 = vmul.f32 %v600, %v604
    %vm606 = vweird.f32 %v583
    %vm607 = vweird.f32 %v600
    %vm608 = vmor %vm606, %vm607
    %v609 = vsel %vm608, %v600, %v605
    %v610 = vrsqrt.pop %v584
    %v611 = vmul.f32 %v610, %v584
    %v612 = vmul.f32 %v611, %v610
    %v613 = vmul.f32 0.5, %v612
    %v614 = vsub.f32 1.5, %v613
    %v615 = vmul.f32 %v610, %v614
    %vm616 = vweird.f32 %v584
    %vm617 = vweird.f32 %v610
    %vm618 = vmor %vm616, %vm617
    %v619 = vsel %vm618, %v610, %v615
    %v620 = vrsqrt.pop %v585
    %v621 = vmul.f32 %v620, %v585
    %v622 = vmul.f32 %v621, %v620
    %v623 = vmul.f32 0.5, %v622
    %v624 = vsub.f32 1.5, %v623
    %v625 = vmul.f32 %v620, %v624
    %vm626 = vweird.f32 %v585
    %vm627 = vweird.f32 %v620
    %vm628 = vmor %vm626, %vm627
    %v629 = vsel %vm628, %v620, %v625
    %v630 = vrsqrt.pop %v586
    %v631 = vmul.f32 %v630, %v586
    %v632 = vmul.f32 %v631, %v630
    %v633 = vmul.f32 0.5, %v632
    %v634 = vsub.f32 1.5, %v633
    %v635 = vmul.f32 %v630, %v634
    %vm636 = vweird.f32 %v586
    %vm637 = vweird.f32 %v630
    %vm638 = vmor %vm636, %vm637
    %v639 = vsel %vm638, %v630, %v635
    %v640 = vrsqrt.pop %v587
    %v641 = vmul.f32 %v640, %v587
    %v642 = vmul.f32 %v641, %v640
    %v643 = vmul.f32 0.5, %v642
    %v644 = vsub.f32 1.5, %v643
    %v645 = vmul.f32 %v640, %v644
    %vm646 = vweird.f32 %v587
    %vm647 = vweird.f32 %v640
    %vm648 = vmor %vm646, %vm647
    %v649 = vsel %vm648, %v640, %v645
    %v650 = vrsqrt.pop %v588
    %v651 = vmul.f32 %v650, %v588
    %v652 = vmul.f32 %v651, %v650
    %v653 = vmul.f32 0.5, %v652
    %v654 = vsub.f32 1.5, %v653
    %v655 = vmul.f32 %v650, %v654
    %vm656 = vweird.f32 %v588
    %vm657 = vweird.f32 %v650
    %vm658 = vmor %vm656, %vm657
    %v659 = vsel %vm658, %v650, %v655
    %v660 = vrsqrt.pop %v589
    %v661 = vmul.f32 %v660, %v589
    %v662 = vmul.f32 %v661, %v660
    %v663 = vmul.f32 0.5, %v662
    %v664 = vsub.f32 1.5, %v663
    %v665 = vmul.f32 %v660, %v664
    %vm666 = vweird.f32 %v589
    %vm667 = vweird.f32 %v660
    %vm668 = vmor %vm666, %vm667
    %v669 = vsel %vm668, %v660, %v665
    %v670 = vmul.f32 %v534, %v599
    %v671 = vmul.f32 %v535, %v609
    %v672 = vmul.f32 %v536, %v619
    %v673 = vmul.f32 %v537, %v629
    %v674 = vmul.f32 %v538, %v639
    %v675 = vmul.f32 %v539, %v649
    %v676 = vmul.f32 %v540, %v659
    %v677 = vmul.f32 %v541, %v669
    %v679 = vperm.slane %v493, 0
    %v681 = vmul.f32 %v670, %v679
    %v682 = vmul.f32 %v671, %v679
    %v683 = vmul.f32 %v672, %v679
    %v684 = vmul.f32 %v673, %v679
    %v685 = vmul.f32 %v674, %v679
    %v686 = vmul.f32 %v675, %v679
    %v687 = vmul.f32 %v676, %v679
    %v688 = vmul.f32 %v677, %v679
    %v690 = vperm.slane %v494, 0
    %v692 = vadd.f32 %v681, %v690
    %v693 = vadd.f32 %v682, %v690
    %v694 = vadd.f32 %v683, %v690
    %v695 = vadd.f32 %v684, %v690
    %v696 = vadd.f32 %v685, %v690
    %v697 = vadd.f32 %v686, %v690
    %v698 = vadd.f32 %v687, %v690
    %v699 = vadd.f32 %v688, %v690
    %v700 = vmax.f32 %v692, 0.0
    %v701 = vmax.f32 %v693, 0.0
    %v702 = vmax.f32 %v694, 0.0
    %v703 = vmax.f32 %v695, 0.0
    %v704 = vmax.f32 %v696, 0.0
    %v705 = vmax.f32 %v697, 0.0
    %v706 = vmax.f32 %v698, 0.0
    %v707 = vmax.f32 %v699, 0.0
    %v708 = vpack.c.bf16 %v701, %v700
    %v709 = vpack.c.bf16 %v703, %v702
    %v710 = vpack.c.bf16 %v705, %v704
    %v711 = vpack.c.bf16 %v707, %v706
    %v712 = vld [vmem:[%s39] sm:$0xf]
    %v713 = vld [vmem:[%s39 + $0x4] sm:$0xf]
    %v714 = vld [vmem:[%s39 + $0x8] sm:$0xf]
    %v715 = vld [vmem:[%s39 + $0xc] sm:$0xf]
    %v716 = vld [vmem:[%s41] sm:$0x1]
    %v718 = vperm.slane %v716, 0
    %v724 = vunpack.c.l.b16 %v712
    %v725 = vunpack.c.l.b16 %v713
    %v726 = vunpack.c.l.b16 %v714
    %v727 = vunpack.c.l.b16 %v715
    %v728 = vpack.c.b16 %v725, %v724
    %v729 = vpack.c.b16 %v727, %v726
    %v733 = vsel %vm451, %v708, 0
    %v736 = vsel %vm451, %v709, 0
    %v739 = vsel %vm451, %v710, 0
    %v742 = vsel %vm451, %v711, 0
    %744 = vmatpush.bf16.msra.mxu0 0
    %745 = vmatpush.bf16.msra.mxu0 0
    %746 = vmatpush.bf16.msra.mxu0 0
    %747 = vmatpush.bf16.msra.mxu0 0
    %748 = vmatpush.bf16.msra.mxu0 0
    %749 = vmatpush.bf16.msra.mxu0 0
    %750 = vmatpush.bf16.msra.mxu0 %v729
    %751 = vmatpush.bf16.msra.mxu0 %v728
    %752 = vmatmul.bf16.gmra.mxu0 %v733
    %v753 = vpop.f32.mrf.mxu0
    %v754 = vadd.f32 %v718, %v753
    %v755 = vpop.f32.mrf.mxu0
    %v756 = vadd.f32 %v718, %v755
    %757 = vmatmul.bf16.gmra.mxu0 %v736
    %v758 = vpop.f32.mrf.mxu0
    %v759 = vadd.f32 %v718, %v758
    %v760 = vpop.f32.mrf.mxu0
    %v761 = vadd.f32 %v718, %v760
    %762 = vmatmul.bf16.gmra.mxu0 %v739
    %v763 = vpop.f32.mrf.mxu0
    %v764 = vadd.f32 %v718, %v763
    %v765 = vpop.f32.mrf.mxu0
    %v766 = vadd.f32 %v718, %v765
    %767 = vmatmul.bf16.gmra.mxu0 %v742
    %v768 = vpop.f32.mrf.mxu0
    %v769 = vadd.f32 %v718, %v768
    %v770 = vpop.f32.mrf.mxu0
    %v771 = vadd.f32 %v718, %v770
    %772 = vdwg.mxu0
    %v773 = vld [vmem:[%s43] sm:$0x1]
    %v774 = vld [vmem:[%s45] sm:$0x1]
    %v775 = vsel %vm451, %v754, 0.0
    %776 = vadd.xlane.f32.xlu0 %v775
    %v777 = vpop.xlane.xlu0 %776
    %v778 = vsel %vm451, %v756, 0.0
    %779 = vadd.xlane.f32.xlu0 %v778
    %v780 = vpop.xlane.xlu0 %779
    %v781 = vsel %vm451, %v759, 0.0
    %782 = vadd.xlane.f32.xlu0 %v781
    %v783 = vpop.xlane.xlu0 %782
    %v784 = vsel %vm451, %v761, 0.0
    %785 = vadd.xlane.f32.xlu0 %v784
    %v786 = vpop.xlane.xlu0 %785
    %v787 = vsel %vm451, %v764, 0.0
    %788 = vadd.xlane.f32.xlu0 %v787
    %v789 = vpop.xlane.xlu0 %788
    %v790 = vsel %vm451, %v766, 0.0
    %791 = vadd.xlane.f32.xlu0 %v790
    %v792 = vpop.xlane.xlu0 %791
    %v793 = vsel %vm451, %v769, 0.0
    %794 = vadd.xlane.f32.xlu0 %v793
    %v795 = vpop.xlane.xlu0 %794
    %v796 = vsel %vm451, %v771, 0.0
    %797 = vadd.xlane.f32.xlu0 %v796
    %v798 = vpop.xlane.xlu0 %797
    %v799 = vmul.f32 %v777, %v525
    %v800 = vmul.f32 %v780, %v525
    %v801 = vmul.f32 %v783, %v525
    %v802 = vmul.f32 %v786, %v525
    %v803 = vmul.f32 %v789, %v525
    %v804 = vmul.f32 %v792, %v525
    %v805 = vmul.f32 %v795, %v525
    %v806 = vmul.f32 %v798, %v525
    %v807 = vsub.f32 %v754, %v799
    %v808 = vsub.f32 %v756, %v800
    %v809 = vsub.f32 %v759, %v801
    %v810 = vsub.f32 %v761, %v802
    %v811 = vsub.f32 %v764, %v803
    %v812 = vsub.f32 %v766, %v804
    %v813 = vsub.f32 %v769, %v805
    %v814 = vsub.f32 %v771, %v806
    %v815 = vmul.f32 %v807, %v807
    %v816 = vmul.f32 %v808, %v808
    %v817 = vmul.f32 %v809, %v809
    %v818 = vmul.f32 %v810, %v810
    %v819 = vmul.f32 %v811, %v811
    %v820 = vmul.f32 %v812, %v812
    %v821 = vmul.f32 %v813, %v813
    %v822 = vmul.f32 %v814, %v814
    %v823 = vsel %vm451, %v815, 0.0
    %824 = vadd.xlane.f32.xlu0 %v823
    %v825 = vpop.xlane.xlu0 %824
    %v826 = vsel %vm451, %v816, 0.0
    %827 = vadd.xlane.f32.xlu0 %v826
    %v828 = vpop.xlane.xlu0 %827
    %v829 = vsel %vm451, %v817, 0.0
    %830 = vadd.xlane.f32.xlu0 %v829
    %v831 = vpop.xlane.xlu0 %830
    %v832 = vsel %vm451, %v818, 0.0
    %833 = vadd.xlane.f32.xlu0 %v832
    %v834 = vpop.xlane.xlu0 %833
    %v835 = vsel %vm451, %v819, 0.0
    %836 = vadd.xlane.f32.xlu0 %v835
    %v837 = vpop.xlane.xlu0 %836
    %v838 = vsel %vm451, %v820, 0.0
    %839 = vadd.xlane.f32.xlu0 %v838
    %v840 = vpop.xlane.xlu0 %839
    %v841 = vsel %vm451, %v821, 0.0
    %842 = vadd.xlane.f32.xlu0 %v841
    %v843 = vpop.xlane.xlu0 %842
    %v844 = vsel %vm451, %v822, 0.0
    %845 = vadd.xlane.f32.xlu0 %v844
    %v846 = vpop.xlane.xlu0 %845
    %v847 = vmul.f32 %v825, %v525
    %v848 = vmul.f32 %v828, %v525
    %v849 = vmul.f32 %v831, %v525
    %v850 = vmul.f32 %v834, %v525
    %v851 = vmul.f32 %v837, %v525
    %v852 = vmul.f32 %v840, %v525
    %v853 = vmul.f32 %v843, %v525
    %v854 = vmul.f32 %v846, %v525
    %v855 = vadd.f32 %v847, 1e-05
    %v856 = vadd.f32 %v848, 1e-05
    %v857 = vadd.f32 %v849, 1e-05
    %v858 = vadd.f32 %v850, 1e-05
    %v859 = vadd.f32 %v851, 1e-05
    %v860 = vadd.f32 %v852, 1e-05
    %v861 = vadd.f32 %v853, 1e-05
    %v862 = vadd.f32 %v854, 1e-05
    %v863 = vrsqrt.pop %v855
    %v864 = vmul.f32 %v863, %v855
    %v865 = vmul.f32 %v864, %v863
    %v866 = vmul.f32 0.5, %v865
    %v867 = vsub.f32 1.5, %v866
    %v868 = vmul.f32 %v863, %v867
    %vm869 = vweird.f32 %v855
    %vm870 = vweird.f32 %v863
    %vm871 = vmor %vm869, %vm870
    %v872 = vsel %vm871, %v863, %v868
    %v873 = vrsqrt.pop %v856
    %v874 = vmul.f32 %v873, %v856
    %v875 = vmul.f32 %v874, %v873
    %v876 = vmul.f32 0.5, %v875
    %v877 = vsub.f32 1.5, %v876
    %v878 = vmul.f32 %v873, %v877
    %vm879 = vweird.f32 %v856
    %vm880 = vweird.f32 %v873
    %vm881 = vmor %vm879, %vm880
    %v882 = vsel %vm881, %v873, %v878
    %v883 = vrsqrt.pop %v857
    %v884 = vmul.f32 %v883, %v857
    %v885 = vmul.f32 %v884, %v883
    %v886 = vmul.f32 0.5, %v885
    %v887 = vsub.f32 1.5, %v886
    %v888 = vmul.f32 %v883, %v887
    %vm889 = vweird.f32 %v857
    %vm890 = vweird.f32 %v883
    %vm891 = vmor %vm889, %vm890
    %v892 = vsel %vm891, %v883, %v888
    %v893 = vrsqrt.pop %v858
    %v894 = vmul.f32 %v893, %v858
    %v895 = vmul.f32 %v894, %v893
    %v896 = vmul.f32 0.5, %v895
    %v897 = vsub.f32 1.5, %v896
    %v898 = vmul.f32 %v893, %v897
    %vm899 = vweird.f32 %v858
    %vm900 = vweird.f32 %v893
    %vm901 = vmor %vm899, %vm900
    %v902 = vsel %vm901, %v893, %v898
    %v903 = vrsqrt.pop %v859
    %v904 = vmul.f32 %v903, %v859
    %v905 = vmul.f32 %v904, %v903
    %v906 = vmul.f32 0.5, %v905
    %v907 = vsub.f32 1.5, %v906
    %v908 = vmul.f32 %v903, %v907
    %vm909 = vweird.f32 %v859
    %vm910 = vweird.f32 %v903
    %vm911 = vmor %vm909, %vm910
    %v912 = vsel %vm911, %v903, %v908
    %v913 = vrsqrt.pop %v860
    %v914 = vmul.f32 %v913, %v860
    %v915 = vmul.f32 %v914, %v913
    %v916 = vmul.f32 0.5, %v915
    %v917 = vsub.f32 1.5, %v916
    %v918 = vmul.f32 %v913, %v917
    %vm919 = vweird.f32 %v860
    %vm920 = vweird.f32 %v913
    %vm921 = vmor %vm919, %vm920
    %v922 = vsel %vm921, %v913, %v918
    %v923 = vrsqrt.pop %v861
    %v924 = vmul.f32 %v923, %v861
    %v925 = vmul.f32 %v924, %v923
    %v926 = vmul.f32 0.5, %v925
    %v927 = vsub.f32 1.5, %v926
    %v928 = vmul.f32 %v923, %v927
    %vm929 = vweird.f32 %v861
    %vm930 = vweird.f32 %v923
    %vm931 = vmor %vm929, %vm930
    %v932 = vsel %vm931, %v923, %v928
    %v933 = vrsqrt.pop %v862
    %v934 = vmul.f32 %v933, %v862
    %v935 = vmul.f32 %v934, %v933
    %v936 = vmul.f32 0.5, %v935
    %v937 = vsub.f32 1.5, %v936
    %v938 = vmul.f32 %v933, %v937
    %vm939 = vweird.f32 %v862
    %vm940 = vweird.f32 %v933
    %vm941 = vmor %vm939, %vm940
    %v942 = vsel %vm941, %v933, %v938
    %v943 = vmul.f32 %v807, %v872
    %v944 = vmul.f32 %v808, %v882
    %v945 = vmul.f32 %v809, %v892
    %v946 = vmul.f32 %v810, %v902
    %v947 = vmul.f32 %v811, %v912
    %v948 = vmul.f32 %v812, %v922
    %v949 = vmul.f32 %v813, %v932
    %v950 = vmul.f32 %v814, %v942
    %v952 = vperm.slane %v773, 0
    %v954 = vmul.f32 %v943, %v952
    %v955 = vmul.f32 %v944, %v952
    %v956 = vmul.f32 %v945, %v952
    %v957 = vmul.f32 %v946, %v952
    %v958 = vmul.f32 %v947, %v952
    %v959 = vmul.f32 %v948, %v952
    %v960 = vmul.f32 %v949, %v952
    %v961 = vmul.f32 %v950, %v952
    %v963 = vperm.slane %v774, 0
    %v965 = vadd.f32 %v954, %v963
    %v966 = vadd.f32 %v955, %v963
    %v967 = vadd.f32 %v956, %v963
    %v968 = vadd.f32 %v957, %v963
    %v969 = vadd.f32 %v958, %v963
    %v970 = vadd.f32 %v959, %v963
    %v971 = vadd.f32 %v960, %v963
    %v972 = vadd.f32 %v961, %v963
    %v973 = vmax.f32 %v965, 0.0
    %v974 = vmax.f32 %v966, 0.0
    %v975 = vmax.f32 %v967, 0.0
    %v976 = vmax.f32 %v968, 0.0
    %v977 = vmax.f32 %v969, 0.0
    %v978 = vmax.f32 %v970, 0.0
    %v979 = vmax.f32 %v971, 0.0
    %v980 = vmax.f32 %v972, 0.0
    %v981 = vpack.c.bf16 %v974, %v973
    %v982 = vpack.c.bf16 %v976, %v975
    %v983 = vpack.c.bf16 %v978, %v977
    %v984 = vpack.c.bf16 %v980, %v979
    %v986 = vsel %vm451, %v339, 0
    %v989 = vsel %vm451, %v981, 0
    %v992 = vsel %vm451, %v982, 0
    %v995 = vsel %vm451, %v983, 0
    %v998 = vsel %vm451, %v984, 0
    %1000 = vmatpush.bf16.xpose.msra.mxu0 0
    %1001 = vmatpush.bf16.xpose.msra.mxu0 0
    %1002 = vmatpush.bf16.xpose.msra.mxu0 0
    %1003 = vmatpush.bf16.xpose.msra.mxu0 0
    %1004 = vmatpush.bf16.xpose.msra.mxu0 %v998
    %1005 = vmatpush.bf16.xpose.msra.mxu0 %v995
    %1006 = vmatpush.bf16.xpose.msra.mxu0 %v992
    %1007 = vmatpush.bf16.xpose.msra.mxu0 %v989
    %1008 = vmatmul.bf16.gmra.mxu0 %v986
    %v1009 = vpop.f32.mrf.mxu0
    %v1010 = vadd.f32 %v352, %v1009
    %v1011 = vpop.f32.mrf.mxu0
    %1012 = vdwg.mxu0
    %v1013 = vsel %vm385, %v1010, -inf
    %1014 = vmax.xlane.f32.xlu0 %v1013
    %v1015 = vpop.xlane.xlu0 %1014
    %v1016 = vsub.f32 %v1010, %v1015
    %v1017 = vmul.f32 %v1016, 1.442695
    %v1018 = vpow.pop %v1017
    %v1019 = vsel %vm385, %v1018, 0.0
    %1020 = vadd.xlane.f32.xlu0 %v1019
    %v1021 = vpop.xlane.xlu0 %1020
    %v1022 = vrcp.pop %v1021
    %v1023 = vmul.f32 %v1018, %v1022
    %v1024 = vadd.f32 %v1023, %v353
    %v1025 = vpack.c.bf16 %v1024, %v1024
    %v1027 = vsel %vm385, %v1025, 0
    %1029 = vmatpush.bf16.msra.mxu0 0
    %1030 = vmatpush.bf16.msra.mxu0 0
    %1031 = vmatpush.bf16.msra.mxu0 0
    %1032 = vmatpush.bf16.msra.mxu0 0
    %1033 = vmatpush.bf16.msra.mxu0 %v984
    %1034 = vmatpush.bf16.msra.mxu0 %v983
    %1035 = vmatpush.bf16.msra.mxu0 %v982
    %1036 = vmatpush.bf16.msra.mxu0 %v981
    %1037 = vmatmul.bf16.gmra.mxu0 %v1027
    %v1038 = vpop.f32.mrf.mxu0
    %v1039 = vadd.f32 0.0, %v1038
    %v1040 = vpop.f32.mrf.mxu0
    %1041 = vdwg.mxu0
    %v1042 = vpack.c.bf16 %v1039, %v1039
    %v1043 = vld [vmem:[%s47] sm:$0xf]
    %v1044 = vld [vmem:[%s47 + $0x4] sm:$0xf]
    %v1045 = vld [vmem:[%s47 + $0x8] sm:$0xf]
    %v1046 = vld [vmem:[%s47 + $0xc] sm:$0xf]
    %v1047 = vld [vmem:[%s49] sm:$0x1]
    %v1049 = vperm.slane %v1047, 0
    %v1055 = vunpack.c.l.b16 %v1043
    %v1056 = vunpack.c.l.b16 %v1044
    %v1057 = vunpack.c.l.b16 %v1045
    %v1058 = vunpack.c.l.b16 %v1046
    %v1059 = vpack.c.b16 %v1056, %v1055
    %v1060 = vpack.c.b16 %v1058, %v1057
    %v1064 = vsel %vm451, %v1042, 0
    %1066 = vmatpush.bf16.msra.mxu0 0
    %1067 = vmatpush.bf16.msra.mxu0 0
    %1068 = vmatpush.bf16.msra.mxu0 0
    %1069 = vmatpush.bf16.msra.mxu0 0
    %1070 = vmatpush.bf16.msra.mxu0 0
    %1071 = vmatpush.bf16.msra.mxu0 0
    %1072 = vmatpush.bf16.msra.mxu0 %v1060
    %1073 = vmatpush.bf16.msra.mxu0 %v1059
    %1074 = vmatmul.bf16.gmra.mxu0 %v1064
    %v1075 = vpop.f32.mrf.mxu0
    %v1076 = vadd.f32 %v1049, %v1075
    %v1077 = vpop.f32.mrf.mxu0
    %1078 = vdwg.mxu0
    %v1079 = vld [vmem:[%s51] sm:$0xf]
    %v1080 = vld [vmem:[%s51 + $0x4] sm:$0xf]
    %v1081 = vld [vmem:[%s51 + $0x8] sm:$0xf]
    %v1082 = vld [vmem:[%s51 + $0xc] sm:$0xf]
    %v1083 = vld [vmem:[%s53] sm:$0x1]
    %v1085 = vperm.slane %v1083, 0
    %v1091 = vunpack.c.l.b16 %v1079
    %v1092 = vunpack.c.l.b16 %v1080
    %v1093 = vunpack.c.l.b16 %v1081
    %v1094 = vunpack.c.l.b16 %v1082
    %v1095 = vpack.c.b16 %v1092, %v1091
    %v1096 = vpack.c.b16 %v1094, %v1093
    %v1100 = vsel %vm451, %v342, 0
    %1102 = vmatpush.bf16.msra.mxu0 0
    %1103 = vmatpush.bf16.msra.mxu0 0
    %1104 = vmatpush.bf16.msra.mxu0 0
    %1105 = vmatpush.bf16.msra.mxu0 0
    %1106 = vmatpush.bf16.msra.mxu0 0
    %1107 = vmatpush.bf16.msra.mxu0 0
    %1108 = vmatpush.bf16.msra.mxu0 %v1096
    %1109 = vmatpush.bf16.msra.mxu0 %v1095
    %1110 = vmatmul.bf16.gmra.mxu0 %v1100
    %v1111 = vpop.f32.mrf.mxu0
    %v1112 = vadd.f32 %v1085, %v1111
    %v1113 = vpop.f32.mrf.mxu0
    %v1114 = vadd.f32 %v1085, %v1113
    %1115 = vdwg.mxu0
    %v1116 = vld [vmem:[%s55] sm:$0xf]
    %v1117 = vld [vmem:[%s55 + $0x4] sm:$0xf]
    %v1118 = vld [vmem:[%s55 + $0x8] sm:$0xf]
    %v1119 = vld [vmem:[%s55 + $0xc] sm:$0xf]
    %v1120 = vld [vmem:[%s57] sm:$0x1]
    %v1122 = vperm.slane %v1120, 0
    %v1128 = vunpack.c.l.b16 %v1116
    %v1129 = vunpack.c.l.b16 %v1117
    %v1130 = vunpack.c.l.b16 %v1118
    %v1131 = vunpack.c.l.b16 %v1119
    %v1132 = vpack.c.b16 %v1129, %v1128
    %v1133 = vpack.c.b16 %v1131, %v1130
    %1136 = vmatpush.bf16.msra.mxu0 0
    %1137 = vmatpush.bf16.msra.mxu0 0
    %1138 = vmatpush.bf16.msra.mxu0 0
    %1139 = vmatpush.bf16.msra.mxu0 0
    %1140 = vmatpush.bf16.msra.mxu0 0
    %1141 = vmatpush.bf16.msra.mxu0 0
    %1142 = vmatpush.bf16.msra.mxu0 %v1133
    %1143 = vmatpush.bf16.msra.mxu0 %v1132
    %1144 = vmatmul.bf16.gmra.mxu0 %v1100
    %v1145 = vpop.f32.mrf.mxu0
    %v1146 = vadd.f32 %v1122, %v1145
    %v1147 = vpop.f32.mrf.mxu0
    %v1148 = vadd.f32 %v1122, %v1147
    %1149 = vdwg.mxu0
    %v1150 = vmul.f32 %v1112, %v343
    %v1151 = vmul.f32 %v1114, %v344
    %v1152 = vmul.f32 %v1112, %v345
    %v1153 = vmul.f32 %v1114, %v346
    %v1154 = vmul.f32 %v1112, %v347
    %v1155 = vmul.f32 %v1114, %v348
    %v1156 = vmul.f32 %v1112, %v349
    %v1157 = vmul.f32 %v1114, %v350
    %v1158 = vpack.c.bf16 %v1151, %v1150
    %v1159 = vpack.c.bf16 %v1153, %v1152
    %v1160 = vpack.c.bf16 %v1155, %v1154
    %v1161 = vpack.c.bf16 %v1157, %v1156
    %v1162 = vmul.f32 %v1146, %v343
    %v1163 = vmul.f32 %v1148, %v344
    %v1164 = vmul.f32 %v1146, %v345
    %v1165 = vmul.f32 %v1148, %v346
    %v1166 = vmul.f32 %v1146, %v347
    %v1167 = vmul.f32 %v1148, %v348
    %v1168 = vmul.f32 %v1146, %v349
    %v1169 = vmul.f32 %v1148, %v350
    %v1170 = vpack.c.bf16 %v1163, %v1162
    %v1171 = vpack.c.bf16 %v1165, %v1164
    %v1172 = vpack.c.bf16 %v1167, %v1166
    %v1173 = vpack.c.bf16 %v1169, %v1168
    %v1174 = vpack.c.bf16 %v1076, %v1076
    %v1176 = vsel %vm451, %v1174, 0
    %v1179 = vsel %vm451, %v1158, 0
    %v1182 = vsel %vm451, %v1159, 0
    %v1185 = vsel %vm451, %v1160, 0
    %v1188 = vsel %vm451, %v1161, 0
    %1190 = vmatpush.bf16.xpose.msra.mxu0 0
    %1191 = vmatpush.bf16.xpose.msra.mxu0 0
    %1192 = vmatpush.bf16.xpose.msra.mxu0 0
    %1193 = vmatpush.bf16.xpose.msra.mxu0 0
    %1194 = vmatpush.bf16.xpose.msra.mxu0 %v1188
    %1195 = vmatpush.bf16.xpose.msra.mxu0 %v1185
    %1196 = vmatpush.bf16.xpose.msra.mxu0 %v1182
    %1197 = vmatpush.bf16.xpose.msra.mxu0 %v1179
    %1198 = vmatmul.bf16.gmra.mxu0 %v1176
    %v1199 = vpop.f32.mrf.mxu0
    %v1200 = vadd.f32 0.0, %v1199
    %v1201 = vpop.f32.mrf.mxu0
    %1202 = vdwg.mxu0
    %v1203 = vmul.f32 %v1200, 0.35355338
    %v1204 = vadd.f32 %v1203, %v351
    %v1205 = vsel %vm385, %v1204, -inf
    %1206 = vmax.xlane.f32.xlu0 %v1205
    %v1207 = vpop.xlane.xlu0 %1206
    %v1208 = vsub.f32 %v1204, %v1207
    %v1209 = vmul.f32 %v1208, 1.442695
    %v1210 = vpow.pop %v1209
    %v1211 = vpack.c.bf16 %v1210, %v1210
    %v1220 = vunpack.c.l.b16 %v354
    %v1221 = vunpack.c.l.b16 %v355
    %v1222 = vunpack.c.l.b16 %v356
    %v1223 = vunpack.c.l.b16 %v357
    %v1224 = vunpack.c.l.b16 %v358
    %v1225 = vunpack.c.l.b16 %v359
    %v1226 = vunpack.c.l.b16 %v360
    %v1227 = vunpack.c.l.b16 %v361
    %v1228 = vpack.c.b16 %v1221, %v1220
    %v1229 = vpack.c.b16 %v1223, %v1222
    %v1230 = vpack.c.b16 %v1225, %v1224
    %v1231 = vpack.c.b16 %v1227, %v1226
    %v1237 = vsel %vm385, %v1211, 0
    %1239 = vmatpush.bf16.msra.mxu0 0
    %1240 = vmatpush.bf16.msra.mxu0 0
    %1241 = vmatpush.bf16.msra.mxu0 0
    %1242 = vmatpush.bf16.msra.mxu0 0
    %1243 = vmatpush.bf16.msra.mxu0 %v1231
    %1244 = vmatpush.bf16.msra.mxu0 %v1230
    %1245 = vmatpush.bf16.msra.mxu0 %v1229
    %1246 = vmatpush.bf16.msra.mxu0 %v1228
    %1247 = vmatmul.bf16.gmra.mxu0 %v1237
    %v1248 = vpop.f32.mrf.mxu0
    %v1249 = vadd.f32 0.0, %v1248
    %v1250 = vpop.f32.mrf.mxu0
    %1251 = vdwg.mxu0
    %v1252 = vmax.f32 %v1249, 1e-30
    %v1253 = vrcp.pop %v1252
    %v1254 = vmul.f32 %v1210, %v1253
    %v1255 = vpack.c.bf16 %v1254, %v1254
    %v1257 = vsel %vm385, %v1255, 0
    %1259 = vmatpush.bf16.msra.mxu0 0
    %1260 = vmatpush.bf16.msra.mxu0 0
    %1261 = vmatpush.bf16.msra.mxu0 0
    %1262 = vmatpush.bf16.msra.mxu0 0
    %1263 = vmatpush.bf16.msra.mxu0 %v1173
    %1264 = vmatpush.bf16.msra.mxu0 %v1172
    %1265 = vmatpush.bf16.msra.mxu0 %v1171
    %1266 = vmatpush.bf16.msra.mxu0 %v1170
    %1267 = vmatmul.bf16.gmra.mxu0 %v1257
    %v1268 = vpop.f32.mrf.mxu0
    %v1269 = vadd.f32 0.0, %v1268
    %v1270 = vpop.f32.mrf.mxu0
    %1271 = vdwg.mxu0
    %v1280 = vunpack.c.l.b16 %v362
    %v1281 = vunpack.c.l.b16 %v363
    %v1282 = vunpack.c.l.b16 %v364
    %v1283 = vunpack.c.l.b16 %v365
    %v1284 = vunpack.c.l.b16 %v366
    %v1285 = vunpack.c.l.b16 %v367
    %v1286 = vunpack.c.l.b16 %v368
    %v1287 = vunpack.c.l.b16 %v369
    %v1288 = vpack.c.b16 %v1281, %v1280
    %v1289 = vpack.c.b16 %v1283, %v1282
    %v1290 = vpack.c.b16 %v1285, %v1284
    %v1291 = vpack.c.b16 %v1287, %v1286
    %1296 = vmatpush.bf16.msra.mxu0 0
    %1297 = vmatpush.bf16.msra.mxu0 0
    %1298 = vmatpush.bf16.msra.mxu0 0
    %1299 = vmatpush.bf16.msra.mxu0 0
    %1300 = vmatpush.bf16.msra.mxu0 %v1291
    %1301 = vmatpush.bf16.msra.mxu0 %v1290
    %1302 = vmatpush.bf16.msra.mxu0 %v1289
    %1303 = vmatpush.bf16.msra.mxu0 %v1288
    %1304 = vmatmul.bf16.gmra.mxu0 %v1257
    %v1305 = vpop.f32.mrf.mxu0
    %v1306 = vadd.f32 0.0, %v1305
    %v1307 = vpop.f32.mrf.mxu0
    %1308 = vdwg.mxu0
    %v1309 = vmul.f32 %v1306, 0.25
    %v1310 = vpack.c.bf16 %v1269, %v1269
    %v1311 = vld [vmem:[%s59] sm:$0xf]
    %v1312 = vld [vmem:[%s59 + $0x4] sm:$0xf]
    %v1313 = vld [vmem:[%s59 + $0x8] sm:$0xf]
    %v1314 = vld [vmem:[%s59 + $0xc] sm:$0xf]
    %v1315 = vld [vmem:[%s61] sm:$0x1]
    %v1317 = vperm.slane %v1315, 0
    %v1323 = vunpack.c.l.b16 %v1311
    %v1324 = vunpack.c.l.b16 %v1312
    %v1325 = vunpack.c.l.b16 %v1313
    %v1326 = vunpack.c.l.b16 %v1314
    %v1327 = vpack.c.b16 %v1324, %v1323
    %v1328 = vpack.c.b16 %v1326, %v1325
    %v1332 = vsel %vm451, %v1310, 0
    %1334 = vmatpush.bf16.msra.mxu0 0
    %1335 = vmatpush.bf16.msra.mxu0 0
    %1336 = vmatpush.bf16.msra.mxu0 0
    %1337 = vmatpush.bf16.msra.mxu0 0
    %1338 = vmatpush.bf16.msra.mxu0 0
    %1339 = vmatpush.bf16.msra.mxu0 0
    %1340 = vmatpush.bf16.msra.mxu0 %v1328
    %1341 = vmatpush.bf16.msra.mxu0 %v1327
    %1342 = vmatmul.bf16.gmra.mxu0 %v1332
    %v1343 = vpop.f32.mrf.mxu0
    %v1344 = vadd.f32 %v1317, %v1343
    %v1345 = vpop.f32.mrf.mxu0
    %1346 = vdwg.mxu0
    %v1347 = vld [vmem:[%s63] sm:$0x1]
    %v1348 = vld [vmem:[%s65] sm:$0x1]
    %v1349 = vsel %vm451, %v1344, 0.0
    %1350 = vadd.xlane.f32.xlu0 %v1349
    %v1351 = vpop.xlane.xlu0 %1350
    %v1352 = vmul.f32 %v1351, %v525
    %v1353 = vsub.f32 %v1344, %v1352
    %v1354 = vmul.f32 %v1353, %v1353
    %v1355 = vsel %vm451, %v1354, 0.0
    %1356 = vadd.xlane.f32.xlu0 %v1355
    %v1357 = vpop.xlane.xlu0 %1356
    %v1358 = vmul.f32 %v1357, %v525
    %v1359 = vadd.f32 %v1358, 1e-05
    %v1360 = vrsqrt.pop %v1359
    %v1361 = vmul.f32 %v1360, %v1359
    %v1362 = vmul.f32 %v1361, %v1360
    %v1363 = vmul.f32 0.5, %v1362
    %v1364 = vsub.f32 1.5, %v1363
    %v1365 = vmul.f32 %v1360, %v1364
    %vm1366 = vweird.f32 %v1359
    %vm1367 = vweird.f32 %v1360
    %vm1368 = vmor %vm1366, %vm1367
    %v1369 = vsel %vm1368, %v1360, %v1365
    %v1370 = vmul.f32 %v1353, %v1369
    %v1372 = vperm.slane %v1347, 0
    %v1374 = vmul.f32 %v1370, %v1372
    %v1376 = vperm.slane %v1348, 0
    %v1378 = vadd.f32 %v1374, %v1376
    %v1379 = vpack.c.bf16 %v1378, %v1378
    %v1380 = vld [vmem:[%s67] sm:$0xf]
    %v1381 = vld [vmem:[%s67 + $0x4] sm:$0xf]
    %v1382 = vld [vmem:[%s67 + $0x8] sm:$0xf]
    %v1383 = vld [vmem:[%s67 + $0xc] sm:$0xf]
    %v1384 = vld [vmem:[%s69] sm:$0x1]
    %v1386 = vperm.slane %v1384, 0
    %v1392 = vunpack.c.l.b16 %v1380
    %v1393 = vunpack.c.l.b16 %v1381
    %v1394 = vunpack.c.l.b16 %v1382
    %v1395 = vunpack.c.l.b16 %v1383
    %v1396 = vpack.c.b16 %v1393, %v1392
    %v1397 = vpack.c.b16 %v1395, %v1394
    %v1401 = vsel %vm451, %v1379, 0
    %1403 = vmatpush.bf16.msra.mxu0 0
    %1404 = vmatpush.bf16.msra.mxu0 0
    %1405 = vmatpush.bf16.msra.mxu0 0
    %1406 = vmatpush.bf16.msra.mxu0 0
    %1407 = vmatpush.bf16.msra.mxu0 0
    %1408 = vmatpush.bf16.msra.mxu0 0
    %1409 = vmatpush.bf16.msra.mxu0 %v1397
    %1410 = vmatpush.bf16.msra.mxu0 %v1396
    %1411 = vmatmul.bf16.gmra.mxu0 %v1401
    %v1412 = vpop.f32.mrf.mxu0
    %v1413 = vadd.f32 %v1386, %v1412
    %v1414 = vpop.f32.mrf.mxu0
    %1415 = vdwg.mxu0
    %v1416 = vmax.f32 %v1413, 0.0
    %v1417 = vpack.c.bf16 %v1416, %v1416
    %v1418 = vld [vmem:[%s71] sm:$0xf]
    %v1419 = vld [vmem:[%s71 + $0x4] sm:$0xf]
    %v1420 = vld [vmem:[%s71 + $0x8] sm:$0xf]
    %v1421 = vld [vmem:[%s71 + $0xc] sm:$0xf]
    %v1422 = vld [vmem:[%s71 + $0x10] sm:$0xf]
    %v1423 = vld [vmem:[%s71 + $0x14] sm:$0xf]
    %v1424 = vld [vmem:[%s71 + $0x18] sm:$0xf]
    %v1425 = vld [vmem:[%s71 + $0x1c] sm:$0xf]
    %v1426 = vld [vmem:[%s73] sm:$0x1]
    %v1428 = vperm.slane %v1426, 0
    %v1438 = vunpack.c.l.b16 %v1418
    %v1439 = vunpack.c.l.b16 %v1419
    %v1440 = vunpack.c.l.b16 %v1420
    %v1441 = vunpack.c.l.b16 %v1421
    %v1442 = vunpack.c.l.b16 %v1422
    %v1443 = vunpack.c.l.b16 %v1423
    %v1444 = vunpack.c.l.b16 %v1424
    %v1445 = vunpack.c.l.b16 %v1425
    %v1446 = vpack.c.b16 %v1439, %v1438
    %v1447 = vpack.c.b16 %v1441, %v1440
    %v1448 = vpack.c.b16 %v1443, %v1442
    %v1449 = vpack.c.b16 %v1445, %v1444
    %v1455 = vsel %vm385, %v1417, 0
    %1457 = vmatpush.bf16.msra.mxu0 0
    %1458 = vmatpush.bf16.msra.mxu0 0
    %1459 = vmatpush.bf16.msra.mxu0 0
    %1460 = vmatpush.bf16.msra.mxu0 0
    %1461 = vmatpush.bf16.msra.mxu0 %v1449
    %1462 = vmatpush.bf16.msra.mxu0 %v1448
    %1463 = vmatpush.bf16.msra.mxu0 %v1447
    %1464 = vmatpush.bf16.msra.mxu0 %v1446
    %1465 = vmatmul.bf16.gmra.mxu0 %v1455
    %v1466 = vpop.f32.mrf.mxu0
    %v1467 = vadd.f32 %v1428, %v1466
    %v1468 = vpop.f32.mrf.mxu0
    %1469 = vdwg.mxu0
    %v1470 = vadd.f32 %v1378, %v1467
    %v1471 = vld [vmem:[%s75] sm:$0x1]
    %v1472 = vld [vmem:[%s77] sm:$0x1]
    %v1473 = vsel %vm451, %v1470, 0.0
    %1474 = vadd.xlane.f32.xlu0 %v1473
    %v1475 = vpop.xlane.xlu0 %1474
    %v1476 = vmul.f32 %v1475, %v525
    %v1477 = vsub.f32 %v1470, %v1476
    %v1478 = vmul.f32 %v1477, %v1477
    %v1479 = vsel %vm451, %v1478, 0.0
    %1480 = vadd.xlane.f32.xlu0 %v1479
    %v1481 = vpop.xlane.xlu0 %1480
    %v1482 = vmul.f32 %v1481, %v525
    %v1483 = vadd.f32 %v1482, 1e-05
    %v1484 = vrsqrt.pop %v1483
    %v1485 = vmul.f32 %v1484, %v1483
    %v1486 = vmul.f32 %v1485, %v1484
    %v1487 = vmul.f32 0.5, %v1486
    %v1488 = vsub.f32 1.5, %v1487
    %v1489 = vmul.f32 %v1484, %v1488
    %vm1490 = vweird.f32 %v1483
    %vm1491 = vweird.f32 %v1484
    %vm1492 = vmor %vm1490, %vm1491
    %v1493 = vsel %vm1492, %v1484, %v1489
    %v1494 = vmul.f32 %v1477, %v1493
    %v1496 = vperm.slane %v1471, 0
    %v1498 = vmul.f32 %v1494, %v1496
    %v1500 = vperm.slane %v1472, 0
    %v1502 = vadd.f32 %v1498, %v1500
    %v1503 = vpack.c.bf16 %v1502, %v1502
    %vm1504 = vcmask 64512
    %v1506 = vsel %vm1504, %v370, 0
    %vm1508 = vcmask 1043456
    %v1510 = vsel %vm1508, %v1503, 0
    %1512 = vmatpush.bf16.msra.mxu0 0
    %1513 = vmatpush.bf16.msra.mxu0 0
    %1514 = vmatpush.bf16.msra.mxu0 0
    %1515 = vmatpush.bf16.msra.mxu0 0
    %1516 = vmatpush.bf16.msra.mxu0 0
    %1517 = vmatpush.bf16.msra.mxu0 0
    %1518 = vmatpush.bf16.msra.mxu0 0
    %1519 = vmatpush.bf16.msra.mxu0 %v1510
    %1520 = vmatmul.bf16.gmra.mxu0 %v1506
    %v1521 = vpop.f32.mrf.mxu0
    %v1522 = vadd.f32 0.0, %v1521
    %v1523 = vpop.f32.mrf.mxu0
    %1524 = vdwg.mxu0
    %v1525 = vpack.c.bf16 %v1522, %v1522
    %v1526 = vld [vmem:[%s79] sm:$0xf]
    %v1527 = vld [vmem:[%s79 + $0x4] sm:$0xf]
    %v1528 = vld [vmem:[%s79 + $0x8] sm:$0xf]
    %v1529 = vld [vmem:[%s79 + $0xc] sm:$0xf]
    %v1530 = vld [vmem:[%s81] sm:$0x1]
    %v1532 = vperm.slane %v1530, 0
    %v1538 = vunpack.c.l.b16 %v1526
    %v1539 = vunpack.c.l.b16 %v1527
    %v1540 = vunpack.c.l.b16 %v1528
    %v1541 = vunpack.c.l.b16 %v1529
    %v1542 = vpack.c.b16 %v1539, %v1538
    %v1543 = vpack.c.b16 %v1541, %v1540
    %v1547 = vsel %vm451, %v1525, 0
    %1549 = vmatpush.bf16.msra.mxu0 0
    %1550 = vmatpush.bf16.msra.mxu0 0
    %1551 = vmatpush.bf16.msra.mxu0 0
    %1552 = vmatpush.bf16.msra.mxu0 0
    %1553 = vmatpush.bf16.msra.mxu0 0
    %1554 = vmatpush.bf16.msra.mxu0 0
    %1555 = vmatpush.bf16.msra.mxu0 %v1543
    %1556 = vmatpush.bf16.msra.mxu0 %v1542
    %1557 = vmatmul.bf16.gmra.mxu0 %v1547
    %v1558 = vpop.f32.mrf.mxu0
    %v1559 = vadd.f32 %v1532, %v1558
    %v1560 = vpop.f32.mrf.mxu0
    %1561 = vdwg.mxu0
    %v1562 = vadd.f32 %v1559, 0.0
    %s1563 = sld [smem:[#allocation2 + $0x1]]
    %v1564 = vstv %s1563
    %v1565 = vmul.f32 %v1564, %v973
    %v1566 = vmul.f32 %v1564, %v974
    %v1567 = vmul.f32 %v1564, %v975
    %v1568 = vmul.f32 %v1564, %v976
    %v1569 = vmul.f32 %v1564, %v977
    %v1570 = vmul.f32 %v1564, %v978
    %v1571 = vmul.f32 %v1564, %v979
    %v1572 = vmul.f32 %v1564, %v980
    %1573 = vmatpush.bf16.msra.mxu0 0
    %1574 = vmatpush.bf16.msra.mxu0 0
    %1575 = vmatpush.bf16.msra.mxu0 0
    %1576 = vmatpush.bf16.msra.mxu0 0
    %1577 = vmatpush.bf16.msra.mxu0 %v984
    %1578 = vmatpush.bf16.msra.mxu0 %v983
    %1579 = vmatpush.bf16.msra.mxu0 %v982
    %1580 = vmatpush.bf16.msra.mxu0 %v981
    %1581 = vmatmul.bf16.gmra.mxu0 %v387
    %v1582 = vpop.f32.mrf.mxu0
    %v1583 = vadd.f32 %v1565, %v1582
    %v1584 = vpop.f32.mrf.mxu0
    %v1585 = vadd.f32 %v1566, %v1584
    %1586 = vmatmul.bf16.gmra.mxu0 %v390
    %v1587 = vpop.f32.mrf.mxu0
    %v1588 = vadd.f32 %v1567, %v1587
    %v1589 = vpop.f32.mrf.mxu0
    %v1590 = vadd.f32 %v1568, %v1589
    %1591 = vmatmul.bf16.gmra.mxu0 %v393
    %v1592 = vpop.f32.mrf.mxu0
    %v1593 = vadd.f32 %v1569, %v1592
    %v1594 = vpop.f32.mrf.mxu0
    %v1595 = vadd.f32 %v1570, %v1594
    %1596 = vmatmul.bf16.gmra.mxu0 %v396
    %v1597 = vpop.f32.mrf.mxu0
    %v1598 = vadd.f32 %v1571, %v1597
    %v1599 = vpop.f32.mrf.mxu0
    %v1600 = vadd.f32 %v1572, %v1599
    %1601 = vdwg.mxu0
    %v1602 = vpack.c.bf16 %v1585, %v1583
    %v1603 = vpack.c.bf16 %v1590, %v1588
    %v1604 = vpack.c.bf16 %v1595, %v1593
    %v1605 = vpack.c.bf16 %v1600, %v1598
    %s1606 = scalar_lea.vmem %s31, 16
    %v1607 = vld [vmem:[%s1606] sm:$0xf]
    %v1608 = vld [vmem:[%s1606 + $0x4] sm:$0xf]
    %v1609 = vld [vmem:[%s1606 + $0x8] sm:$0xf]
    %v1610 = vld [vmem:[%s1606 + $0xc] sm:$0xf]
    %s1611 = scalar_lea.vmem %s33, 1
    %v1612 = vld [vmem:[%s1611] sm:$0x1]
    %v1614 = vperm.slane %v1612, 0
    %v1620 = vunpack.c.l.b16 %v1607
    %v1621 = vunpack.c.l.b16 %v1608
    %v1622 = vunpack.c.l.b16 %v1609
    %v1623 = vunpack.c.l.b16 %v1610
    %v1624 = vpack.c.b16 %v1621, %v1620
    %v1625 = vpack.c.b16 %v1623, %v1622
    %v1629 = vsel %vm451, %v1602, 0
    %v1632 = vsel %vm451, %v1603, 0
    %v1635 = vsel %vm451, %v1604, 0
    %v1638 = vsel %vm451, %v1605, 0
    %1640 = vmatpush.bf16.msra.mxu0 0
    %1641 = vmatpush.bf16.msra.mxu0 0
    %1642 = vmatpush.bf16.msra.mxu0 0
    %1643 = vmatpush.bf16.msra.mxu0 0
    %1644 = vmatpush.bf16.msra.mxu0 0
    %1645 = vmatpush.bf16.msra.mxu0 0
    %1646 = vmatpush.bf16.msra.mxu0 %v1625
    %1647 = vmatpush.bf16.msra.mxu0 %v1624
    %1648 = vmatmul.bf16.gmra.mxu0 %v1629
    %v1649 = vpop.f32.mrf.mxu0
    %v1650 = vadd.f32 %v1614, %v1649
    %v1651 = vpop.f32.mrf.mxu0
    %v1652 = vadd.f32 %v1614, %v1651
    %1653 = vmatmul.bf16.gmra.mxu0 %v1632
    %v1654 = vpop.f32.mrf.mxu0
    %v1655 = vadd.f32 %v1614, %v1654
    %v1656 = vpop.f32.mrf.mxu0
    %v1657 = vadd.f32 %v1614, %v1656
    %1658 = vmatmul.bf16.gmra.mxu0 %v1635
    %v1659 = vpop.f32.mrf.mxu0
    %v1660 = vadd.f32 %v1614, %v1659
    %v1661 = vpop.f32.mrf.mxu0
    %v1662 = vadd.f32 %v1614, %v1661
    %1663 = vmatmul.bf16.gmra.mxu0 %v1638
    %v1664 = vpop.f32.mrf.mxu0
    %v1665 = vadd.f32 %v1614, %v1664
    %v1666 = vpop.f32.mrf.mxu0
    %v1667 = vadd.f32 %v1614, %v1666
    %1668 = vdwg.mxu0
    %s1669 = scalar_lea.vmem %s35, 1
    %v1670 = vld [vmem:[%s1669] sm:$0x1]
    %s1671 = scalar_lea.vmem %s37, 1
    %v1672 = vld [vmem:[%s1671] sm:$0x1]
    %v1673 = vsel %vm451, %v1650, 0.0
    %1674 = vadd.xlane.f32.xlu0 %v1673
    %v1675 = vpop.xlane.xlu0 %1674
    %v1676 = vsel %vm451, %v1652, 0.0
    %1677 = vadd.xlane.f32.xlu0 %v1676
    %v1678 = vpop.xlane.xlu0 %1677
    %v1679 = vsel %vm451, %v1655, 0.0
    %1680 = vadd.xlane.f32.xlu0 %v1679
    %v1681 = vpop.xlane.xlu0 %1680
    %v1682 = vsel %vm451, %v1657, 0.0
    %1683 = vadd.xlane.f32.xlu0 %v1682
    %v1684 = vpop.xlane.xlu0 %1683
    %v1685 = vsel %vm451, %v1660, 0.0
    %1686 = vadd.xlane.f32.xlu0 %v1685
    %v1687 = vpop.xlane.xlu0 %1686
    %v1688 = vsel %vm451, %v1662, 0.0
    %1689 = vadd.xlane.f32.xlu0 %v1688
    %v1690 = vpop.xlane.xlu0 %1689
    %v1691 = vsel %vm451, %v1665, 0.0
    %1692 = vadd.xlane.f32.xlu0 %v1691
    %v1693 = vpop.xlane.xlu0 %1692
    %v1694 = vsel %vm451, %v1667, 0.0
    %1695 = vadd.xlane.f32.xlu0 %v1694
    %v1696 = vpop.xlane.xlu0 %1695
    %v1697 = vmul.f32 %v1675, %v525
    %v1698 = vmul.f32 %v1678, %v525
    %v1699 = vmul.f32 %v1681, %v525
    %v1700 = vmul.f32 %v1684, %v525
    %v1701 = vmul.f32 %v1687, %v525
    %v1702 = vmul.f32 %v1690, %v525
    %v1703 = vmul.f32 %v1693, %v525
    %v1704 = vmul.f32 %v1696, %v525
    %v1705 = vsub.f32 %v1650, %v1697
    %v1706 = vsub.f32 %v1652, %v1698
    %v1707 = vsub.f32 %v1655, %v1699
    %v1708 = vsub.f32 %v1657, %v1700
    %v1709 = vsub.f32 %v1660, %v1701
    %v1710 = vsub.f32 %v1662, %v1702
    %v1711 = vsub.f32 %v1665, %v1703
    %v1712 = vsub.f32 %v1667, %v1704
    %v1713 = vmul.f32 %v1705, %v1705
    %v1714 = vmul.f32 %v1706, %v1706
    %v1715 = vmul.f32 %v1707, %v1707
    %v1716 = vmul.f32 %v1708, %v1708
    %v1717 = vmul.f32 %v1709, %v1709
    %v1718 = vmul.f32 %v1710, %v1710
    %v1719 = vmul.f32 %v1711, %v1711
    %v1720 = vmul.f32 %v1712, %v1712
    %v1721 = vsel %vm451, %v1713, 0.0
    %1722 = vadd.xlane.f32.xlu0 %v1721
    %v1723 = vpop.xlane.xlu0 %1722
    %v1724 = vsel %vm451, %v1714, 0.0
    %1725 = vadd.xlane.f32.xlu0 %v1724
    %v1726 = vpop.xlane.xlu0 %1725
    %v1727 = vsel %vm451, %v1715, 0.0
    %1728 = vadd.xlane.f32.xlu0 %v1727
    %v1729 = vpop.xlane.xlu0 %1728
    %v1730 = vsel %vm451, %v1716, 0.0
    %1731 = vadd.xlane.f32.xlu0 %v1730
    %v1732 = vpop.xlane.xlu0 %1731
    %v1733 = vsel %vm451, %v1717, 0.0
    %1734 = vadd.xlane.f32.xlu0 %v1733
    %v1735 = vpop.xlane.xlu0 %1734
    %v1736 = vsel %vm451, %v1718, 0.0
    %1737 = vadd.xlane.f32.xlu0 %v1736
    %v1738 = vpop.xlane.xlu0 %1737
    %v1739 = vsel %vm451, %v1719, 0.0
    %1740 = vadd.xlane.f32.xlu0 %v1739
    %v1741 = vpop.xlane.xlu0 %1740
    %v1742 = vsel %vm451, %v1720, 0.0
    %1743 = vadd.xlane.f32.xlu0 %v1742
    %v1744 = vpop.xlane.xlu0 %1743
    %v1745 = vmul.f32 %v1723, %v525
    %v1746 = vmul.f32 %v1726, %v525
    %v1747 = vmul.f32 %v1729, %v525
    %v1748 = vmul.f32 %v1732, %v525
    %v1749 = vmul.f32 %v1735, %v525
    %v1750 = vmul.f32 %v1738, %v525
    %v1751 = vmul.f32 %v1741, %v525
    %v1752 = vmul.f32 %v1744, %v525
    %v1753 = vadd.f32 %v1745, 1e-05
    %v1754 = vadd.f32 %v1746, 1e-05
    %v1755 = vadd.f32 %v1747, 1e-05
    %v1756 = vadd.f32 %v1748, 1e-05
    %v1757 = vadd.f32 %v1749, 1e-05
    %v1758 = vadd.f32 %v1750, 1e-05
    %v1759 = vadd.f32 %v1751, 1e-05
    %v1760 = vadd.f32 %v1752, 1e-05
    %v1761 = vrsqrt.pop %v1753
    %v1762 = vmul.f32 %v1761, %v1753
    %v1763 = vmul.f32 %v1762, %v1761
    %v1764 = vmul.f32 0.5, %v1763
    %v1765 = vsub.f32 1.5, %v1764
    %v1766 = vmul.f32 %v1761, %v1765
    %vm1767 = vweird.f32 %v1753
    %vm1768 = vweird.f32 %v1761
    %vm1769 = vmor %vm1767, %vm1768
    %v1770 = vsel %vm1769, %v1761, %v1766
    %v1771 = vrsqrt.pop %v1754
    %v1772 = vmul.f32 %v1771, %v1754
    %v1773 = vmul.f32 %v1772, %v1771
    %v1774 = vmul.f32 0.5, %v1773
    %v1775 = vsub.f32 1.5, %v1774
    %v1776 = vmul.f32 %v1771, %v1775
    %vm1777 = vweird.f32 %v1754
    %vm1778 = vweird.f32 %v1771
    %vm1779 = vmor %vm1777, %vm1778
    %v1780 = vsel %vm1779, %v1771, %v1776
    %v1781 = vrsqrt.pop %v1755
    %v1782 = vmul.f32 %v1781, %v1755
    %v1783 = vmul.f32 %v1782, %v1781
    %v1784 = vmul.f32 0.5, %v1783
    %v1785 = vsub.f32 1.5, %v1784
    %v1786 = vmul.f32 %v1781, %v1785
    %vm1787 = vweird.f32 %v1755
    %vm1788 = vweird.f32 %v1781
    %vm1789 = vmor %vm1787, %vm1788
    %v1790 = vsel %vm1789, %v1781, %v1786
    %v1791 = vrsqrt.pop %v1756
    %v1792 = vmul.f32 %v1791, %v1756
    %v1793 = vmul.f32 %v1792, %v1791
    %v1794 = vmul.f32 0.5, %v1793
    %v1795 = vsub.f32 1.5, %v1794
    %v1796 = vmul.f32 %v1791, %v1795
    %vm1797 = vweird.f32 %v1756
    %vm1798 = vweird.f32 %v1791
    %vm1799 = vmor %vm1797, %vm1798
    %v1800 = vsel %vm1799, %v1791, %v1796
    %v1801 = vrsqrt.pop %v1757
    %v1802 = vmul.f32 %v1801, %v1757
    %v1803 = vmul.f32 %v1802, %v1801
    %v1804 = vmul.f32 0.5, %v1803
    %v1805 = vsub.f32 1.5, %v1804
    %v1806 = vmul.f32 %v1801, %v1805
    %vm1807 = vweird.f32 %v1757
    %vm1808 = vweird.f32 %v1801
    %vm1809 = vmor %vm1807, %vm1808
    %v1810 = vsel %vm1809, %v1801, %v1806
    %v1811 = vrsqrt.pop %v1758
    %v1812 = vmul.f32 %v1811, %v1758
    %v1813 = vmul.f32 %v1812, %v1811
    %v1814 = vmul.f32 0.5, %v1813
    %v1815 = vsub.f32 1.5, %v1814
    %v1816 = vmul.f32 %v1811, %v1815
    %vm1817 = vweird.f32 %v1758
    %vm1818 = vweird.f32 %v1811
    %vm1819 = vmor %vm1817, %vm1818
    %v1820 = vsel %vm1819, %v1811, %v1816
    %v1821 = vrsqrt.pop %v1759
    %v1822 = vmul.f32 %v1821, %v1759
    %v1823 = vmul.f32 %v1822, %v1821
    %v1824 = vmul.f32 0.5, %v1823
    %v1825 = vsub.f32 1.5, %v1824
    %v1826 = vmul.f32 %v1821, %v1825
    %vm1827 = vweird.f32 %v1759
    %vm1828 = vweird.f32 %v1821
    %vm1829 = vmor %vm1827, %vm1828
    %v1830 = vsel %vm1829, %v1821, %v1826
    %v1831 = vrsqrt.pop %v1760
    %v1832 = vmul.f32 %v1831, %v1760
    %v1833 = vmul.f32 %v1832, %v1831
    %v1834 = vmul.f32 0.5, %v1833
    %v1835 = vsub.f32 1.5, %v1834
    %v1836 = vmul.f32 %v1831, %v1835
    %vm1837 = vweird.f32 %v1760
    %vm1838 = vweird.f32 %v1831
    %vm1839 = vmor %vm1837, %vm1838
    %v1840 = vsel %vm1839, %v1831, %v1836
    %v1841 = vmul.f32 %v1705, %v1770
    %v1842 = vmul.f32 %v1706, %v1780
    %v1843 = vmul.f32 %v1707, %v1790
    %v1844 = vmul.f32 %v1708, %v1800
    %v1845 = vmul.f32 %v1709, %v1810
    %v1846 = vmul.f32 %v1710, %v1820
    %v1847 = vmul.f32 %v1711, %v1830
    %v1848 = vmul.f32 %v1712, %v1840
    %v1850 = vperm.slane %v1670, 0
    %v1852 = vmul.f32 %v1841, %v1850
    %v1853 = vmul.f32 %v1842, %v1850
    %v1854 = vmul.f32 %v1843, %v1850
    %v1855 = vmul.f32 %v1844, %v1850
    %v1856 = vmul.f32 %v1845, %v1850
    %v1857 = vmul.f32 %v1846, %v1850
    %v1858 = vmul.f32 %v1847, %v1850
    %v1859 = vmul.f32 %v1848, %v1850
    %v1861 = vperm.slane %v1672, 0
    %v1863 = vadd.f32 %v1852, %v1861
    %v1864 = vadd.f32 %v1853, %v1861
    %v1865 = vadd.f32 %v1854, %v1861
    %v1866 = vadd.f32 %v1855, %v1861
    %v1867 = vadd.f32 %v1856, %v1861
    %v1868 = vadd.f32 %v1857, %v1861
    %v1869 = vadd.f32 %v1858, %v1861
    %v1870 = vadd.f32 %v1859, %v1861
    %v1871 = vmax.f32 %v1863, 0.0
    %v1872 = vmax.f32 %v1864, 0.0
    %v1873 = vmax.f32 %v1865, 0.0
    %v1874 = vmax.f32 %v1866, 0.0
    %v1875 = vmax.f32 %v1867, 0.0
    %v1876 = vmax.f32 %v1868, 0.0
    %v1877 = vmax.f32 %v1869, 0.0
    %v1878 = vmax.f32 %v1870, 0.0
    %v1879 = vpack.c.bf16 %v1872, %v1871
    %v1880 = vpack.c.bf16 %v1874, %v1873
    %v1881 = vpack.c.bf16 %v1876, %v1875
    %v1882 = vpack.c.bf16 %v1878, %v1877
    %s1883 = scalar_lea.vmem %s39, 16
    %v1884 = vld [vmem:[%s1883] sm:$0xf]
    %v1885 = vld [vmem:[%s1883 + $0x4] sm:$0xf]
    %v1886 = vld [vmem:[%s1883 + $0x8] sm:$0xf]
    %v1887 = vld [vmem:[%s1883 + $0xc] sm:$0xf]
    %s1888 = scalar_lea.vmem %s41, 1
    %v1889 = vld [vmem:[%s1888] sm:$0x1]
    %v1891 = vperm.slane %v1889, 0
    %v1897 = vunpack.c.l.b16 %v1884
    %v1898 = vunpack.c.l.b16 %v1885
    %v1899 = vunpack.c.l.b16 %v1886
    %v1900 = vunpack.c.l.b16 %v1887
    %v1901 = vpack.c.b16 %v1898, %v1897
    %v1902 = vpack.c.b16 %v1900, %v1899
    %v1906 = vsel %vm451, %v1879, 0
    %v1909 = vsel %vm451, %v1880, 0
    %v1912 = vsel %vm451, %v1881, 0
    %v1915 = vsel %vm451, %v1882, 0
    %1917 = vmatpush.bf16.msra.mxu0 0
    %1918 = vmatpush.bf16.msra.mxu0 0
    %1919 = vmatpush.bf16.msra.mxu0 0
    %1920 = vmatpush.bf16.msra.mxu0 0
    %1921 = vmatpush.bf16.msra.mxu0 0
    %1922 = vmatpush.bf16.msra.mxu0 0
    %1923 = vmatpush.bf16.msra.mxu0 %v1902
    %1924 = vmatpush.bf16.msra.mxu0 %v1901
    %1925 = vmatmul.bf16.gmra.mxu0 %v1906
    %v1926 = vpop.f32.mrf.mxu0
    %v1927 = vadd.f32 %v1891, %v1926
    %v1928 = vpop.f32.mrf.mxu0
    %v1929 = vadd.f32 %v1891, %v1928
    %1930 = vmatmul.bf16.gmra.mxu0 %v1909
    %v1931 = vpop.f32.mrf.mxu0
    %v1932 = vadd.f32 %v1891, %v1931
    %v1933 = vpop.f32.mrf.mxu0
    %v1934 = vadd.f32 %v1891, %v1933
    %1935 = vmatmul.bf16.gmra.mxu0 %v1912
    %v1936 = vpop.f32.mrf.mxu0
    %v1937 = vadd.f32 %v1891, %v1936
    %v1938 = vpop.f32.mrf.mxu0
    %v1939 = vadd.f32 %v1891, %v1938
    %1940 = vmatmul.bf16.gmra.mxu0 %v1915
    %v1941 = vpop.f32.mrf.mxu0
    %v1942 = vadd.f32 %v1891, %v1941
    %v1943 = vpop.f32.mrf.mxu0
    %v1944 = vadd.f32 %v1891, %v1943
    %1945 = vdwg.mxu0
    %s1946 = scalar_lea.vmem %s43, 1
    %v1947 = vld [vmem:[%s1946] sm:$0x1]
    %s1948 = scalar_lea.vmem %s45, 1
    %v1949 = vld [vmem:[%s1948] sm:$0x1]
    %v1950 = vsel %vm451, %v1927, 0.0
    %1951 = vadd.xlane.f32.xlu0 %v1950
    %v1952 = vpop.xlane.xlu0 %1951
    %v1953 = vsel %vm451, %v1929, 0.0
    %1954 = vadd.xlane.f32.xlu0 %v1953
    %v1955 = vpop.xlane.xlu0 %1954
    %v1956 = vsel %vm451, %v1932, 0.0
    %1957 = vadd.xlane.f32.xlu0 %v1956
    %v1958 = vpop.xlane.xlu0 %1957
    %v1959 = vsel %vm451, %v1934, 0.0
    %1960 = vadd.xlane.f32.xlu0 %v1959
    %v1961 = vpop.xlane.xlu0 %1960
    %v1962 = vsel %vm451, %v1937, 0.0
    %1963 = vadd.xlane.f32.xlu0 %v1962
    %v1964 = vpop.xlane.xlu0 %1963
    %v1965 = vsel %vm451, %v1939, 0.0
    %1966 = vadd.xlane.f32.xlu0 %v1965
    %v1967 = vpop.xlane.xlu0 %1966
    %v1968 = vsel %vm451, %v1942, 0.0
    %1969 = vadd.xlane.f32.xlu0 %v1968
    %v1970 = vpop.xlane.xlu0 %1969
    %v1971 = vsel %vm451, %v1944, 0.0
    %1972 = vadd.xlane.f32.xlu0 %v1971
    %v1973 = vpop.xlane.xlu0 %1972
    %v1974 = vmul.f32 %v1952, %v525
    %v1975 = vmul.f32 %v1955, %v525
    %v1976 = vmul.f32 %v1958, %v525
    %v1977 = vmul.f32 %v1961, %v525
    %v1978 = vmul.f32 %v1964, %v525
    %v1979 = vmul.f32 %v1967, %v525
    %v1980 = vmul.f32 %v1970, %v525
    %v1981 = vmul.f32 %v1973, %v525
    %v1982 = vsub.f32 %v1927, %v1974
    %v1983 = vsub.f32 %v1929, %v1975
    %v1984 = vsub.f32 %v1932, %v1976
    %v1985 = vsub.f32 %v1934, %v1977
    %v1986 = vsub.f32 %v1937, %v1978
    %v1987 = vsub.f32 %v1939, %v1979
    %v1988 = vsub.f32 %v1942, %v1980
    %v1989 = vsub.f32 %v1944, %v1981
    %v1990 = vmul.f32 %v1982, %v1982
    %v1991 = vmul.f32 %v1983, %v1983
    %v1992 = vmul.f32 %v1984, %v1984
    %v1993 = vmul.f32 %v1985, %v1985
    %v1994 = vmul.f32 %v1986, %v1986
    %v1995 = vmul.f32 %v1987, %v1987
    %v1996 = vmul.f32 %v1988, %v1988
    %v1997 = vmul.f32 %v1989, %v1989
    %v1998 = vsel %vm451, %v1990, 0.0
    %1999 = vadd.xlane.f32.xlu0 %v1998
    %v2000 = vpop.xlane.xlu0 %1999
    %v2001 = vsel %vm451, %v1991, 0.0
    %2002 = vadd.xlane.f32.xlu0 %v2001
    %v2003 = vpop.xlane.xlu0 %2002
    %v2004 = vsel %vm451, %v1992, 0.0
    %2005 = vadd.xlane.f32.xlu0 %v2004
    %v2006 = vpop.xlane.xlu0 %2005
    %v2007 = vsel %vm451, %v1993, 0.0
    %2008 = vadd.xlane.f32.xlu0 %v2007
    %v2009 = vpop.xlane.xlu0 %2008
    %v2010 = vsel %vm451, %v1994, 0.0
    %2011 = vadd.xlane.f32.xlu0 %v2010
    %v2012 = vpop.xlane.xlu0 %2011
    %v2013 = vsel %vm451, %v1995, 0.0
    %2014 = vadd.xlane.f32.xlu0 %v2013
    %v2015 = vpop.xlane.xlu0 %2014
    %v2016 = vsel %vm451, %v1996, 0.0
    %2017 = vadd.xlane.f32.xlu0 %v2016
    %v2018 = vpop.xlane.xlu0 %2017
    %v2019 = vsel %vm451, %v1997, 0.0
    %2020 = vadd.xlane.f32.xlu0 %v2019
    %v2021 = vpop.xlane.xlu0 %2020
    %v2022 = vmul.f32 %v2000, %v525
    %v2023 = vmul.f32 %v2003, %v525
    %v2024 = vmul.f32 %v2006, %v525
    %v2025 = vmul.f32 %v2009, %v525
    %v2026 = vmul.f32 %v2012, %v525
    %v2027 = vmul.f32 %v2015, %v525
    %v2028 = vmul.f32 %v2018, %v525
    %v2029 = vmul.f32 %v2021, %v525
    %v2030 = vadd.f32 %v2022, 1e-05
    %v2031 = vadd.f32 %v2023, 1e-05
    %v2032 = vadd.f32 %v2024, 1e-05
    %v2033 = vadd.f32 %v2025, 1e-05
    %v2034 = vadd.f32 %v2026, 1e-05
    %v2035 = vadd.f32 %v2027, 1e-05
    %v2036 = vadd.f32 %v2028, 1e-05
    %v2037 = vadd.f32 %v2029, 1e-05
    %v2038 = vrsqrt.pop %v2030
    %v2039 = vmul.f32 %v2038, %v2030
    %v2040 = vmul.f32 %v2039, %v2038
    %v2041 = vmul.f32 0.5, %v2040
    %v2042 = vsub.f32 1.5, %v2041
    %v2043 = vmul.f32 %v2038, %v2042
    %vm2044 = vweird.f32 %v2030
    %vm2045 = vweird.f32 %v2038
    %vm2046 = vmor %vm2044, %vm2045
    %v2047 = vsel %vm2046, %v2038, %v2043
    %v2048 = vrsqrt.pop %v2031
    %v2049 = vmul.f32 %v2048, %v2031
    %v2050 = vmul.f32 %v2049, %v2048
    %v2051 = vmul.f32 0.5, %v2050
    %v2052 = vsub.f32 1.5, %v2051
    %v2053 = vmul.f32 %v2048, %v2052
    %vm2054 = vweird.f32 %v2031
    %vm2055 = vweird.f32 %v2048
    %vm2056 = vmor %vm2054, %vm2055
    %v2057 = vsel %vm2056, %v2048, %v2053
    %v2058 = vrsqrt.pop %v2032
    %v2059 = vmul.f32 %v2058, %v2032
    %v2060 = vmul.f32 %v2059, %v2058
    %v2061 = vmul.f32 0.5, %v2060
    %v2062 = vsub.f32 1.5, %v2061
    %v2063 = vmul.f32 %v2058, %v2062
    %vm2064 = vweird.f32 %v2032
    %vm2065 = vweird.f32 %v2058
    %vm2066 = vmor %vm2064, %vm2065
    %v2067 = vsel %vm2066, %v2058, %v2063
    %v2068 = vrsqrt.pop %v2033
    %v2069 = vmul.f32 %v2068, %v2033
    %v2070 = vmul.f32 %v2069, %v2068
    %v2071 = vmul.f32 0.5, %v2070
    %v2072 = vsub.f32 1.5, %v2071
    %v2073 = vmul.f32 %v2068, %v2072
    %vm2074 = vweird.f32 %v2033
    %vm2075 = vweird.f32 %v2068
    %vm2076 = vmor %vm2074, %vm2075
    %v2077 = vsel %vm2076, %v2068, %v2073
    %v2078 = vrsqrt.pop %v2034
    %v2079 = vmul.f32 %v2078, %v2034
    %v2080 = vmul.f32 %v2079, %v2078
    %v2081 = vmul.f32 0.5, %v2080
    %v2082 = vsub.f32 1.5, %v2081
    %v2083 = vmul.f32 %v2078, %v2082
    %vm2084 = vweird.f32 %v2034
    %vm2085 = vweird.f32 %v2078
    %vm2086 = vmor %vm2084, %vm2085
    %v2087 = vsel %vm2086, %v2078, %v2083
    %v2088 = vrsqrt.pop %v2035
    %v2089 = vmul.f32 %v2088, %v2035
    %v2090 = vmul.f32 %v2089, %v2088
    %v2091 = vmul.f32 0.5, %v2090
    %v2092 = vsub.f32 1.5, %v2091
    %v2093 = vmul.f32 %v2088, %v2092
    %vm2094 = vweird.f32 %v2035
    %vm2095 = vweird.f32 %v2088
    %vm2096 = vmor %vm2094, %vm2095
    %v2097 = vsel %vm2096, %v2088, %v2093
    %v2098 = vrsqrt.pop %v2036
    %v2099 = vmul.f32 %v2098, %v2036
    %v2100 = vmul.f32 %v2099, %v2098
    %v2101 = vmul.f32 0.5, %v2100
    %v2102 = vsub.f32 1.5, %v2101
    %v2103 = vmul.f32 %v2098, %v2102
    %vm2104 = vweird.f32 %v2036
    %vm2105 = vweird.f32 %v2098
    %vm2106 = vmor %vm2104, %vm2105
    %v2107 = vsel %vm2106, %v2098, %v2103
    %v2108 = vrsqrt.pop %v2037
    %v2109 = vmul.f32 %v2108, %v2037
    %v2110 = vmul.f32 %v2109, %v2108
    %v2111 = vmul.f32 0.5, %v2110
    %v2112 = vsub.f32 1.5, %v2111
    %v2113 = vmul.f32 %v2108, %v2112
    %vm2114 = vweird.f32 %v2037
    %vm2115 = vweird.f32 %v2108
    %vm2116 = vmor %vm2114, %vm2115
    %v2117 = vsel %vm2116, %v2108, %v2113
    %v2118 = vmul.f32 %v1982, %v2047
    %v2119 = vmul.f32 %v1983, %v2057
    %v2120 = vmul.f32 %v1984, %v2067
    %v2121 = vmul.f32 %v1985, %v2077
    %v2122 = vmul.f32 %v1986, %v2087
    %v2123 = vmul.f32 %v1987, %v2097
    %v2124 = vmul.f32 %v1988, %v2107
    %v2125 = vmul.f32 %v1989, %v2117
    %v2127 = vperm.slane %v1947, 0
    %v2129 = vmul.f32 %v2118, %v2127
    %v2130 = vmul.f32 %v2119, %v2127
    %v2131 = vmul.f32 %v2120, %v2127
    %v2132 = vmul.f32 %v2121, %v2127
    %v2133 = vmul.f32 %v2122, %v2127
    %v2134 = vmul.f32 %v2123, %v2127
    %v2135 = vmul.f32 %v2124, %v2127
    %v2136 = vmul.f32 %v2125, %v2127
    %v2138 = vperm.slane %v1949, 0
    %v2140 = vadd.f32 %v2129, %v2138
    %v2141 = vadd.f32 %v2130, %v2138
    %v2142 = vadd.f32 %v2131, %v2138
    %v2143 = vadd.f32 %v2132, %v2138
    %v2144 = vadd.f32 %v2133, %v2138
    %v2145 = vadd.f32 %v2134, %v2138
    %v2146 = vadd.f32 %v2135, %v2138
    %v2147 = vadd.f32 %v2136, %v2138
    %v2148 = vmax.f32 %v2140, 0.0
    %v2149 = vmax.f32 %v2141, 0.0
    %v2150 = vmax.f32 %v2142, 0.0
    %v2151 = vmax.f32 %v2143, 0.0
    %v2152 = vmax.f32 %v2144, 0.0
    %v2153 = vmax.f32 %v2145, 0.0
    %v2154 = vmax.f32 %v2146, 0.0
    %v2155 = vmax.f32 %v2147, 0.0
    %v2156 = vpack.c.bf16 %v2149, %v2148
    %v2157 = vpack.c.bf16 %v2151, %v2150
    %v2158 = vpack.c.bf16 %v2153, %v2152
    %v2159 = vpack.c.bf16 %v2155, %v2154
    %v2161 = vsel %vm451, %v2156, 0
    %v2164 = vsel %vm451, %v2157, 0
    %v2167 = vsel %vm451, %v2158, 0
    %v2170 = vsel %vm451, %v2159, 0
    %2172 = vmatpush.bf16.xpose.msra.mxu0 0
    %2173 = vmatpush.bf16.xpose.msra.mxu0 0
    %2174 = vmatpush.bf16.xpose.msra.mxu0 0
    %2175 = vmatpush.bf16.xpose.msra.mxu0 0
    %2176 = vmatpush.bf16.xpose.msra.mxu0 %v2170
    %2177 = vmatpush.bf16.xpose.msra.mxu0 %v2167
    %2178 = vmatpush.bf16.xpose.msra.mxu0 %v2164
    %2179 = vmatpush.bf16.xpose.msra.mxu0 %v2161
    %2180 = vmatmul.bf16.gmra.mxu0 %v986
    %v2181 = vpop.f32.mrf.mxu0
    %v2182 = vadd.f32 %v352, %v2181
    %v2183 = vpop.f32.mrf.mxu0
    %2184 = vdwg.mxu0
    %v2185 = vsel %vm385, %v2182, -inf
    %2186 = vmax.xlane.f32.xlu0 %v2185
    %v2187 = vpop.xlane.xlu0 %2186
    %v2188 = vsub.f32 %v2182, %v2187
    %v2189 = vmul.f32 %v2188, 1.442695
    %v2190 = vpow.pop %v2189
    %v2191 = vsel %vm385, %v2190, 0.0
    %2192 = vadd.xlane.f32.xlu0 %v2191
    %v2193 = vpop.xlane.xlu0 %2192
    %v2194 = vrcp.pop %v2193
    %v2195 = vmul.f32 %v2190, %v2194
    %v2196 = vadd.f32 %v2195, %v353
    %v2197 = vpack.c.bf16 %v2196, %v2196
    %v2199 = vsel %vm385, %v2197, 0
    %2201 = vmatpush.bf16.msra.mxu0 0
    %2202 = vmatpush.bf16.msra.mxu0 0
    %2203 = vmatpush.bf16.msra.mxu0 0
    %2204 = vmatpush.bf16.msra.mxu0 0
    %2205 = vmatpush.bf16.msra.mxu0 %v2159
    %2206 = vmatpush.bf16.msra.mxu0 %v2158
    %2207 = vmatpush.bf16.msra.mxu0 %v2157
    %2208 = vmatpush.bf16.msra.mxu0 %v2156
    %2209 = vmatmul.bf16.gmra.mxu0 %v2199
    %v2210 = vpop.f32.mrf.mxu0
    %v2211 = vadd.f32 0.0, %v2210
    %v2212 = vpop.f32.mrf.mxu0
    %2213 = vdwg.mxu0
    %v2214 = vpack.c.bf16 %v2211, %v2211
    %s2215 = scalar_lea.vmem %s47, 16
    %v2216 = vld [vmem:[%s2215] sm:$0xf]
    %v2217 = vld [vmem:[%s2215 + $0x4] sm:$0xf]
    %v2218 = vld [vmem:[%s2215 + $0x8] sm:$0xf]
    %v2219 = vld [vmem:[%s2215 + $0xc] sm:$0xf]
    %s2220 = scalar_lea.vmem %s49, 1
    %v2221 = vld [vmem:[%s2220] sm:$0x1]
    %v2223 = vperm.slane %v2221, 0
    %v2229 = vunpack.c.l.b16 %v2216
    %v2230 = vunpack.c.l.b16 %v2217
    %v2231 = vunpack.c.l.b16 %v2218
    %v2232 = vunpack.c.l.b16 %v2219
    %v2233 = vpack.c.b16 %v2230, %v2229
    %v2234 = vpack.c.b16 %v2232, %v2231
    %v2238 = vsel %vm451, %v2214, 0
    %2240 = vmatpush.bf16.msra.mxu0 0
    %2241 = vmatpush.bf16.msra.mxu0 0
    %2242 = vmatpush.bf16.msra.mxu0 0
    %2243 = vmatpush.bf16.msra.mxu0 0
    %2244 = vmatpush.bf16.msra.mxu0 0
    %2245 = vmatpush.bf16.msra.mxu0 0
    %2246 = vmatpush.bf16.msra.mxu0 %v2234
    %2247 = vmatpush.bf16.msra.mxu0 %v2233
    %2248 = vmatmul.bf16.gmra.mxu0 %v2238
    %v2249 = vpop.f32.mrf.mxu0
    %v2250 = vadd.f32 %v2223, %v2249
    %v2251 = vpop.f32.mrf.mxu0
    %2252 = vdwg.mxu0
    %s2253 = scalar_lea.vmem %s51, 16
    %v2254 = vld [vmem:[%s2253] sm:$0xf]
    %v2255 = vld [vmem:[%s2253 + $0x4] sm:$0xf]
    %v2256 = vld [vmem:[%s2253 + $0x8] sm:$0xf]
    %v2257 = vld [vmem:[%s2253 + $0xc] sm:$0xf]
    %s2258 = scalar_lea.vmem %s53, 1
    %v2259 = vld [vmem:[%s2258] sm:$0x1]
    %v2261 = vperm.slane %v2259, 0
    %v2267 = vunpack.c.l.b16 %v2254
    %v2268 = vunpack.c.l.b16 %v2255
    %v2269 = vunpack.c.l.b16 %v2256
    %v2270 = vunpack.c.l.b16 %v2257
    %v2271 = vpack.c.b16 %v2268, %v2267
    %v2272 = vpack.c.b16 %v2270, %v2269
    %2275 = vmatpush.bf16.msra.mxu0 0
    %2276 = vmatpush.bf16.msra.mxu0 0
    %2277 = vmatpush.bf16.msra.mxu0 0
    %2278 = vmatpush.bf16.msra.mxu0 0
    %2279 = vmatpush.bf16.msra.mxu0 0
    %2280 = vmatpush.bf16.msra.mxu0 0
    %2281 = vmatpush.bf16.msra.mxu0 %v2272
    %2282 = vmatpush.bf16.msra.mxu0 %v2271
    %2283 = vmatmul.bf16.gmra.mxu0 %v1100
    %v2284 = vpop.f32.mrf.mxu0
    %v2285 = vadd.f32 %v2261, %v2284
    %v2286 = vpop.f32.mrf.mxu0
    %v2287 = vadd.f32 %v2261, %v2286
    %2288 = vdwg.mxu0
    %s2289 = scalar_lea.vmem %s55, 16
    %v2290 = vld [vmem:[%s2289] sm:$0xf]
    %v2291 = vld [vmem:[%s2289 + $0x4] sm:$0xf]
    %v2292 = vld [vmem:[%s2289 + $0x8] sm:$0xf]
    %v2293 = vld [vmem:[%s2289 + $0xc] sm:$0xf]
    %s2294 = scalar_lea.vmem %s57, 1
    %v2295 = vld [vmem:[%s2294] sm:$0x1]
    %v2297 = vperm.slane %v2295, 0
    %v2303 = vunpack.c.l.b16 %v2290
    %v2304 = vunpack.c.l.b16 %v2291
    %v2305 = vunpack.c.l.b16 %v2292
    %v2306 = vunpack.c.l.b16 %v2293
    %v2307 = vpack.c.b16 %v2304, %v2303
    %v2308 = vpack.c.b16 %v2306, %v2305
    %2311 = vmatpush.bf16.msra.mxu0 0
    %2312 = vmatpush.bf16.msra.mxu0 0
    %2313 = vmatpush.bf16.msra.mxu0 0
    %2314 = vmatpush.bf16.msra.mxu0 0
    %2315 = vmatpush.bf16.msra.mxu0 0
    %2316 = vmatpush.bf16.msra.mxu0 0
    %2317 = vmatpush.bf16.msra.mxu0 %v2308
    %2318 = vmatpush.bf16.msra.mxu0 %v2307
    %2319 = vmatmul.bf16.gmra.mxu0 %v1100
    %v2320 = vpop.f32.mrf.mxu0
    %v2321 = vadd.f32 %v2297, %v2320
    %v2322 = vpop.f32.mrf.mxu0
    %v2323 = vadd.f32 %v2297, %v2322
    %2324 = vdwg.mxu0
    %v2325 = vmul.f32 %v2285, %v343
    %v2326 = vmul.f32 %v2287, %v344
    %v2327 = vmul.f32 %v2285, %v345
    %v2328 = vmul.f32 %v2287, %v346
    %v2329 = vmul.f32 %v2285, %v347
    %v2330 = vmul.f32 %v2287, %v348
    %v2331 = vmul.f32 %v2285, %v349
    %v2332 = vmul.f32 %v2287, %v350
    %v2333 = vpack.c.bf16 %v2326, %v2325
    %v2334 = vpack.c.bf16 %v2328, %v2327
    %v2335 = vpack.c.bf16 %v2330, %v2329
    %v2336 = vpack.c.bf16 %v2332, %v2331
    %v2337 = vmul.f32 %v2321, %v343
    %v2338 = vmul.f32 %v2323, %v344
    %v2339 = vmul.f32 %v2321, %v345
    %v2340 = vmul.f32 %v2323, %v346
    %v2341 = vmul.f32 %v2321, %v347
    %v2342 = vmul.f32 %v2323, %v348
    %v2343 = vmul.f32 %v2321, %v349
    %v2344 = vmul.f32 %v2323, %v350
    %v2345 = vpack.c.bf16 %v2338, %v2337
    %v2346 = vpack.c.bf16 %v2340, %v2339
    %v2347 = vpack.c.bf16 %v2342, %v2341
    %v2348 = vpack.c.bf16 %v2344, %v2343
    %v2349 = vpack.c.bf16 %v2250, %v2250
    %v2351 = vsel %vm451, %v2349, 0
    %v2354 = vsel %vm451, %v2333, 0
    %v2357 = vsel %vm451, %v2334, 0
    %v2360 = vsel %vm451, %v2335, 0
    %v2363 = vsel %vm451, %v2336, 0
    %2365 = vmatpush.bf16.xpose.msra.mxu0 0
    %2366 = vmatpush.bf16.xpose.msra.mxu0 0
    %2367 = vmatpush.bf16.xpose.msra.mxu0 0
    %2368 = vmatpush.bf16.xpose.msra.mxu0 0
    %2369 = vmatpush.bf16.xpose.msra.mxu0 %v2363
    %2370 = vmatpush.bf16.xpose.msra.mxu0 %v2360
    %2371 = vmatpush.bf16.xpose.msra.mxu0 %v2357
    %2372 = vmatpush.bf16.xpose.msra.mxu0 %v2354
    %2373 = vmatmul.bf16.gmra.mxu0 %v2351
    %v2374 = vpop.f32.mrf.mxu0
    %v2375 = vadd.f32 0.0, %v2374
    %v2376 = vpop.f32.mrf.mxu0
    %2377 = vdwg.mxu0
    %v2378 = vmul.f32 %v2375, 0.35355338
    %v2379 = vadd.f32 %v2378, %v351
    %v2380 = vsel %vm385, %v2379, -inf
    %2381 = vmax.xlane.f32.xlu0 %v2380
    %v2382 = vpop.xlane.xlu0 %2381
    %v2383 = vsub.f32 %v2379, %v2382
    %v2384 = vmul.f32 %v2383, 1.442695
    %v2385 = vpow.pop %v2384
    %v2386 = vpack.c.bf16 %v2385, %v2385
    %v2388 = vsel %vm385, %v2386, 0
    %2390 = vmatpush.bf16.msra.mxu0 0
    %2391 = vmatpush.bf16.msra.mxu0 0
    %2392 = vmatpush.bf16.msra.mxu0 0
    %2393 = vmatpush.bf16.msra.mxu0 0
    %2394 = vmatpush.bf16.msra.mxu0 %v1231
    %2395 = vmatpush.bf16.msra.mxu0 %v1230
    %2396 = vmatpush.bf16.msra.mxu0 %v1229
    %2397 = vmatpush.bf16.msra.mxu0 %v1228
    %2398 = vmatmul.bf16.gmra.mxu0 %v2388
    %v2399 = vpop.f32.mrf.mxu0
    %v2400 = vadd.f32 0.0, %v2399
    %v2401 = vpop.f32.mrf.mxu0
    %2402 = vdwg.mxu0
    %v2403 = vmax.f32 %v2400, 1e-30
    %v2404 = vrcp.pop %v2403
    %v2405 = vmul.f32 %v2385, %v2404
    %v2406 = vpack.c.bf16 %v2405, %v2405
    %v2408 = vsel %vm385, %v2406, 0
    %2410 = vmatpush.bf16.msra.mxu0 0
    %2411 = vmatpush.bf16.msra.mxu0 0
    %2412 = vmatpush.bf16.msra.mxu0 0
    %2413 = vmatpush.bf16.msra.mxu0 0
    %2414 = vmatpush.bf16.msra.mxu0 %v2348
    %2415 = vmatpush.bf16.msra.mxu0 %v2347
    %2416 = vmatpush.bf16.msra.mxu0 %v2346
    %2417 = vmatpush.bf16.msra.mxu0 %v2345
    %2418 = vmatmul.bf16.gmra.mxu0 %v2408
    %v2419 = vpop.f32.mrf.mxu0
    %v2420 = vadd.f32 0.0, %v2419
    %v2421 = vpop.f32.mrf.mxu0
    %2422 = vdwg.mxu0
    %2423 = vmatpush.bf16.msra.mxu0 0
    %2424 = vmatpush.bf16.msra.mxu0 0
    %2425 = vmatpush.bf16.msra.mxu0 0
    %2426 = vmatpush.bf16.msra.mxu0 0
    %2427 = vmatpush.bf16.msra.mxu0 %v1291
    %2428 = vmatpush.bf16.msra.mxu0 %v1290
    %2429 = vmatpush.bf16.msra.mxu0 %v1289
    %2430 = vmatpush.bf16.msra.mxu0 %v1288
    %2431 = vmatmul.bf16.gmra.mxu0 %v2408
    %v2432 = vpop.f32.mrf.mxu0
    %v2433 = vadd.f32 0.0, %v2432
    %v2434 = vpop.f32.mrf.mxu0
    %2435 = vdwg.mxu0
    %v2436 = vmul.f32 %v2433, 0.25
    %v2437 = vpack.c.bf16 %v2420, %v2420
    %s2438 = scalar_lea.vmem %s59, 16
    %v2439 = vld [vmem:[%s2438] sm:$0xf]
    %v2440 = vld [vmem:[%s2438 + $0x4] sm:$0xf]
    %v2441 = vld [vmem:[%s2438 + $0x8] sm:$0xf]
    %v2442 = vld [vmem:[%s2438 + $0xc] sm:$0xf]
    %s2443 = scalar_lea.vmem %s61, 1
    %v2444 = vld [vmem:[%s2443] sm:$0x1]
    %v2446 = vperm.slane %v2444, 0
    %v2452 = vunpack.c.l.b16 %v2439
    %v2453 = vunpack.c.l.b16 %v2440
    %v2454 = vunpack.c.l.b16 %v2441
    %v2455 = vunpack.c.l.b16 %v2442
    %v2456 = vpack.c.b16 %v2453, %v2452
    %v2457 = vpack.c.b16 %v2455, %v2454
    %v2461 = vsel %vm451, %v2437, 0
    %2463 = vmatpush.bf16.msra.mxu0 0
    %2464 = vmatpush.bf16.msra.mxu0 0
    %2465 = vmatpush.bf16.msra.mxu0 0
    %2466 = vmatpush.bf16.msra.mxu0 0
    %2467 = vmatpush.bf16.msra.mxu0 0
    %2468 = vmatpush.bf16.msra.mxu0 0
    %2469 = vmatpush.bf16.msra.mxu0 %v2457
    %2470 = vmatpush.bf16.msra.mxu0 %v2456
    %2471 = vmatmul.bf16.gmra.mxu0 %v2461
    %v2472 = vpop.f32.mrf.mxu0
    %v2473 = vadd.f32 %v2446, %v2472
    %v2474 = vpop.f32.mrf.mxu0
    %2475 = vdwg.mxu0
    %s2476 = scalar_lea.vmem %s63, 1
    %v2477 = vld [vmem:[%s2476] sm:$0x1]
    %s2478 = scalar_lea.vmem %s65, 1
    %v2479 = vld [vmem:[%s2478] sm:$0x1]
    %v2480 = vsel %vm451, %v2473, 0.0
    %2481 = vadd.xlane.f32.xlu0 %v2480
    %v2482 = vpop.xlane.xlu0 %2481
    %v2483 = vmul.f32 %v2482, %v525
    %v2484 = vsub.f32 %v2473, %v2483
    %v2485 = vmul.f32 %v2484, %v2484
    %v2486 = vsel %vm451, %v2485, 0.0
    %2487 = vadd.xlane.f32.xlu0 %v2486
    %v2488 = vpop.xlane.xlu0 %2487
    %v2489 = vmul.f32 %v2488, %v525
    %v2490 = vadd.f32 %v2489, 1e-05
    %v2491 = vrsqrt.pop %v2490
    %v2492 = vmul.f32 %v2491, %v2490
    %v2493 = vmul.f32 %v2492, %v2491
    %v2494 = vmul.f32 0.5, %v2493
    %v2495 = vsub.f32 1.5, %v2494
    %v2496 = vmul.f32 %v2491, %v2495
    %vm2497 = vweird.f32 %v2490
    %vm2498 = vweird.f32 %v2491
    %vm2499 = vmor %vm2497, %vm2498
    %v2500 = vsel %vm2499, %v2491, %v2496
    %v2501 = vmul.f32 %v2484, %v2500
    %v2503 = vperm.slane %v2477, 0
    %v2505 = vmul.f32 %v2501, %v2503
    %v2507 = vperm.slane %v2479, 0
    %v2509 = vadd.f32 %v2505, %v2507
    %v2510 = vpack.c.bf16 %v2509, %v2509
    %s2511 = scalar_lea.vmem %s67, 16
    %v2512 = vld [vmem:[%s2511] sm:$0xf]
    %v2513 = vld [vmem:[%s2511 + $0x4] sm:$0xf]
    %v2514 = vld [vmem:[%s2511 + $0x8] sm:$0xf]
    %v2515 = vld [vmem:[%s2511 + $0xc] sm:$0xf]
    %s2516 = scalar_lea.vmem %s69, 1
    %v2517 = vld [vmem:[%s2516] sm:$0x1]
    %v2519 = vperm.slane %v2517, 0
    %v2525 = vunpack.c.l.b16 %v2512
    %v2526 = vunpack.c.l.b16 %v2513
    %v2527 = vunpack.c.l.b16 %v2514
    %v2528 = vunpack.c.l.b16 %v2515
    %v2529 = vpack.c.b16 %v2526, %v2525
    %v2530 = vpack.c.b16 %v2528, %v2527
    %v2534 = vsel %vm451, %v2510, 0
    %2536 = vmatpush.bf16.msra.mxu0 0
    %2537 = vmatpush.bf16.msra.mxu0 0
    %2538 = vmatpush.bf16.msra.mxu0 0
    %2539 = vmatpush.bf16.msra.mxu0 0
    %2540 = vmatpush.bf16.msra.mxu0 0
    %2541 = vmatpush.bf16.msra.mxu0 0
    %2542 = vmatpush.bf16.msra.mxu0 %v2530
    %2543 = vmatpush.bf16.msra.mxu0 %v2529
    %2544 = vmatmul.bf16.gmra.mxu0 %v2534
    %v2545 = vpop.f32.mrf.mxu0
    %v2546 = vadd.f32 %v2519, %v2545
    %v2547 = vpop.f32.mrf.mxu0
    %2548 = vdwg.mxu0
    %v2549 = vmax.f32 %v2546, 0.0
    %v2550 = vpack.c.bf16 %v2549, %v2549
    %s2551 = scalar_lea.vmem %s71, 32
    %v2552 = vld [vmem:[%s2551] sm:$0xf]
    %v2553 = vld [vmem:[%s2551 + $0x4] sm:$0xf]
    %v2554 = vld [vmem:[%s2551 + $0x8] sm:$0xf]
    %v2555 = vld [vmem:[%s2551 + $0xc] sm:$0xf]
    %v2556 = vld [vmem:[%s2551 + $0x10] sm:$0xf]
    %v2557 = vld [vmem:[%s2551 + $0x14] sm:$0xf]
    %v2558 = vld [vmem:[%s2551 + $0x18] sm:$0xf]
    %v2559 = vld [vmem:[%s2551 + $0x1c] sm:$0xf]
    %s2560 = scalar_lea.vmem %s73, 1
    %v2561 = vld [vmem:[%s2560] sm:$0x1]
    %v2563 = vperm.slane %v2561, 0
    %v2573 = vunpack.c.l.b16 %v2552
    %v2574 = vunpack.c.l.b16 %v2553
    %v2575 = vunpack.c.l.b16 %v2554
    %v2576 = vunpack.c.l.b16 %v2555
    %v2577 = vunpack.c.l.b16 %v2556
    %v2578 = vunpack.c.l.b16 %v2557
    %v2579 = vunpack.c.l.b16 %v2558
    %v2580 = vunpack.c.l.b16 %v2559
    %v2581 = vpack.c.b16 %v2574, %v2573
    %v2582 = vpack.c.b16 %v2576, %v2575
    %v2583 = vpack.c.b16 %v2578, %v2577
    %v2584 = vpack.c.b16 %v2580, %v2579
    %v2590 = vsel %vm385, %v2550, 0
    %2592 = vmatpush.bf16.msra.mxu0 0
    %2593 = vmatpush.bf16.msra.mxu0 0
    %2594 = vmatpush.bf16.msra.mxu0 0
    %2595 = vmatpush.bf16.msra.mxu0 0
    %2596 = vmatpush.bf16.msra.mxu0 %v2584
    %2597 = vmatpush.bf16.msra.mxu0 %v2583
    %2598 = vmatpush.bf16.msra.mxu0 %v2582
    %2599 = vmatpush.bf16.msra.mxu0 %v2581
    %2600 = vmatmul.bf16.gmra.mxu0 %v2590
    %v2601 = vpop.f32.mrf.mxu0
    %v2602 = vadd.f32 %v2563, %v2601
    %v2603 = vpop.f32.mrf.mxu0
    %2604 = vdwg.mxu0
    %v2605 = vadd.f32 %v2509, %v2602
    %s2606 = scalar_lea.vmem %s75, 1
    %v2607 = vld [vmem:[%s2606] sm:$0x1]
    %s2608 = scalar_lea.vmem %s77, 1
    %v2609 = vld [vmem:[%s2608] sm:$0x1]
    %v2610 = vsel %vm451, %v2605, 0.0
    %2611 = vadd.xlane.f32.xlu0 %v2610
    %v2612 = vpop.xlane.xlu0 %2611
    %v2613 = vmul.f32 %v2612, %v525
    %v2614 = vsub.f32 %v2605, %v2613
    %v2615 = vmul.f32 %v2614, %v2614
    %v2616 = vsel %vm451, %v2615, 0.0
    %2617 = vadd.xlane.f32.xlu0 %v2616
    %v2618 = vpop.xlane.xlu0 %2617
    %v2619 = vmul.f32 %v2618, %v525
    %v2620 = vadd.f32 %v2619, 1e-05
    %v2621 = vrsqrt.pop %v2620
    %v2622 = vmul.f32 %v2621, %v2620
    %v2623 = vmul.f32 %v2622, %v2621
    %v2624 = vmul.f32 0.5, %v2623
    %v2625 = vsub.f32 1.5, %v2624
    %v2626 = vmul.f32 %v2621, %v2625
    %vm2627 = vweird.f32 %v2620
    %vm2628 = vweird.f32 %v2621
    %vm2629 = vmor %vm2627, %vm2628
    %v2630 = vsel %vm2629, %v2621, %v2626
    %v2631 = vmul.f32 %v2614, %v2630
    %v2633 = vperm.slane %v2607, 0
    %v2635 = vmul.f32 %v2631, %v2633
    %v2637 = vperm.slane %v2609, 0
    %v2639 = vadd.f32 %v2635, %v2637
    %v2640 = vpack.c.bf16 %v2639, %v2639
    %v2642 = vsel %vm1508, %v2640, 0
    %2644 = vmatpush.bf16.msra.mxu0 0
    %2645 = vmatpush.bf16.msra.mxu0 0
    %2646 = vmatpush.bf16.msra.mxu0 0
    %2647 = vmatpush.bf16.msra.mxu0 0
    %2648 = vmatpush.bf16.msra.mxu0 0
    %2649 = vmatpush.bf16.msra.mxu0 0
    %2650 = vmatpush.bf16.msra.mxu0 0
    %2651 = vmatpush.bf16.msra.mxu0 %v2642
    %2652 = vmatmul.bf16.gmra.mxu0 %v1506
    %v2653 = vpop.f32.mrf.mxu0
    %v2654 = vadd.f32 0.0, %v2653
    %v2655 = vpop.f32.mrf.mxu0
    %2656 = vdwg.mxu0
    %v2657 = vpack.c.bf16 %v2654, %v2654
    %s2658 = scalar_lea.vmem %s79, 16
    %v2659 = vld [vmem:[%s2658] sm:$0xf]
    %v2660 = vld [vmem:[%s2658 + $0x4] sm:$0xf]
    %v2661 = vld [vmem:[%s2658 + $0x8] sm:$0xf]
    %v2662 = vld [vmem:[%s2658 + $0xc] sm:$0xf]
    %s2663 = scalar_lea.vmem %s81, 1
    %v2664 = vld [vmem:[%s2663] sm:$0x1]
    %v2666 = vperm.slane %v2664, 0
    %v2672 = vunpack.c.l.b16 %v2659
    %v2673 = vunpack.c.l.b16 %v2660
    %v2674 = vunpack.c.l.b16 %v2661
    %v2675 = vunpack.c.l.b16 %v2662
    %v2676 = vpack.c.b16 %v2673, %v2672
    %v2677 = vpack.c.b16 %v2675, %v2674
    %v2681 = vsel %vm451, %v2657, 0
    %2683 = vmatpush.bf16.msra.mxu0 0
    %2684 = vmatpush.bf16.msra.mxu0 0
    %2685 = vmatpush.bf16.msra.mxu0 0
    %2686 = vmatpush.bf16.msra.mxu0 0
    %2687 = vmatpush.bf16.msra.mxu0 0
    %2688 = vmatpush.bf16.msra.mxu0 0
    %2689 = vmatpush.bf16.msra.mxu0 %v2677
    %2690 = vmatpush.bf16.msra.mxu0 %v2676
    %2691 = vmatmul.bf16.gmra.mxu0 %v2681
    %v2692 = vpop.f32.mrf.mxu0
    %v2693 = vadd.f32 %v2666, %v2692
    %v2694 = vpop.f32.mrf.mxu0
    %2695 = vdwg.mxu0
    %v2696 = vadd.f32 %v1562, %v2693
    %vm2697 = vcmask 17408
    %2698 = vst.msk [vmem:[#allocation5] sm:$0x3] %vm2697, %v2696
    %2700 = vrot.lane.b32.xlu0 %v2436, 16
    %v2701 = vpop.permute.xlu0 %2700
    %v2703 = vsel %vm296, %v1309, %v2701
    %2704 = vst.msk [vmem:[%s85] sm:$0xff] %vm451, %v2703
    // Predicated region
    $region170: #{brain_decoder_forward.1} parent=1 // pred_check
      _
    $region171: #{brain_decoder_forward.1} parent=1 // pred_check_branch
      %2706 = sbr.rel (0) target = $region173
    $region172: #{brain_decoder_forward.1} parent=1 // pred_region
      %2708 = vsyncadd [#allocation3], 0
      %s2710 = sshll.u32 [#allocation5], 4
      %s2711 = int_to_ptr.vmem [resolvable:$true] %s2710
      %s2712 = sshll.u32 %s83, 4
      %s2713 = int_to_ptr.hbm [resolvable:$true] %s2712
      %2715 = dma.vmem_to_hbm [thread:$0]  %s2711, 32, %s2713, [#allocation3]
    $region173: #{brain_decoder_forward.1} parent=1 // pred_fallthru
      _
    // Predicated region
    $region174: #{brain_decoder_forward.1} parent=1 // pred_check
      _
    $region175: #{brain_decoder_forward.1} parent=1 // pred_check_branch
      %2717 = sbr.rel (0) target = $region177
    $region176: #{brain_decoder_forward.1} parent=1 // pred_region
      _
    $region177: #{brain_decoder_forward.1} parent=1 // pred_fallthru
      _
    // Predicated region
    $region178: #{brain_decoder_forward.1} parent=1 // pred_check
      _
    $region179: #{brain_decoder_forward.1} parent=1 // pred_check_branch
      %2719 = sbr.rel (0) target = $region181
    $region180: #{brain_decoder_forward.1} parent=1 // pred_region
      %2721 = dma.done [#allocation3], 32
    $region181: #{brain_decoder_forward.1} parent=1 // pred_fallthru
      _
    // Predicated region
    $region182: #{brain_decoder_forward.1} parent=1 // pred_check
      _
    $region183: #{brain_decoder_forward.1} parent=1 // pred_check_branch
      %2723 = sbr.rel (0) target = $region185
    $region184: #{brain_decoder_forward.1} parent=1 // pred_region
      _
    $region185: #{brain_decoder_forward.1} parent=1 // pred_fallthru
      _
    %2724 = vsyncpa [#allocation3], 1
    %2725 = vsyncpa [#allocation4], 1

</llo_original>
